<compile_context>
chip_gen: v6e
topology: v6e:2x2x1
jax: 0.10.0
libtpu: 0.0.40
codegen_flags: <defaults>
</compile_context>

<pallas_src>
import functools

import numpy as np
import jax
import jax.numpy as jnp
from jax import lax
from jax.experimental import pallas as pl
from jax.experimental.pallas import tpu as pltpu

NEG_BIG = -1e30


# ----------------------------------------------------------------------------
# Fused Pallas kernel: GAT layer 1 (H1 heads) + ELU + GAT layer 2 (1 head) + pool
# ----------------------------------------------------------------------------
def _fused_gat_kernel(x_ref, bias1_ref, bias2_hbm,
                      w1_ref, asrc1_ref, b1_ref, d1_ref, s1_ref, exp1_ref,
                      w2_ref, asrc2_ref, b2_ref, pool_ref,
                      o_ref,
                      xpblk_ref, srcrow_ref, bias2_vmem, dma_sem,
                      *, H1, C1, C2, N):
    f32 = jnp.float32
    bf16 = jnp.bfloat16
    HC1 = H1 * C1

    # Start the bias2 HBM->VMEM transfer now; it is only needed for layer 2,
    # so the DMA overlaps all of layer-1 compute.
    cp_bias2 = pltpu.make_async_copy(bias2_hbm, bias2_vmem, dma_sem)
    cp_bias2.start()

    x_bf = x_ref[...].astype(bf16)

    # ---------------- layer 1: H1 heads, C1 channels/head -------------------
    # One MXU matmul gives node features AND the dst-attention projection.
    proj = jnp.dot(x_bf, w1_ref[...], preferred_element_type=f32)    # (N, HC1+H1)
    xp = proj[:, :HC1]                                               # (N, HC1) f32
    a_dst = proj[:, HC1:HC1 + H1]                                    # (N, H1)
    # src-attention values, one row per head: (H1, N)
    a_srcT = lax.dot_general(asrc1_ref[...], x_bf,
                             (((1,), (1,)), ((), ())),
                             preferred_element_type=f32)

    # Lay the per-head src rows out as one lane-dense (1, H1*N) row via
    # aligned scratch stores (no sublane->lane reshape/relayout needed).
    for h in range(H1):
        srcrow_ref[0:1, h * N:(h + 1) * N] = a_srcT[h:h + 1, :]

    # dst term expanded to the wide (N, H1*N) layout with one small matmul.
    a_dst_wide = jnp.dot(a_dst.astype(bf16), d1_ref[...],
                         preferred_element_type=f32)                 # (N, H1*N)

    # bias1 already holds the edge-attention term + additive mask (0 / -1e30).
    logits = a_dst_wide + srcrow_ref[...] + bias1_ref[...].astype(f32)
    logits = jnp.maximum(logits, 0.2 * logits)                       # leaky_relu
    # A single per-dst-row max (constant within every head block) keeps every
    # per-head softmax mathematically unchanged, no per-head reductions.
    m = jnp.max(logits, axis=1, keepdims=True)                       # (N, 1)
    p = jnp.exp((logits - m).astype(bf16))                           # (N, H1*N) bf16
    # (masked entries are ~ -2e29 -> exp == 0; phantom rows keep a self-loop)

    # Per-head softmax denominators via MXU (f32 accumulate), then expand the
    # reciprocal to (N, HC1) so normalisation is a single multiply.
    rs = jnp.dot(p, s1_ref[...], preferred_element_type=f32)         # (N, H1)
    inv_wide = jnp.dot(pl.reciprocal(rs, approx=True), exp1_ref[...],
                       preferred_element_type=f32)                   # (N, HC1)

    # Block-diagonal xp written straight into a VMEM scratch (no iota/concat).
    for h in range(H1):
        xpblk_ref[h * N:(h + 1) * N, :] = (xp * exp1_ref[h:h + 1, :]).astype(bf16)

    # Single lane-dense attention matmul for ALL heads: (N,H1*N)@(H1*N,HC1).
    out1 = jnp.dot(p, xpblk_ref[...], preferred_element_type=f32)    # (N, HC1)
    out1 = out1 * inv_wide + b1_ref[...]
    h1 = jnp.where(out1 > 0, out1,
                   jnp.exp(jnp.minimum(out1, 0.0)) - 1.0)            # ELU

    # ---------------- layer 2: 1 head, C2 channels --------------------------
    cp_bias2.wait()
    h1_bf = h1.astype(bf16)
    proj2 = jnp.dot(h1_bf, w2_ref[...], preferred_element_type=f32)  # (N, C2+1)
    xp2 = proj2[:, :C2]
    a_dst2 = proj2[:, C2:C2 + 1]
    a_src2 = lax.dot_general(asrc2_ref[...], h1_bf,
                             (((1,), (1,)), ((), ())),
                             preferred_element_type=f32)             # (1, N)
    logits2 = a_dst2 + a_src2 + bias2_vmem[...].astype(f32)          # (N, N)
    logits2 = jnp.maximum(logits2, 0.2 * logits2)
    m2 = jnp.max(logits2, axis=1, keepdims=True)
    p2 = jnp.exp(logits2 - m2)                                       # f32 (small slab)
    rs2 = jnp.sum(p2, axis=1, keepdims=True)                         # (N, 1)
    out2 = jnp.dot(p2.astype(bf16), xp2.astype(bf16),
                   preferred_element_type=f32)                       # (N, C2)
    out2 = out2 * pl.reciprocal(rs2, approx=True) + b2_ref[...]

    # ---------------- fused global mean pool --------------------------------
    o_ref[...] = jnp.dot(pool_ref[...], out2,
                         preferred_element_type=f32).astype(o_ref.dtype)


# ----------------------------------------------------------------------------
# Glue: parameter folding, graph densification (padded), wrapper
# ----------------------------------------------------------------------------
def _blockdiag(att):
    """(H, C) attention vector -> (H*C, H) block-diagonal matrix (numpy)."""
    att = np.asarray(att, np.float32)
    H, C = att.shape
    m = np.zeros((H * C, H), np.float32)
    for h in range(H):
        m[h * C:(h + 1) * C, h] = att[h]
    return m


def _fold_layer_params(W, att_src, att_dst, att_edge, W_edge, bias):
    W = np.asarray(W, np.float32)
    W_edge = np.asarray(W_edge, np.float32)
    bias = np.asarray(bias, np.float32)
    H, C = np.asarray(att_src).shape
    A_dst = _blockdiag(att_dst)                  # (H*C, H)
    A_srcT = _blockdiag(att_src).T               # (H, H*C)
    A_edgeT = _blockdiag(att_edge).T             # (H, H*C)
    W_cat = np.concatenate([W, W @ A_dst], axis=1)      # (Fin, H*C + H)
    asrc_fold = A_srcT @ W.T                            # (H, Fin)
    we = W_edge @ A_edgeT.T                             # (E, H)
    expand = _blockdiag(np.ones((H, C), np.float32)).T  # (H, H*C) block indicator
    return W_cat, asrc_fold, we, expand, bias.reshape(1, -1)


def _head_expand_mats(H, n_pad):
    """Indicator matrices for the wide (N, H*N) layout (numpy, 0/1)."""
    D = np.zeros((H, H * n_pad), np.float32)   # a_dst expand
    S = np.zeros((H * n_pad, H), np.float32)   # per-head row-sum
    for h in range(H):
        D[h, h * n_pad:(h + 1) * n_pad] = 1.0
        S[h * n_pad:(h + 1) * n_pad, h] = 1.0
    return D, S


def build_dense_graph(edge_index, edge_attr, num_nodes, n_pad):
    """Densify the graph (padded to n_pad). Matches GATConv: remove_self_loops
    then add_self_loops(fill_value='mean'). Phantom padded nodes get a
    self-loop so their softmax rows stay finite (they contribute nothing)."""
    ei = np.asarray(edge_index)
    ea = np.asarray(edge_attr, dtype=np.float32)
    src, dst = ei[0], ei[1]
    keep = src != dst
    src, dst, ea = src[keep], dst[keep], ea[keep]
    E = ea.shape[1]
    sums = np.zeros((num_nodes, E), np.float32)
    cnts = np.zeros((num_nodes,), np.float32)
    np.add.at(sums, dst, ea)
    np.add.at(cnts, dst, 1.0)
    mean_attr = sums / np.maximum(cnts, 1.0)[:, None]

    mask = np.zeros((n_pad, n_pad), np.float32)
    dense = np.zeros((n_pad, n_pad, E), np.float32)
    mask[dst, src] = 1.0
    dense[dst, src, :] = ea
    idx = np.arange(num_nodes)
    mask[idx, idx] = 1.0
    dense[idx, idx, :] = mean_attr
    pad_idx = np.arange(num_nodes, n_pad)
    mask[pad_idx, pad_idx] = 1.0          # phantom self-loops (zero edge attrs)
    return mask, dense


def _edge_mask_bias_wide(dense, mask, we):
    """(Np,Np,E) dense edge attrs + mask + folded (E,H) weights -> additive
    attention bias in the wide layout (Np, H*Np):  [.., h*Np + s] per head."""
    H = we.shape[1]
    Np = mask.shape[0]
    ae = np.einsum('dse,eh->dhs', dense, we)                      # (Np, H, Np)
    mb = np.where(mask > 0.5, 0.0, NEG_BIG).astype(np.float32)
    return (ae + mb[:, None, :]).reshape(Np, H * Np).astype(np.float32)


def _vmem_limit_bytes(n_pad, h1, c1, c2):
    try:
        cap = int(pltpu.get_tpu_info().vmem_capacity_bytes)
    except Exception:
        cap = 128 << 20
    # leave headroom for Mosaic-internal scratch; stricter on 64 MiB parts (v7x)
    budget = cap - ((12 << 20) if cap <= (64 << 20) else (16 << 20))
    slab = n_pad * h1 * n_pad
    est = (slab * (2 + 4 + 4 + 2)               # bias1(bf16)+a_dst_wide/logits(f32)+p(bf16)
           + n_pad * n_pad * (2 + 2 + 4 + 4 + 2)  # bias2 in + VMEM copy + logits2/p2 + p2(bf16)
           + h1 * n_pad * h1 * c1 * 2           # xpblk scratch (bf16)
           + n_pad * h1 * c1 * 4 * 6            # xp / out1 / h1 / inv_wide f32 temporaries
           + n_pad * c2 * 4 * 4
           + (8 << 20))                         # weights / pool / slack
    # TODO(synk): if est > budget (large graphs, esp. v7x's 64 MiB VMEM) switch
    # to a dst-row-tiled two-pallas_call path (grid over dst rows, "parallel").
    return int(min(budget, max(est, 24 << 20)))


def gat_with_edge_attr_forward(x, edge_index, edge_attr, batch, params,
                               num_graphs, out_channels):
    x_np = np.asarray(x, np.float32)
    N, Fin = x_np.shape
    n_pad = max(128, ((N + 127) // 128) * 128)

    mask, dense = build_dense_graph(edge_index, edge_attr, N, n_pad)

    p = params
    H1, C1 = np.asarray(p['as1']).shape
    C2 = out_channels

    W1c, asrc1, we1, exp1, b1 = _fold_layer_params(
        p['W1'], p['as1'], p['ad1'], p['ae1'], p['We1'], p['b1'])
    W2c, asrc2, we2, _, b2 = _fold_layer_params(
        p['W2'], p['as2'], p['ad2'], p['ae2'], p['We2'], p['b2'])

    bias1_w = _edge_mask_bias_wide(dense, mask, we1)     # (Np, H1*Np)
    bias2_w = _edge_mask_bias_wide(dense, mask, we2)     # (Np, Np)
    D1, S1 = _head_expand_mats(H1, n_pad)

    x_pad = np.zeros((n_pad, Fin), np.float32)
    x_pad[:N] = x_np

    b = np.asarray(batch)
    onehot = (b[None, :] == np.arange(num_graphs)[:, None]).astype(np.float32)
    counts = np.maximum(onehot.sum(1, keepdims=True), 1.0)
    pool = np.zeros((num_graphs, n_pad), np.float32)
    pool[:, :N] = onehot / counts

    kern = functools.partial(_fused_gat_kernel, H1=H1, C1=C1, C2=C2, N=n_pad)
    vmem_bytes = _vmem_limit_bytes(n_pad, H1, C1, C2)

    vspec = pl.BlockSpec(memory_space=pltpu.MemorySpace.VMEM)
    anyspec = pl.BlockSpec(memory_space=pl.ANY)   # bias2 stays in HBM, DMA'd manually
    bf = jnp.bfloat16

    return pl.pallas_call(
        kern,
        out_shape=jax.ShapeDtypeStruct((num_graphs, C2), jnp.float32),
        in_specs=[vspec, vspec, anyspec,
                  vspec, vspec, vspec, vspec, vspec, vspec,
                  vspec, vspec, vspec, vspec],
        out_specs=vspec,
        scratch_shapes=[pltpu.VMEM((H1 * n_pad, H1 * C1), bf),   # block-diag xp
                        pltpu.VMEM((1, H1 * n_pad), jnp.float32),  # wide a_src row
                        pltpu.VMEM((n_pad, n_pad), bf),            # bias2 landing buf
                        pltpu.SemaphoreType.DMA(())],
        compiler_params=pltpu.CompilerParams(vmem_limit_bytes=vmem_bytes),
    )(jnp.asarray(x_pad),
      jnp.asarray(bias1_w, bf), jnp.asarray(bias2_w, bf),
      jnp.asarray(W1c, bf), jnp.asarray(asrc1, bf), jnp.asarray(b1),
      jnp.asarray(D1, bf), jnp.asarray(S1, bf), jnp.asarray(exp1),
      jnp.asarray(W2c, bf), jnp.asarray(asrc2, bf), jnp.asarray(b2),
      jnp.asarray(pool))


# ----------------------------------------------------------------------------
# Pure-JAX f32 reference (dense GATConv math) for a correctness check
# ----------------------------------------------------------------------------
def _gat_ref(x, mask, dense, W, att_src, att_dst, att_edge, W_edge, bias,
             heads, cph):
    N = x.shape[0]
    xp = (x @ W).reshape(N, heads, cph)
    a_src = (xp * att_src[None]).sum(-1)
    a_dst = (xp * att_dst[None]).sum(-1)
    ep = (dense.reshape(N * N, -1) @ W_edge).reshape(N, N, heads, cph)
    a_e = (ep * att_edge[None, None]).sum(-1)
    logits = a_dst[:, None, :] + a_src[None, :, :] + a_e
    logits = jnp.where(logits > 0, logits, 0.2 * logits)
    logits = jnp.where(mask[:, :, None] > 0.5, logits, -1e30)
    logits = logits - logits.max(axis=1, keepdims=True)
    pexp = jnp.exp(logits)
    alpha = pexp / pexp.sum(axis=1, keepdims=True)
    return jnp.einsum('dsh,shc->dhc', alpha, xp).reshape(N, heads * cph) + bias


# ----------------------------------------------------------------------------
if __name__ == "__main__":
    key = jax.random.PRNGKey(0)
    ks = jax.random.split(key, 16)

    # small shapes: 16 nodes, 2 graphs of 8 nodes, in=4 feats, edge_dim=4, out=16
    N, Fin, E_dim, C_out = 16, 4, 4, 16
    H1, C1 = 8, 8
    H2, C2 = 1, C_out
    G = 2

    x = jax.random.normal(ks[0], (N, Fin), jnp.float32)
    # bidirectional ring within each sub-graph
    src, dst = [], []
    for g in range(G):
        base = g * 8
        for i in range(8):
            a, b = base + i, base + (i + 1) % 8
            src += [a, b]
            dst += [b, a]
    edge_index = np.array([src, dst], np.int32)               # (2, 32)
    edge_attr = jax.random.normal(ks[1], (edge_index.shape[1], E_dim), jnp.float32)
    batch = np.repeat(np.arange(G), 8).astype(np.int32)       # (16,)

    def glorot(k, shape):
        s = jnp.sqrt(6.0 / (shape[0] + shape[-1]))
        return jax.random.uniform(k, shape, jnp.float32, -s, s)

    params = dict(
        # gat1: GATConv(4, 8, heads=8, edge_dim=4)
        W1=glorot(ks[2], (Fin, H1 * C1)),
        We1=glorot(ks[3], (E_dim, H1 * C1)),
        as1=glorot(ks[4], (H1, C1)),
        ad1=glorot(ks[5], (H1, C1)),
        ae1=glorot(ks[6], (H1, C1)),
        b1=0.1 * jax.random.normal(ks[7], (H1 * C1,), jnp.float32),
        # gat2: GATConv(64, 16, heads=1, edge_dim=4)
        W2=glorot(ks[8], (H1 * C1, H2 * C2)),
        We2=glorot(ks[9], (E_dim, H2 * C2)),
        as2=glorot(ks[10], (H2, C2)),
        ad2=glorot(ks[11], (H2, C2)),
        ae2=glorot(ks[12], (H2, C2)),
        b2=0.1 * jax.random.normal(ks[13], (H2 * C2,), jnp.float32),
    )

    out = gat_with_edge_attr_forward(x, edge_index, edge_attr, batch, params,
                                     num_graphs=G, out_channels=C_out)
    out = jax.block_until_ready(out)
    assert out.shape == (G, C_out)

    # pure-JAX f32 reference check (unpadded); kernel runs bf16 MXU/exp so a
    # slightly wider tolerance than pure-f32 is expected.
    mask_r, dense_r = build_dense_graph(edge_index, edge_attr, N, N)
    mask_r = jnp.asarray(mask_r)
    dense_r = jnp.asarray(dense_r)
    h_ref = _gat_ref(x, mask_r, dense_r, params['W1'], params['as1'],
                     params['ad1'], params['ae1'], params['We1'], params['b1'],
                     H1, C1)
    h_ref = jnp.where(h_ref > 0, h_ref, jnp.exp(h_ref) - 1.0)
    h_ref = _gat_ref(h_ref, mask_r, dense_r, params['W2'], params['as2'],
                     params['ad2'], params['ae2'], params['We2'], params['b2'],
                     H2, C2)
    onehot = (batch[None, :] == np.arange(G)[:, None]).astype(np.float32)
    ref = jnp.asarray(onehot / onehot.sum(1, keepdims=True)) @ h_ref
    np.testing.assert_allclose(np.asarray(out), np.asarray(ref),
                               rtol=2e-2, atol=2e-2)

    print("KERNEL_OK")
</pallas_src>

<mosaic_0001>
module attributes {stable_mosaic.version = 11 : i64} {
  func.func @_fused_gat_kernel(%arg0: memref<128x4xf32, #tpu.memory_space<vmem>>, %arg1: memref<128x1024xbf16, #tpu.memory_space<vmem>>, %arg2: memref<128x128xbf16, #tpu.memory_space<any>>, %arg3: memref<4x72xbf16, #tpu.memory_space<vmem>>, %arg4: memref<8x4xbf16, #tpu.memory_space<vmem>>, %arg5: memref<1x64xf32, #tpu.memory_space<vmem>>, %arg6: memref<8x1024xbf16, #tpu.memory_space<vmem>>, %arg7: memref<1024x8xbf16, #tpu.memory_space<vmem>>, %arg8: memref<8x64xf32, #tpu.memory_space<vmem>>, %arg9: memref<64x17xbf16, #tpu.memory_space<vmem>>, %arg10: memref<1x64xbf16, #tpu.memory_space<vmem>>, %arg11: memref<1x16xf32, #tpu.memory_space<vmem>>, %arg12: memref<2x128xf32, #tpu.memory_space<vmem>>, %arg13: memref<2x16xf32, #tpu.memory_space<vmem>>, %arg14: memref<1024x64xbf16, #tpu.memory_space<vmem>>, %arg15: memref<1x1024xf32, #tpu.memory_space<vmem>>, %arg16: memref<128x128xbf16, #tpu.memory_space<vmem>>, %arg17: memref<!tpu.dma_semaphore, #tpu.memory_space<semaphore_mem>>) attributes {dimension_semantics = [], scalar_prefetch = 0 : i64, scratch_operands = 4 : i64, tpu.core_type = #tpu.core_type<tc>} {
    tpu.enqueue_dma source(%arg2 : memref<128x128xbf16, #tpu.memory_space<any>>) target(%arg16 : memref<128x128xbf16, #tpu.memory_space<vmem>>) target_semaphore(%arg17 : memref<!tpu.dma_semaphore, #tpu.memory_space<semaphore_mem>>)
    %c0 = arith.constant 0 : index
    %c0_0 = arith.constant 0 : index
    %0 = vector.load %arg0[%c0, %c0_0] : memref<128x4xf32, #tpu.memory_space<vmem>>, vector<128x4xf32>
    %1 = arith.truncf %0 : vector<128x4xf32> to vector<128x4xbf16>
    %c0_1 = arith.constant 0 : index
    %c0_2 = arith.constant 0 : index
    %2 = vector.load %arg3[%c0_1, %c0_2] : memref<4x72xbf16, #tpu.memory_space<vmem>>, vector<4x72xbf16>
    %cst = arith.constant dense<0.000000e+00> : vector<128x72xf32>
    %3 = tpu.matmul %1, %2, %cst {dimension_numbers = #tpu.dot_dimension_numbers<[1], [0], [0], [1], [0, 0, 1, 1], [], []>} : vector<128x4xbf16>, vector<4x72xbf16>, vector<128x72xf32> -> vector<128x72xf32>
    %4 = vector.extract_strided_slice %3 {offsets = [0, 0], sizes = [128, 64], strides = [1, 1]} : vector<128x72xf32> to vector<128x64xf32>
    %5 = vector.extract_strided_slice %3 {offsets = [0, 64], sizes = [128, 8], strides = [1, 1]} : vector<128x72xf32> to vector<128x8xf32>
    %c0_3 = arith.constant 0 : index
    %c0_4 = arith.constant 0 : index
    %6 = vector.load %arg4[%c0_3, %c0_4] : memref<8x4xbf16, #tpu.memory_space<vmem>>, vector<8x4xbf16>
    %cst_5 = arith.constant dense<0.000000e+00> : vector<8x128xf32>
    %7 = tpu.matmul %6, %1, %cst_5 {dimension_numbers = #tpu.dot_dimension_numbers<[1], [1], [0], [0], [0, 0, 1, 0], [], []>} : vector<8x4xbf16>, vector<128x4xbf16>, vector<8x128xf32> -> vector<8x128xf32>
    %8 = vector.extract_strided_slice %7 {offsets = [0, 0], sizes = [1, 128], strides = [1, 1]} : vector<8x128xf32> to vector<1x128xf32>
    %c0_6 = arith.constant 0 : index
    %c0_7 = arith.constant 0 : index
    %9 = vector.load %arg15[%c0_6, %c0_7] : memref<1x1024xf32, #tpu.memory_space<vmem>>, vector<1x128xf32>
    tpu.vector_store %arg15[%c0_6, %c0_7], %8 {strides = array<i32>} : memref<1x1024xf32, #tpu.memory_space<vmem>>, vector<1x128xf32>,
    %10 = vector.extract_strided_slice %7 {offsets = [1, 0], sizes = [1, 128], strides = [1, 1]} : vector<8x128xf32> to vector<1x128xf32>
    %c0_8 = arith.constant 0 : index
    %c128 = arith.constant 128 : index
    %11 = vector.load %arg15[%c0_8, %c128] : memref<1x1024xf32, #tpu.memory_space<vmem>>, vector<1x128xf32>
    tpu.vector_store %arg15[%c0_8, %c128], %10 {strides = array<i32>} : memref<1x1024xf32, #tpu.memory_space<vmem>>, vector<1x128xf32>,
    %12 = vector.extract_strided_slice %7 {offsets = [2, 0], sizes = [1, 128], strides = [1, 1]} : vector<8x128xf32> to vector<1x128xf32>
    %c0_9 = arith.constant 0 : index
    %c256 = arith.constant 256 : index
    %13 = vector.load %arg15[%c0_9, %c256] : memref<1x1024xf32, #tpu.memory_space<vmem>>, vector<1x128xf32>
    tpu.vector_store %arg15[%c0_9, %c256], %12 {strides = array<i32>} : memref<1x1024xf32, #tpu.memory_space<vmem>>, vector<1x128xf32>,
    %14 = vector.extract_strided_slice %7 {offsets = [3, 0], sizes = [1, 128], strides = [1, 1]} : vector<8x128xf32> to vector<1x128xf32>
    %c0_10 = arith.constant 0 : index
    %c384 = arith.constant 384 : index
    %15 = vector.load %arg15[%c0_10, %c384] : memref<1x1024xf32, #tpu.memory_space<vmem>>, vector<1x128xf32>
    tpu.vector_store %arg15[%c0_10, %c384], %14 {strides = array<i32>} : memref<1x1024xf32, #tpu.memory_space<vmem>>, vector<1x128xf32>,
    %16 = vector.extract_strided_slice %7 {offsets = [4, 0], sizes = [1, 128], strides = [1, 1]} : vector<8x128xf32> to vector<1x128xf32>
    %c0_11 = arith.constant 0 : index
    %c512 = arith.constant 512 : index
    %17 = vector.load %arg15[%c0_11, %c512] : memref<1x1024xf32, #tpu.memory_space<vmem>>, vector<1x128xf32>
    tpu.vector_store %arg15[%c0_11, %c512], %16 {strides = array<i32>} : memref<1x1024xf32, #tpu.memory_space<vmem>>, vector<1x128xf32>,
    %18 = vector.extract_strided_slice %7 {offsets = [5, 0], sizes = [1, 128], strides = [1, 1]} : vector<8x128xf32> to vector<1x128xf32>
    %c0_12 = arith.constant 0 : index
    %c640 = arith.constant 640 : index
    %19 = vector.load %arg15[%c0_12, %c640] : memref<1x1024xf32, #tpu.memory_space<vmem>>, vector<1x128xf32>
    tpu.vector_store %arg15[%c0_12, %c640], %18 {strides = array<i32>} : memref<1x1024xf32, #tpu.memory_space<vmem>>, vector<1x128xf32>,
    %20 = vector.extract_strided_slice %7 {offsets = [6, 0], sizes = [1, 128], strides = [1, 1]} : vector<8x128xf32> to vector<1x128xf32>
    %c0_13 = arith.constant 0 : index
    %c768 = arith.constant 768 : index
    %21 = vector.load %arg15[%c0_13, %c768] : memref<1x1024xf32, #tpu.memory_space<vmem>>, vector<1x128xf32>
    tpu.vector_store %arg15[%c0_13, %c768], %20 {strides = array<i32>} : memref<1x1024xf32, #tpu.memory_space<vmem>>, vector<1x128xf32>,
    %22 = vector.extract_strided_slice %7 {offsets = [7, 0], sizes = [1, 128], strides = [1, 1]} : vector<8x128xf32> to vector<1x128xf32>
    %c0_14 = arith.constant 0 : index
    %c896 = arith.constant 896 : index
    %23 = vector.load %arg15[%c0_14, %c896] : memref<1x1024xf32, #tpu.memory_space<vmem>>, vector<1x128xf32>
    tpu.vector_store %arg15[%c0_14, %c896], %22 {strides = array<i32>} : memref<1x1024xf32, #tpu.memory_space<vmem>>, vector<1x128xf32>,
    %24 = arith.truncf %5 : vector<128x8xf32> to vector<128x8xbf16>
    %c0_15 = arith.constant 0 : index
    %c0_16 = arith.constant 0 : index
    %25 = vector.load %arg6[%c0_15, %c0_16] : memref<8x1024xbf16, #tpu.memory_space<vmem>>, vector<8x1024xbf16>
    %cst_17 = arith.constant dense<0.000000e+00> : vector<128x1024xf32>
    %26 = tpu.matmul %24, %25, %cst_17 {dimension_numbers = #tpu.dot_dimension_numbers<[1], [0], [0], [1], [0, 0, 1, 1], [], []>} : vector<128x8xbf16>, vector<8x1024xbf16>, vector<128x1024xf32> -> vector<128x1024xf32>
    %c0_18 = arith.constant 0 : index
    %c0_19 = arith.constant 0 : index
    %27 = vector.load %arg15[%c0_18, %c0_19] : memref<1x1024xf32, #tpu.memory_space<vmem>>, vector<1x1024xf32>
    %28 = vector.broadcast %27 : vector<1x1024xf32> to vector<128x1024xf32>
    %29 = arith.addf %26, %28 : vector<128x1024xf32>
    %c0_20 = arith.constant 0 : index
    %c0_21 = arith.constant 0 : index
    %30 = vector.load %arg1[%c0_20, %c0_21] : memref<128x1024xbf16, #tpu.memory_space<vmem>>, vector<128x1024xbf16>
    %31 = arith.extf %30 : vector<128x1024xbf16> to vector<128x1024xf32>
    %32 = arith.addf %29, %31 : vector<128x1024xf32>
    %cst_22 = arith.constant 2.000000e-01 : f32
    %33 = vector.broadcast %cst_22 : f32 to vector<128x1024xf32>
    %34 = arith.mulf %33, %32 : vector<128x1024xf32>
    %35 = arith.maximumf %32, %34 : vector<128x1024xf32>
    %cst_23 = arith.constant dense<0xFF800000> : vector<128xf32>
    %36 = vector.multi_reduction <maximumf>, %35, %cst_23 [1] : vector<128x1024xf32> to vector<128xf32>
    %37 = vector.shape_cast %36 : vector<128xf32> to vector<128x1xf32>
    %38 = vector.broadcast %37 : vector<128x1xf32> to vector<128x1024xf32>
    %39 = arith.subf %35, %38 : vector<128x1024xf32>
    %40 = arith.truncf %39 : vector<128x1024xf32> to vector<128x1024xbf16>
    %41 = math.exp %40 : vector<128x1024xbf16>
    %c0_24 = arith.constant 0 : index
    %c0_25 = arith.constant 0 : index
    %42 = vector.load %arg7[%c0_24, %c0_25] : memref<1024x8xbf16, #tpu.memory_space<vmem>>, vector<1024x8xbf16>
    %cst_26 = arith.constant dense<0.000000e+00> : vector<128x8xf32>
    %43 = tpu.matmul %41, %42, %cst_26 {dimension_numbers = #tpu.dot_dimension_numbers<[1], [0], [0], [1], [0, 0, 1, 1], [], []>} : vector<128x1024xbf16>, vector<1024x8xbf16>, vector<128x8xf32> -> vector<128x8xf32>
    %44 = tpu.reciprocal %43 {approx = true} : vector<128x8xf32> -> vector<128x8xf32>
    %c0_27 = arith.constant 0 : index
    %c0_28 = arith.constant 0 : index
    %45 = vector.load %arg8[%c0_27, %c0_28] : memref<8x64xf32, #tpu.memory_space<vmem>>, vector<8x64xf32>
    %cst_29 = arith.constant dense<0.000000e+00> : vector<128x64xf32>
    %46 = tpu.matmul %44, %45, %cst_29 {dimension_numbers = #tpu.dot_dimension_numbers<[1], [0], [0], [1], [0, 0, 1, 1], [], []>} : vector<128x8xf32>, vector<8x64xf32>, vector<128x64xf32> -> vector<128x64xf32>
    %c0_30 = arith.constant 0 : index
    %c0_31 = arith.constant 0 : index
    %47 = vector.load %arg8[%c0_30, %c0_31] : memref<8x64xf32, #tpu.memory_space<vmem>>, vector<1x64xf32>
    %48 = vector.broadcast %47 : vector<1x64xf32> to vector<128x64xf32>
    %49 = arith.mulf %4, %48 : vector<128x64xf32>
    %50 = arith.truncf %49 : vector<128x64xf32> to vector<128x64xbf16>
    %c0_32 = arith.constant 0 : index
    %c0_33 = arith.constant 0 : index
    %51 = vector.load %arg14[%c0_32, %c0_33] : memref<1024x64xbf16, #tpu.memory_space<vmem>>, vector<128x64xbf16>
    tpu.vector_store %arg14[%c0_32, %c0_33], %50 {strides = array<i32>} : memref<1024x64xbf16, #tpu.memory_space<vmem>>, vector<128x64xbf16>,
    %c1 = arith.constant 1 : index
    %c0_34 = arith.constant 0 : index
    %52 = vector.load %arg8[%c1, %c0_34] : memref<8x64xf32, #tpu.memory_space<vmem>>, vector<1x64xf32>
    %53 = vector.broadcast %52 : vector<1x64xf32> to vector<128x64xf32>
    %54 = arith.mulf %4, %53 : vector<128x64xf32>
    %55 = arith.truncf %54 : vector<128x64xf32> to vector<128x64xbf16>
    %c128_35 = arith.constant 128 : index
    %c0_36 = arith.constant 0 : index
    %56 = vector.load %arg14[%c128_35, %c0_36] : memref<1024x64xbf16, #tpu.memory_space<vmem>>, vector<128x64xbf16>
    tpu.vector_store %arg14[%c128_35, %c0_36], %55 {strides = array<i32>} : memref<1024x64xbf16, #tpu.memory_space<vmem>>, vector<128x64xbf16>,
    %c2 = arith.constant 2 : index
    %c0_37 = arith.constant 0 : index
    %57 = vector.load %arg8[%c2, %c0_37] : memref<8x64xf32, #tpu.memory_space<vmem>>, vector<1x64xf32>
    %58 = vector.broadcast %57 : vector<1x64xf32> to vector<128x64xf32>
    %59 = arith.mulf %4, %58 : vector<128x64xf32>
    %60 = arith.truncf %59 : vector<128x64xf32> to vector<128x64xbf16>
    %c256_38 = arith.constant 256 : index
    %c0_39 = arith.constant 0 : index
    %61 = vector.load %arg14[%c256_38, %c0_39] : memref<1024x64xbf16, #tpu.memory_space<vmem>>, vector<128x64xbf16>
    tpu.vector_store %arg14[%c256_38, %c0_39], %60 {strides = array<i32>} : memref<1024x64xbf16, #tpu.memory_space<vmem>>, vector<128x64xbf16>,
    %c3 = arith.constant 3 : index
    %c0_40 = arith.constant 0 : index
    %62 = vector.load %arg8[%c3, %c0_40] : memref<8x64xf32, #tpu.memory_space<vmem>>, vector<1x64xf32>
    %63 = vector.broadcast %62 : vector<1x64xf32> to vector<128x64xf32>
    %64 = arith.mulf %4, %63 : vector<128x64xf32>
    %65 = arith.truncf %64 : vector<128x64xf32> to vector<128x64xbf16>
    %c384_41 = arith.constant 384 : index
    %c0_42 = arith.constant 0 : index
    %66 = vector.load %arg14[%c384_41, %c0_42] : memref<1024x64xbf16, #tpu.memory_space<vmem>>, vector<128x64xbf16>
    tpu.vector_store %arg14[%c384_41, %c0_42], %65 {strides = array<i32>} : memref<1024x64xbf16, #tpu.memory_space<vmem>>, vector<128x64xbf16>,
    %c4 = arith.constant 4 : index
    %c0_43 = arith.constant 0 : index
    %67 = vector.load %arg8[%c4, %c0_43] : memref<8x64xf32, #tpu.memory_space<vmem>>, vector<1x64xf32>
    %68 = vector.broadcast %67 : vector<1x64xf32> to vector<128x64xf32>
    %69 = arith.mulf %4, %68 : vector<128x64xf32>
    %70 = arith.truncf %69 : vector<128x64xf32> to vector<128x64xbf16>
    %c512_44 = arith.constant 512 : index
    %c0_45 = arith.constant 0 : index
    %71 = vector.load %arg14[%c512_44, %c0_45] : memref<1024x64xbf16, #tpu.memory_space<vmem>>, vector<128x64xbf16>
    tpu.vector_store %arg14[%c512_44, %c0_45], %70 {strides = array<i32>} : memref<1024x64xbf16, #tpu.memory_space<vmem>>, vector<128x64xbf16>,
    %c5 = arith.constant 5 : index
    %c0_46 = arith.constant 0 : index
    %72 = vector.load %arg8[%c5, %c0_46] : memref<8x64xf32, #tpu.memory_space<vmem>>, vector<1x64xf32>
    %73 = vector.broadcast %72 : vector<1x64xf32> to vector<128x64xf32>
    %74 = arith.mulf %4, %73 : vector<128x64xf32>
    %75 = arith.truncf %74 : vector<128x64xf32> to vector<128x64xbf16>
    %c640_47 = arith.constant 640 : index
    %c0_48 = arith.constant 0 : index
    %76 = vector.load %arg14[%c640_47, %c0_48] : memref<1024x64xbf16, #tpu.memory_space<vmem>>, vector<128x64xbf16>
    tpu.vector_store %arg14[%c640_47, %c0_48], %75 {strides = array<i32>} : memref<1024x64xbf16, #tpu.memory_space<vmem>>, vector<128x64xbf16>,
    %c6 = arith.constant 6 : index
    %c0_49 = arith.constant 0 : index
    %77 = vector.load %arg8[%c6, %c0_49] : memref<8x64xf32, #tpu.memory_space<vmem>>, vector<1x64xf32>
    %78 = vector.broadcast %77 : vector<1x64xf32> to vector<128x64xf32>
    %79 = arith.mulf %4, %78 : vector<128x64xf32>
    %80 = arith.truncf %79 : vector<128x64xf32> to vector<128x64xbf16>
    %c768_50 = arith.constant 768 : index
    %c0_51 = arith.constant 0 : index
    %81 = vector.load %arg14[%c768_50, %c0_51] : memref<1024x64xbf16, #tpu.memory_space<vmem>>, vector<128x64xbf16>
    tpu.vector_store %arg14[%c768_50, %c0_51], %80 {strides = array<i32>} : memref<1024x64xbf16, #tpu.memory_space<vmem>>, vector<128x64xbf16>,
    %c7 = arith.constant 7 : index
    %c0_52 = arith.constant 0 : index
    %82 = vector.load %arg8[%c7, %c0_52] : memref<8x64xf32, #tpu.memory_space<vmem>>, vector<1x64xf32>
    %83 = vector.broadcast %82 : vector<1x64xf32> to vector<128x64xf32>
    %84 = arith.mulf %4, %83 : vector<128x64xf32>
    %85 = arith.truncf %84 : vector<128x64xf32> to vector<128x64xbf16>
    %c896_53 = arith.constant 896 : index
    %c0_54 = arith.constant 0 : index
    %86 = vector.load %arg14[%c896_53, %c0_54] : memref<1024x64xbf16, #tpu.memory_space<vmem>>, vector<128x64xbf16>
    tpu.vector_store %arg14[%c896_53, %c0_54], %85 {strides = array<i32>} : memref<1024x64xbf16, #tpu.memory_space<vmem>>, vector<128x64xbf16>,
    %c0_55 = arith.constant 0 : index
    %c0_56 = arith.constant 0 : index
    %87 = vector.load %arg14[%c0_55, %c0_56] : memref<1024x64xbf16, #tpu.memory_space<vmem>>, vector<1024x64xbf16>
    %cst_57 = arith.constant dense<0.000000e+00> : vector<128x64xf32>
    %88 = tpu.matmul %41, %87, %cst_57 {dimension_numbers = #tpu.dot_dimension_numbers<[1], [0], [0], [1], [0, 0, 1, 1], [], []>} : vector<128x1024xbf16>, vector<1024x64xbf16>, vector<128x64xf32> -> vector<128x64xf32>
    %89 = arith.mulf %88, %46 : vector<128x64xf32>
    %c0_58 = arith.constant 0 : index
    %c0_59 = arith.constant 0 : index
    %90 = vector.load %arg5[%c0_58, %c0_59] : memref<1x64xf32, #tpu.memory_space<vmem>>, vector<1x64xf32>
    %91 = vector.broadcast %90 : vector<1x64xf32> to vector<128x64xf32>
    %92 = arith.addf %89, %91 : vector<128x64xf32>
    %cst_60 = arith.constant 0.000000e+00 : f32
    %93 = vector.broadcast %cst_60 : f32 to vector<128x64xf32>
    %94 = arith.cmpf ogt, %92, %93 : vector<128x64xf32>
    %cst_61 = arith.constant 0.000000e+00 : f32
    %95 = vector.broadcast %cst_61 : f32 to vector<128x64xf32>
    %96 = arith.minimumf %92, %95 : vector<128x64xf32>
    %97 = math.exp %96 : vector<128x64xf32>
    %cst_62 = arith.constant 1.000000e+00 : f32
    %98 = vector.broadcast %cst_62 : f32 to vector<128x64xf32>
    %99 = arith.subf %97, %98 : vector<128x64xf32>
    %100 = arith.select %94, %92, %99 : vector<128x64xi1>, vector<128x64xf32>
    tpu.wait_dma2 semaphore(%arg17 : memref<!tpu.dma_semaphore, #tpu.memory_space<semaphore_mem>>) src(%arg2 : memref<128x128xbf16, #tpu.memory_space<any>>) dst(%arg16 : memref<128x128xbf16, #tpu.memory_space<vmem>>)
    %101 = arith.truncf %100 : vector<128x64xf32> to vector<128x64xbf16>
    %c0_63 = arith.constant 0 : index
    %c0_64 = arith.constant 0 : index
    %102 = vector.load %arg9[%c0_63, %c0_64] : memref<64x17xbf16, #tpu.memory_space<vmem>>, vector<64x17xbf16>
    %cst_65 = arith.constant dense<0.000000e+00> : vector<128x17xf32>
    %103 = tpu.matmul %101, %102, %cst_65 {dimension_numbers = #tpu.dot_dimension_numbers<[1], [0], [0], [1], [0, 0, 1, 1], [], []>} : vector<128x64xbf16>, vector<64x17xbf16>, vector<128x17xf32> -> vector<128x17xf32>
    %104 = vector.extract_strided_slice %103 {offsets = [0, 0], sizes = [128, 16], strides = [1, 1]} : vector<128x17xf32> to vector<128x16xf32>
    %105 = vector.extract_strided_slice %103 {offsets = [0, 16], sizes = [128, 1], strides = [1, 1]} : vector<128x17xf32> to vector<128x1xf32>
    %c0_66 = arith.constant 0 : index
    %c0_67 = arith.constant 0 : index
    %106 = vector.load %arg10[%c0_66, %c0_67] : memref<1x64xbf16, #tpu.memory_space<vmem>>, vector<1x64xbf16>
    %cst_68 = arith.constant dense<0.000000e+00> : vector<1x128xf32>
    %107 = tpu.matmul %106, %101, %cst_68 {dimension_numbers = #tpu.dot_dimension_numbers<[1], [1], [0], [0], [0, 0, 1, 0], [], []>} : vector<1x64xbf16>, vector<128x64xbf16>, vector<1x128xf32> -> vector<1x128xf32>
    %108 = vector.broadcast %105 : vector<128x1xf32> to vector<128x128xf32>
    %109 = vector.broadcast %107 : vector<1x128xf32> to vector<128x128xf32>
    %110 = arith.addf %108, %109 : vector<128x128xf32>
    %c0_69 = arith.constant 0 : index
    %c0_70 = arith.constant 0 : index
    %111 = vector.load %arg16[%c0_69, %c0_70] : memref<128x128xbf16, #tpu.memory_space<vmem>>, vector<128x128xbf16>
    %112 = arith.extf %111 : vector<128x128xbf16> to vector<128x128xf32>
    %113 = arith.addf %110, %112 : vector<128x128xf32>
    %cst_71 = arith.constant 2.000000e-01 : f32
    %114 = vector.broadcast %cst_71 : f32 to vector<128x128xf32>
    %115 = arith.mulf %114, %113 : vector<128x128xf32>
    %116 = arith.maximumf %113, %115 : vector<128x128xf32>
    %cst_72 = arith.constant dense<0xFF800000> : vector<128xf32>
    %117 = vector.multi_reduction <maximumf>, %116, %cst_72 [1] : vector<128x128xf32> to vector<128xf32>
    %118 = vector.shape_cast %117 : vector<128xf32> to vector<128x1xf32>
    %119 = vector.broadcast %118 : vector<128x1xf32> to vector<128x128xf32>
    %120 = arith.subf %116, %119 : vector<128x128xf32>
    %121 = math.exp %120 : vector<128x128xf32>
    %cst_73 = arith.constant dense<0.000000e+00> : vector<128xf32>
    %122 = vector.multi_reduction <add>, %121, %cst_73 [1] : vector<128x128xf32> to vector<128xf32>
    %123 = vector.shape_cast %122 : vector<128xf32> to vector<128x1xf32>
    %124 = arith.truncf %121 : vector<128x128xf32> to vector<128x128xbf16>
    %125 = arith.truncf %104 : vector<128x16xf32> to vector<128x16xbf16>
    %cst_74 = arith.constant dense<0.000000e+00> : vector<128x16xf32>
    %126 = tpu.matmul %124, %125, %cst_74 {dimension_numbers = #tpu.dot_dimension_numbers<[1], [0], [0], [1], [0, 0, 1, 1], [], []>} : vector<128x128xbf16>, vector<128x16xbf16>, vector<128x16xf32> -> vector<128x16xf32>
    %127 = tpu.reciprocal %123 {approx = true} : vector<128x1xf32> -> vector<128x1xf32>
    %128 = vector.broadcast %127 : vector<128x1xf32> to vector<128x16xf32>
    %129 = arith.mulf %126, %128 : vector<128x16xf32>
    %c0_75 = arith.constant 0 : index
    %c0_76 = arith.constant 0 : index
    %130 = vector.load %arg11[%c0_75, %c0_76] : memref<1x16xf32, #tpu.memory_space<vmem>>, vector<1x16xf32>
    %131 = vector.broadcast %130 : vector<1x16xf32> to vector<128x16xf32>
    %132 = arith.addf %129, %131 : vector<128x16xf32>
    %c0_77 = arith.constant 0 : index
    %c0_78 = arith.constant 0 : index
    %133 = vector.load %arg12[%c0_77, %c0_78] : memref<2x128xf32, #tpu.memory_space<vmem>>, vector<2x128xf32>
    %cst_79 = arith.constant dense<0.000000e+00> : vector<2x16xf32>
    %134 = tpu.matmul %133, %132, %cst_79 {dimension_numbers = #tpu.dot_dimension_numbers<[1], [0], [0], [1], [0, 0, 1, 1], [], []>} : vector<2x128xf32>, vector<128x16xf32>, vector<2x16xf32> -> vector<2x16xf32>
    %c0_80 = arith.constant 0 : index
    %c0_81 = arith.constant 0 : index
    %135 = vector.load %arg13[%c0_80, %c0_81] : memref<2x16xf32, #tpu.memory_space<vmem>>, vector<2x16xf32>
    tpu.vector_store %arg13[%c0_80, %c0_81], %134 {strides = array<i32>} : memref<2x16xf32, #tpu.memory_space<vmem>>, vector<2x16xf32>,
    return
  }
}

</mosaic_0001>

<llo_original>
// kernel: tpu_custom_call.1
$region0: #{tpu_custom_call.1}
  #allocation0 [shape = 'u32[]', space=smem, size = 0x4, offset = 0x4, fixed_abs, tag = 'smem constant byte address 0x4 - core index']
  #allocation1 [shape = 'u32[144,128]{1,0:T(1,128)}', space=vmem, size = 0x12000, scoped, tag = 'internal scratch']
  #allocation2 [shape = 'bf16[1024,64]{1,0:T(8,128)(2,1)}', space=vmem, size = 0x40000, scoped, tag = 'scratch operand']
  #allocation3 [shape = 'f32[1,1024]{1,0:T(1,128)}', space=vmem, size = 0x1000, scoped, tag = 'scratch operand']
  #allocation4 [shape = 'bf16[128,128]{1,0:T(8,128)(2,1)}', space=vmem, size = 0x8000, scoped, tag = 'scratch operand']
  #allocation5 [shape = 's32[1]{0}', space=sflag, size = 0x4, scoped, tag = 'scratch operand']
  #allocation8 [shape = 's32[]', space=sflag, size = 0x4, offset = 0, fixed_abs, tag = 'sflag constant byte address 0x0 - dummy sync flag']
  %s0 = inlined_call_operand.vmem [shape: f32[128,4], index: 0, kind: input, shape index: {}]
  %s1 = inlined_call_operand.vmem [shape: bf16[128,1024], index: 1, kind: input, shape index: {}]
  %s2 = inlined_call_operand.vmem [shape: bf16[128,128], index: 2, kind: input, shape index: {}]
  %s3 = inlined_call_operand.vmem [shape: bf16[4,72], index: 3, kind: input, shape index: {}]
  %s4 = inlined_call_operand.vmem [shape: bf16[8,4], index: 4, kind: input, shape index: {}]
  %s5 = inlined_call_operand.vmem [shape: f32[1,64], index: 5, kind: input, shape index: {}]
  %s6 = inlined_call_operand.vmem [shape: bf16[8,1024], index: 6, kind: input, shape index: {}]
  %s7 = inlined_call_operand.vmem [shape: bf16[1024,8], index: 7, kind: input, shape index: {}]
  %s8 = inlined_call_operand.vmem [shape: f32[8,64], index: 8, kind: input, shape index: {}]
  %s9 = inlined_call_operand.vmem [shape: bf16[64,17], index: 9, kind: input, shape index: {}]
  %s10 = inlined_call_operand.vmem [shape: bf16[1,64], index: 10, kind: input, shape index: {}]
  %s11 = inlined_call_operand.vmem [shape: f32[1,16], index: 11, kind: input, shape index: {}]
  %s12 = inlined_call_operand.vmem [shape: f32[2,128], index: 12, kind: input, shape index: {}]
  %s13 = inlined_call_operand.hbm [shape: f32[2,16], index: 13, kind: output, shape index: {}]
  %s14 = sld [smem:[#allocation0]]
  $region92: #{tpu_custom_call.1} parent=0
    _
  %s16 = ssub.s32 1, %s14
  %s17 = scalar_select 0, %s16, %s14
  $region1: #{tpu_custom_call.1} parent=0
    #allocation6 [shape = 'u8[1024]{0}', space=vmem, size = 0x400, scoped, tag = 'output window, operand 0, single buffered']
    #allocation7 [shape = 's32[1]{0}', space=sflag, size = 0x4, scoped, tag = 'scoped memory for tpu_custom_call.1']
    %18 = vsyncpa [#allocation7], 0
    // Predicated region
    $region2: #{tpu_custom_call.1} parent=1 // pred_check
      _
    $region3: #{tpu_custom_call.1} parent=1 // pred_check_branch
      %20 = sbr.rel (0) target = $region5
    $region4: #{tpu_custom_call.1} parent=1 // pred_region
      _
    $region5: #{tpu_custom_call.1} parent=1 // pred_fallthru
      _
    // Predicated region
    $region6: #{tpu_custom_call.1} parent=1 // pred_check
      _
    $region7: #{tpu_custom_call.1} parent=1 // pred_check_branch
      %22 = sbr.rel (0) target = $region9
    $region8: #{tpu_custom_call.1} parent=1 // pred_region
      _
    $region9: #{tpu_custom_call.1} parent=1 // pred_fallthru
      _
    // Predicated region
    $region10: #{tpu_custom_call.1} parent=1 // pred_check
      _
    $region11: #{tpu_custom_call.1} parent=1 // pred_check_branch
      %24 = sbr.rel (0) target = $region13
    $region12: #{tpu_custom_call.1} parent=1 // pred_region
      _
    $region13: #{tpu_custom_call.1} parent=1 // pred_fallthru
      _
    // Predicated region
    $region14: #{tpu_custom_call.1} parent=1 // pred_check
      _
    $region15: #{tpu_custom_call.1} parent=1 // pred_check_branch
      %26 = sbr.rel (0) target = $region17
    $region16: #{tpu_custom_call.1} parent=1 // pred_region
      _
    $region17: #{tpu_custom_call.1} parent=1 // pred_fallthru
      _
    // Predicated region
    $region18: #{tpu_custom_call.1} parent=1 // pred_check
      _
    $region19: #{tpu_custom_call.1} parent=1 // pred_check_branch
      %28 = sbr.rel (0) target = $region21
    $region20: #{tpu_custom_call.1} parent=1 // pred_region
      _
    $region21: #{tpu_custom_call.1} parent=1 // pred_fallthru
      _
    // Predicated region
    $region22: #{tpu_custom_call.1} parent=1 // pred_check
      _
    $region23: #{tpu_custom_call.1} parent=1 // pred_check_branch
      %30 = sbr.rel (0) target = $region25
    $region24: #{tpu_custom_call.1} parent=1 // pred_region
      _
    $region25: #{tpu_custom_call.1} parent=1 // pred_fallthru
      _
    // Predicated region
    $region26: #{tpu_custom_call.1} parent=1 // pred_check
      _
    $region27: #{tpu_custom_call.1} parent=1 // pred_check_branch
      %32 = sbr.rel (0) target = $region29
    $region28: #{tpu_custom_call.1} parent=1 // pred_region
      _
    $region29: #{tpu_custom_call.1} parent=1 // pred_fallthru
      _
    // Predicated region
    $region30: #{tpu_custom_call.1} parent=1 // pred_check
      _
    $region31: #{tpu_custom_call.1} parent=1 // pred_check_branch
      %34 = sbr.rel (0) target = $region33
    $region32: #{tpu_custom_call.1} parent=1 // pred_region
      _
    $region33: #{tpu_custom_call.1} parent=1 // pred_fallthru
      _
    // Predicated region
    $region34: #{tpu_custom_call.1} parent=1 // pred_check
      _
    $region35: #{tpu_custom_call.1} parent=1 // pred_check_branch
      %36 = sbr.rel (0) target = $region37
    $region36: #{tpu_custom_call.1} parent=1 // pred_region
      _
    $region37: #{tpu_custom_call.1} parent=1 // pred_fallthru
      _
    // Predicated region
    $region38: #{tpu_custom_call.1} parent=1 // pred_check
      _
    $region39: #{tpu_custom_call.1} parent=1 // pred_check_branch
      %38 = sbr.rel (0) target = $region41
    $region40: #{tpu_custom_call.1} parent=1 // pred_region
      _
    $region41: #{tpu_custom_call.1} parent=1 // pred_fallthru
      _
    // Predicated region
    $region42: #{tpu_custom_call.1} parent=1 // pred_check
      _
    $region43: #{tpu_custom_call.1} parent=1 // pred_check_branch
      %40 = sbr.rel (0) target = $region45
    $region44: #{tpu_custom_call.1} parent=1 // pred_region
      _
    $region45: #{tpu_custom_call.1} parent=1 // pred_fallthru
      _
    // Predicated region
    $region46: #{tpu_custom_call.1} parent=1 // pred_check
      _
    $region47: #{tpu_custom_call.1} parent=1 // pred_check_branch
      %42 = sbr.rel (0) target = $region49
    $region48: #{tpu_custom_call.1} parent=1 // pred_region
      _
    $region49: #{tpu_custom_call.1} parent=1 // pred_fallthru
      _
    %p45 = scmp.lt.u32.totalorder 64, 8
    %p46 = pneg %p45
    // Predicated region
    $region50: #{tpu_custom_call.1} parent=1 // pred_check
      _
    $region51: #{tpu_custom_call.1} parent=1 // pred_check_branch
      %48 = sbr.rel (%p45) target = $region53
    $region52: #{tpu_custom_call.1} parent=1 // pred_region
      %s64 = sand.u32 64, 7
      %p65 = scmp.eq.s32.totalorder %s64, 0
      // Predicated region
      $region65: #{tpu_custom_call.1} parent=52 // pred_check
        %p66 = pneg %p65
      $region66: #{tpu_custom_call.1} parent=52 // pred_check_branch
        %68 = sbr.rel (%p66) target = $region68
      $region67: #{tpu_custom_call.1} parent=52 // pred_region
        loop: start=0, step=1, limit=1
        $region69: #{tpu_custom_call.1} parent=67 // loop_pre_header
          _
        $region70: #{tpu_custom_call.1} parent=67 // loop_header
          %s70 = sphi 0, %s74
          %p71 = scmp.ge.s32.totalorder %s70, 1
          %s75 = sphi %s2, %s2
          %s76 = sphi [#allocation4], [#allocation4]
        $region71: #{tpu_custom_call.1} parent=67 // loop_header_branch
          %73 = sbr.rel (%p71) target = $region75
        $region72: #{tpu_custom_call.1} parent=67 // loop_body
          %v77 = vld [vmem:[%s75] sm:$0xff]
          %78 = vst [vmem:[%s76] sm:$0xff] %v77
          %v79 = vld [vmem:[%s75 + $0x8] sm:$0xff]
          %80 = vst [vmem:[%s76 + $0x8] sm:$0xff] %v79
          %v81 = vld [vmem:[%s75 + $0x10] sm:$0xff]
          %82 = vst [vmem:[%s76 + $0x10] sm:$0xff] %v81
          %v83 = vld [vmem:[%s75 + $0x18] sm:$0xff]
          %84 = vst [vmem:[%s76 + $0x18] sm:$0xff] %v83
          %v85 = vld [vmem:[%s75 + $0x20] sm:$0xff]
          %86 = vst [vmem:[%s76 + $0x20] sm:$0xff] %v85
          %v87 = vld [vmem:[%s75 + $0x28] sm:$0xff]
          %88 = vst [vmem:[%s76 + $0x28] sm:$0xff] %v87
          %v89 = vld [vmem:[%s75 + $0x30] sm:$0xff]
          %90 = vst [vmem:[%s76 + $0x30] sm:$0xff] %v89
          %v91 = vld [vmem:[%s75 + $0x38] sm:$0xff]
          %92 = vst [vmem:[%s76 + $0x38] sm:$0xff] %v91
        $region73: #{tpu_custom_call.1} parent=67 // loop_footer
          %s74 = sadd.s32 1, %s70
        $region74: #{tpu_custom_call.1} parent=67 // loop_footer_branch
          %69 = sbr.rel target = $region70
        $region75: #{tpu_custom_call.1} parent=67 // loop_exit
          _
      $region68: #{tpu_custom_call.1} parent=52 // pred_fallthru
        _
      %p93 = pneg %p65
      // Predicated region
      $region76: #{tpu_custom_call.1} parent=52 // pred_check
        _
      $region77: #{tpu_custom_call.1} parent=52 // pred_check_branch
        %95 = sbr.rel (%p65) target = $region79
      $region78: #{tpu_custom_call.1} parent=52 // pred_region
        %s96 = sand.u32 64, 7
      $region79: #{tpu_custom_call.1} parent=52 // pred_fallthru
        _
    $region53: #{tpu_custom_call.1} parent=1 // pred_fallthru
      _
    // Predicated region
    $region54: #{tpu_custom_call.1} parent=1 // pred_check
      %p49 = pneg %p45
    $region55: #{tpu_custom_call.1} parent=1 // pred_check_branch
      %51 = sbr.rel (%p49) target = $region57
    $region56: #{tpu_custom_call.1} parent=1 // pred_region
      %s52 = sshll.u32 1, 64
      %s53 = ssub.s32 %s52, 1
      loop: start=0, step=1, limit=1
      $region58: #{tpu_custom_call.1} parent=56 // loop_pre_header
        _
      $region59: #{tpu_custom_call.1} parent=56 // loop_header
        %s55 = sphi 0, %s59
        %p56 = scmp.ge.s32.totalorder %s55, 1
        %s60 = sphi %s2, %s2
        %s61 = sphi [#allocation4], [#allocation4]
      $region60: #{tpu_custom_call.1} parent=56 // loop_header_branch
        %58 = sbr.rel (%p56) target = $region64
      $region61: #{tpu_custom_call.1} parent=56 // loop_body
        %v62 = vld [vmem:[%s60] sm:%s53]
        %63 = vst [vmem:[%s61] sm:%s53] %v62
      $region62: #{tpu_custom_call.1} parent=56 // loop_footer
        %s59 = sadd.s32 1, %s55
      $region63: #{tpu_custom_call.1} parent=56 // loop_footer_branch
        %54 = sbr.rel target = $region59
      $region64: #{tpu_custom_call.1} parent=56 // loop_exit
        _
    $region57: #{tpu_custom_call.1} parent=1 // pred_fallthru
      _
    // Predicated region
    $region80: #{tpu_custom_call.1} parent=1 // pred_check
      _
    $region81: #{tpu_custom_call.1} parent=1 // pred_check_branch
      %99 = sbr.rel (0) target = $region83
    $region82: #{tpu_custom_call.1} parent=1 // pred_region
      %100 = vsyncadd [#allocation5], 1024
    $region83: #{tpu_custom_call.1} parent=1 // pred_fallthru
      _
    %v101 = vld [vmem:[%s0] sm:$0xff]
    %v102 = vld [vmem:[%s0 + $0x8] sm:$0xff]
    %v103 = vld [vmem:[%s0 + $0x10] sm:$0xff]
    %v104 = vld [vmem:[%s0 + $0x18] sm:$0xff]
    %v105 = vld [vmem:[%s0 + $0x20] sm:$0xff]
    %v106 = vld [vmem:[%s0 + $0x28] sm:$0xff]
    %v107 = vld [vmem:[%s0 + $0x30] sm:$0xff]
    %v108 = vld [vmem:[%s0 + $0x38] sm:$0xff]
    %v109 = vld [vmem:[%s0 + $0x40] sm:$0xff]
    %v110 = vld [vmem:[%s0 + $0x48] sm:$0xff]
    %v111 = vld [vmem:[%s0 + $0x50] sm:$0xff]
    %v112 = vld [vmem:[%s0 + $0x58] sm:$0xff]
    %v113 = vld [vmem:[%s0 + $0x60] sm:$0xff]
    %v114 = vld [vmem:[%s0 + $0x68] sm:$0xff]
    %v115 = vld [vmem:[%s0 + $0x70] sm:$0xff]
    %v116 = vld [vmem:[%s0 + $0x78] sm:$0xff]
    %v117 = vpack.c.bf16 %v102, %v101
    %v118 = vpack.c.bf16 %v104, %v103
    %v119 = vpack.c.bf16 %v106, %v105
    %v120 = vpack.c.bf16 %v108, %v107
    %v121 = vpack.c.bf16 %v110, %v109
    %v122 = vpack.c.bf16 %v112, %v111
    %v123 = vpack.c.bf16 %v114, %v113
    %v124 = vpack.c.bf16 %v116, %v115
    %v125 = vld [vmem:[%s3] sm:$0x3]
    %vm126 = vcmask 31744
    %v128 = vsel %vm126, %v117, 0
    %v131 = vsel %vm126, %v118, 0
    %v134 = vsel %vm126, %v119, 0
    %v137 = vsel %vm126, %v120, 0
    %v140 = vsel %vm126, %v121, 0
    %v143 = vsel %vm126, %v122, 0
    %v146 = vsel %vm126, %v123, 0
    %v149 = vsel %vm126, %v124, 0
    %vm151 = vcmask 1041408
    %v153 = vsel %vm151, %v125, 0
    %155 = vmatprep.subr.bf16.mxu0 0
    %156 = vmatpush1.bf16.msra.mxu0 0
    %157 = vmatprep.subr.bf16.mxu0 0
    %158 = vmatpush1.bf16.msra.mxu0 0
    %159 = vmatprep.subr.bf16.mxu0 0
    %160 = vmatpush1.bf16.msra.mxu0 0
    %161 = vmatprep.subr.bf16.mxu0 0
    %162 = vmatpush1.bf16.msra.mxu0 0
    %163 = vmatprep.subr.bf16.mxu0 0
    %164 = vmatpush1.bf16.msra.mxu0 0
    %165 = vmatprep.subr.bf16.mxu0 0
    %166 = vmatpush1.bf16.msra.mxu0 0
    %167 = vmatprep.subr.bf16.mxu0 0
    %168 = vmatpush1.bf16.msra.mxu0 0
    %169 = vmatprep.subr.bf16.mxu0 0
    %170 = vmatpush1.bf16.msra.mxu0 %v153
    %171 = vmatprep.subr.bf16.mxu0 0
    %172 = vmatpush2.bf16.msra.mxu0 0
    %173 = vmatprep.subr.bf16.mxu0 0
    %174 = vmatpush2.bf16.msra.mxu0 0
    %175 = vmatprep.subr.bf16.mxu0 0
    %176 = vmatpush2.bf16.msra.mxu0 0
    %177 = vmatprep.subr.bf16.mxu0 0
    %178 = vmatpush2.bf16.msra.mxu0 0
    %179 = vmatprep.subr.bf16.mxu0 0
    %180 = vmatpush2.bf16.msra.mxu0 0
    %181 = vmatprep.subr.bf16.mxu0 0
    %182 = vmatpush2.bf16.msra.mxu0 0
    %183 = vmatprep.subr.bf16.mxu0 0
    %184 = vmatpush2.bf16.msra.mxu0 0
    %185 = vmatprep.subr.bf16.mxu0 0
    %186 = vmatpush2.bf16.msra.mxu0 0
    %187 = vmatprep.mubr.bf16.mxu0 0
    %188 = vmatmul.mubr.bf16.gmra.mxu0 %v128
    %v189 = vpop.f32.mrf.mxu0
    %v190 = vadd.f32 0.0, %v189
    %v191 = vpop.f32.mrf.mxu0
    %v192 = vpop.f32.mrf.mxu0
    %v193 = vadd.f32 0.0, %v192
    %v194 = vpop.f32.mrf.mxu0
    %195 = vmatprep.mubr.bf16.mxu0 0
    %196 = vmatmul.mubr.bf16.gmra.mxu0 %v131
    %v197 = vpop.f32.mrf.mxu0
    %v198 = vadd.f32 0.0, %v197
    %v199 = vpop.f32.mrf.mxu0
    %v200 = vpop.f32.mrf.mxu0
    %v201 = vadd.f32 0.0, %v200
    %v202 = vpop.f32.mrf.mxu0
    %203 = vmatprep.mubr.bf16.mxu0 0
    %204 = vmatmul.mubr.bf16.gmra.mxu0 %v134
    %v205 = vpop.f32.mrf.mxu0
    %v206 = vadd.f32 0.0, %v205
    %v207 = vpop.f32.mrf.mxu0
    %v208 = vpop.f32.mrf.mxu0
    %v209 = vadd.f32 0.0, %v208
    %v210 = vpop.f32.mrf.mxu0
    %211 = vmatprep.mubr.bf16.mxu0 0
    %212 = vmatmul.mubr.bf16.gmra.mxu0 %v137
    %v213 = vpop.f32.mrf.mxu0
    %v214 = vadd.f32 0.0, %v213
    %v215 = vpop.f32.mrf.mxu0
    %v216 = vpop.f32.mrf.mxu0
    %v217 = vadd.f32 0.0, %v216
    %v218 = vpop.f32.mrf.mxu0
    %219 = vmatprep.mubr.bf16.mxu0 0
    %220 = vmatmul.mubr.bf16.gmra.mxu0 %v140
    %v221 = vpop.f32.mrf.mxu0
    %v222 = vadd.f32 0.0, %v221
    %v223 = vpop.f32.mrf.mxu0
    %v224 = vpop.f32.mrf.mxu0
    %v225 = vadd.f32 0.0, %v224
    %v226 = vpop.f32.mrf.mxu0
    %227 = vmatprep.mubr.bf16.mxu0 0
    %228 = vmatmul.mubr.bf16.gmra.mxu0 %v143
    %v229 = vpop.f32.mrf.mxu0
    %v230 = vadd.f32 0.0, %v229
    %v231 = vpop.f32.mrf.mxu0
    %v232 = vpop.f32.mrf.mxu0
    %v233 = vadd.f32 0.0, %v232
    %v234 = vpop.f32.mrf.mxu0
    %235 = vmatprep.mubr.bf16.mxu0 0
    %236 = vmatmul.mubr.bf16.gmra.mxu0 %v146
    %v237 = vpop.f32.mrf.mxu0
    %v238 = vadd.f32 0.0, %v237
    %v239 = vpop.f32.mrf.mxu0
    %v240 = vpop.f32.mrf.mxu0
    %v241 = vadd.f32 0.0, %v240
    %v242 = vpop.f32.mrf.mxu0
    %243 = vmatprep.mubr.bf16.mxu0 0
    %244 = vmatmul.mubr.bf16.gmra.mxu0 %v149
    %v245 = vpop.f32.mrf.mxu0
    %v246 = vadd.f32 0.0, %v245
    %v247 = vpop.f32.mrf.mxu0
    %v248 = vpop.f32.mrf.mxu0
    %v249 = vadd.f32 0.0, %v248
    %v250 = vpop.f32.mrf.mxu0
    %251 = vdwg.mxu0
    %v252 = vld [vmem:[%s4] sm:$0xf]
    %v254 = vsel %vm126, %v252, 0
    %256 = vmatprep.subr.bf16.mxu0 0
    %257 = vmatpush1.bf16.xpose.msra.mxu0 %v149
    %258 = vmatprep.subr.bf16.mxu0 0
    %259 = vmatpush1.bf16.xpose.msra.mxu0 %v146
    %260 = vmatprep.subr.bf16.mxu0 0
    %261 = vmatpush1.bf16.xpose.msra.mxu0 %v143
    %262 = vmatprep.subr.bf16.mxu0 0
    %263 = vmatpush1.bf16.xpose.msra.mxu0 %v140
    %264 = vmatprep.subr.bf16.mxu0 0
    %265 = vmatpush1.bf16.xpose.msra.mxu0 %v137
    %266 = vmatprep.subr.bf16.mxu0 0
    %267 = vmatpush1.bf16.xpose.msra.mxu0 %v134
    %268 = vmatprep.subr.bf16.mxu0 0
    %269 = vmatpush1.bf16.xpose.msra.mxu0 %v131
    %270 = vmatprep.subr.bf16.mxu0 0
    %271 = vmatpush1.bf16.xpose.msra.mxu0 %v128
    %272 = vmatprep.subr.bf16.mxu0 0
    %273 = vmatpush2.bf16.xpose.msra.mxu0 0
    %274 = vmatprep.subr.bf16.mxu0 0
    %275 = vmatpush2.bf16.xpose.msra.mxu0 0
    %276 = vmatprep.subr.bf16.mxu0 0
    %277 = vmatpush2.bf16.xpose.msra.mxu0 0
    %278 = vmatprep.subr.bf16.mxu0 0
    %279 = vmatpush2.bf16.xpose.msra.mxu0 0
    %280 = vmatprep.subr.bf16.mxu0 0
    %281 = vmatpush2.bf16.xpose.msra.mxu0 0
    %282 = vmatprep.subr.bf16.mxu0 0
    %283 = vmatpush2.bf16.xpose.msra.mxu0 0
    %284 = vmatprep.subr.bf16.mxu0 0
    %285 = vmatpush2.bf16.xpose.msra.mxu0 0
    %286 = vmatprep.subr.bf16.mxu0 0
    %287 = vmatpush2.bf16.xpose.msra.mxu0 0
    %288 = vmatprep.mubr.bf16.mxu0 0
    %289 = vmatmul.mubr.bf16.gmra.mxu0 %v254
    %v290 = vpop.f32.mrf.mxu0
    %v291 = vadd.f32 0.0, %v290
    %v292 = vpop.f32.mrf.mxu0
    %v293 = vpop.f32.mrf.mxu0
    %v294 = vpop.f32.mrf.mxu0
    %295 = vdwg.mxu0
    %v296 = vlaneseq
    %vm297 = vcmp.ge.s32.totalorder %v296, 0
    %vm298 = vcmp.lt.s32.totalorder %v296, 128
    %vm299 = vmand %vm297, %vm298
    %300 = vst.msk [vmem:[#allocation3] sm:$0x1] %vm299, %v291
    %v303 = vunpack.c.l.s4 1966171168
    %v304 = vunpack.c.0.s8 %v303
    %v305 = vlaneseq
    %v306 = vshrl.u32 %v305, 7
    %v307 = vsub.s32 %v304, %v306
    %v308 = vrot.slane %v291, %v307
    %v309 = vcombine.high %v308, %v308
    %v311 = vunpack.c.l.s4 1966171168
    %v312 = vunpack.c.0.s8 %v311
    %v313 = vlaneseq
    %v314 = vshrl.u32 %v313, 7
    %v315 = vsub.s32 %v312, %v314
    %v316 = vrot.slane %v308, %v315
    %v318 = vunpack.c.l.s4 1966171168
    %v319 = vunpack.c.0.s8 %v318
    %v320 = vlaneseq
    %v321 = vshrl.u32 %v320, 7
    %v322 = vsub.s32 %v319, %v321
    %v323 = vrot.slane %v309, %v322
    %325 = vst.msk [vmem:[#allocation3 + $0x1] sm:$0x1] %vm299, %v323
    %v326 = vcombine.high %v316, %v316
    %328 = vst.msk [vmem:[#allocation3 + $0x2] sm:$0x1] %vm299, %v326
    %v329 = vcombine.high %v323, %v323
    %331 = vst.msk [vmem:[#allocation3 + $0x3] sm:$0x1] %vm299, %v329
    %v332 = vcombine.high %v291, %v291
    %v334 = vunpack.c.l.s4 1966171168
    %v335 = vunpack.c.0.s8 %v334
    %v336 = vlaneseq
    %v337 = vshrl.u32 %v336, 7
    %v338 = vsub.s32 %v335, %v337
    %v339 = vrot.slane %v332, %v338
    %v341 = vunpack.c.l.s4 1966171168
    %v342 = vunpack.c.0.s8 %v341
    %v343 = vlaneseq
    %v344 = vshrl.u32 %v343, 7
    %v345 = vsub.s32 %v342, %v344
    %v346 = vrot.slane %v339, %v345
    %348 = vst.msk [vmem:[#allocation3 + $0x4] sm:$0x1] %vm299, %v346
    %v349 = vcombine.high %v339, %v339
    %v351 = vunpack.c.l.s4 1966171168
    %v352 = vunpack.c.0.s8 %v351
    %v353 = vlaneseq
    %v354 = vshrl.u32 %v353, 7
    %v355 = vsub.s32 %v352, %v354
    %v356 = vrot.slane %v349, %v355
    %358 = vst.msk [vmem:[#allocation3 + $0x5] sm:$0x1] %vm299, %v356
    %v359 = vcombine.high %v346, %v346
    %361 = vst.msk [vmem:[#allocation3 + $0x6] sm:$0x1] %vm299, %v359
    %v362 = vcombine.high %v356, %v356
    %364 = vst.msk [vmem:[#allocation3 + $0x7] sm:$0x1] %vm299, %v362
    %v365 = vpack.c.bf16 %v193, %v190
    %v366 = vpack.c.bf16 %v201, %v198
    %v367 = vpack.c.bf16 %v209, %v206
    %v368 = vpack.c.bf16 %v217, %v214
    %v369 = vpack.c.bf16 %v225, %v222
    %v370 = vpack.c.bf16 %v233, %v230
    %v371 = vpack.c.bf16 %v241, %v238
    %v372 = vpack.c.bf16 %v249, %v246
    %v373 = vld [vmem:[%s6] sm:$0xff]
    %v374 = vld [vmem:[%s6 + $0x8] sm:$0xff]
    %v375 = vld [vmem:[%s6 + $0x10] sm:$0xff]
    %v376 = vld [vmem:[%s6 + $0x18] sm:$0xff]
    %v377 = vld [vmem:[#allocation3] sm:$0xff]
    %v379 = vlaneseq
    %v380 = vshrl.u32 %v379, 7
    %v381 = vsub.s32 0, %v380
    %v382 = vrot.slane %v377, %v381
    %v383 = vlaneseq
    %v384 = vshrl.u32 %v383, 7
    %v385 = vsub.s32 1, %v384
    %v386 = vrot.slane %v377, %v385
    %v387 = vlaneseq
    %v388 = vshrl.u32 %v387, 7
    %v389 = vsub.s32 2, %v388
    %v390 = vrot.slane %v377, %v389
    %v391 = vlaneseq
    %v392 = vshrl.u32 %v391, 7
    %v393 = vsub.s32 3, %v392
    %v394 = vrot.slane %v377, %v393
    %v395 = vlaneseq
    %v396 = vshrl.u32 %v395, 7
    %v397 = vsub.s32 4, %v396
    %v398 = vrot.slane %v377, %v397
    %v399 = vlaneseq
    %v400 = vshrl.u32 %v399, 7
    %v401 = vsub.s32 5, %v400
    %v402 = vrot.slane %v377, %v401
    %v403 = vlaneseq
    %v404 = vshrl.u32 %v403, 7
    %v405 = vsub.s32 6, %v404
    %v406 = vrot.slane %v377, %v405
    %v407 = vlaneseq
    %v408 = vshrl.u32 %v407, 7
    %v409 = vsub.s32 7, %v408
    %v410 = vrot.slane %v377, %v409
    %427 = vrot.lane.b32.xlu0 %v365, 64
    %v428 = vpop.permute.xlu0 %427
    %429 = vrot.lane.b32.xlu0 %v366, 64
    %v430 = vpop.permute.xlu0 %429
    %431 = vrot.lane.b32.xlu0 %v367, 64
    %v432 = vpop.permute.xlu0 %431
    %433 = vrot.lane.b32.xlu0 %v368, 64
    %v434 = vpop.permute.xlu0 %433
    %435 = vrot.lane.b32.xlu0 %v369, 64
    %v436 = vpop.permute.xlu0 %435
    %437 = vrot.lane.b32.xlu0 %v370, 64
    %v438 = vpop.permute.xlu0 %437
    %439 = vrot.lane.b32.xlu0 %v371, 64
    %v440 = vpop.permute.xlu0 %439
    %441 = vrot.lane.b32.xlu0 %v372, 64
    %v442 = vpop.permute.xlu0 %441
    %v447 = vunpack.c.l.b16 %v373
    %v448 = vunpack.c.h.b16 %v373
    %v449 = vunpack.c.l.b16 %v374
    %v450 = vunpack.c.h.b16 %v374
    %v451 = vunpack.c.l.b16 %v375
    %v452 = vunpack.c.h.b16 %v375
    %v453 = vunpack.c.l.b16 %v376
    %v454 = vunpack.c.h.b16 %v376
    %v455 = vpack.c.b16 %v447, %v447
    %v456 = vpack.c.b16 %v448, %v448
    %v457 = vpack.c.b16 %v449, %v449
    %v458 = vpack.c.b16 %v450, %v450
    %v459 = vpack.c.b16 %v451, %v451
    %v460 = vpack.c.b16 %v452, %v452
    %v461 = vpack.c.b16 %v453, %v453
    %v462 = vpack.c.b16 %v454, %v454
    %vm463 = vcmask 64512
    %v465 = vsel %vm463, %v428, 0
    %v468 = vsel %vm463, %v430, 0
    %v471 = vsel %vm463, %v432, 0
    %v474 = vsel %vm463, %v434, 0
    %v477 = vsel %vm463, %v436, 0
    %v480 = vsel %vm463, %v438, 0
    %v483 = vsel %vm463, %v440, 0
    %v486 = vsel %vm463, %v442, 0
    %vm488 = vcmask 1043456
    %v490 = vsel %vm488, %v455, 0
    %v493 = vsel %vm488, %v456, 0
    %v496 = vsel %vm488, %v457, 0
    %v499 = vsel %vm488, %v458, 0
    %v502 = vsel %vm488, %v459, 0
    %v505 = vsel %vm488, %v460, 0
    %v508 = vsel %vm488, %v461, 0
    %v511 = vsel %vm488, %v462, 0
    %513 = vmatprep.subr.bf16.mxu0 0
    %514 = vmatpush1.bf16.msra.mxu0 0
    %515 = vmatprep.subr.bf16.mxu0 0
    %516 = vmatpush1.bf16.msra.mxu0 0
    %517 = vmatprep.subr.bf16.mxu0 0
    %518 = vmatpush1.bf16.msra.mxu0 0
    %519 = vmatprep.subr.bf16.mxu0 0
    %520 = vmatpush1.bf16.msra.mxu0 0
    %521 = vmatprep.subr.bf16.mxu0 0
    %522 = vmatpush1.bf16.msra.mxu0 0
    %523 = vmatprep.subr.bf16.mxu0 0
    %524 = vmatpush1.bf16.msra.mxu0 0
    %525 = vmatprep.subr.bf16.mxu0 0
    %526 = vmatpush1.bf16.msra.mxu0 0
    %527 = vmatprep.subr.bf16.mxu0 %v493
    %528 = vmatpush1.bf16.msra.mxu0 %v490
    %529 = vmatprep.subr.bf16.mxu0 0
    %530 = vmatpush2.bf16.msra.mxu0 0
    %531 = vmatprep.subr.bf16.mxu0 0
    %532 = vmatpush2.bf16.msra.mxu0 0
    %533 = vmatprep.subr.bf16.mxu0 0
    %534 = vmatpush2.bf16.msra.mxu0 0
    %535 = vmatprep.subr.bf16.mxu0 0
    %536 = vmatpush2.bf16.msra.mxu0 0
    %537 = vmatprep.subr.bf16.mxu0 0
    %538 = vmatpush2.bf16.msra.mxu0 0
    %539 = vmatprep.subr.bf16.mxu0 0
    %540 = vmatpush2.bf16.msra.mxu0 0
    %541 = vmatprep.subr.bf16.mxu0 0
    %542 = vmatpush2.bf16.msra.mxu0 0
    %543 = vmatprep.subr.bf16.mxu0 0
    %544 = vmatpush2.bf16.msra.mxu0 0
    %545 = vmatprep.mubr.bf16.mxu0 0
    %546 = vmatmul.mubr.bf16.gmra.mxu0 %v465
    %v547 = vpop.f32.mrf.mxu0
    %v548 = vadd.f32 %v382, %v547
    %v549 = vpop.f32.mrf.mxu0
    %v550 = vadd.f32 %v386, %v549
    %v551 = vpop.f32.mrf.mxu0
    %v552 = vadd.f32 %v382, %v551
    %v553 = vpop.f32.mrf.mxu0
    %v554 = vadd.f32 %v386, %v553
    %555 = vmatprep.mubr.bf16.mxu0 0
    %556 = vmatmul.mubr.bf16.gmra.mxu0 %v468
    %v557 = vpop.f32.mrf.mxu0
    %v558 = vadd.f32 %v382, %v557
    %v559 = vpop.f32.mrf.mxu0
    %v560 = vadd.f32 %v386, %v559
    %v561 = vpop.f32.mrf.mxu0
    %v562 = vadd.f32 %v382, %v561
    %v563 = vpop.f32.mrf.mxu0
    %v564 = vadd.f32 %v386, %v563
    %565 = vmatprep.mubr.bf16.mxu0 0
    %566 = vmatmul.mubr.bf16.gmra.mxu0 %v471
    %v567 = vpop.f32.mrf.mxu0
    %v568 = vadd.f32 %v382, %v567
    %v569 = vpop.f32.mrf.mxu0
    %v570 = vadd.f32 %v386, %v569
    %v571 = vpop.f32.mrf.mxu0
    %v572 = vadd.f32 %v382, %v571
    %v573 = vpop.f32.mrf.mxu0
    %v574 = vadd.f32 %v386, %v573
    %575 = vmatprep.mubr.bf16.mxu0 0
    %576 = vmatmul.mubr.bf16.gmra.mxu0 %v474
    %v577 = vpop.f32.mrf.mxu0
    %v578 = vadd.f32 %v382, %v577
    %v579 = vpop.f32.mrf.mxu0
    %v580 = vadd.f32 %v386, %v579
    %v581 = vpop.f32.mrf.mxu0
    %v582 = vadd.f32 %v382, %v581
    %v583 = vpop.f32.mrf.mxu0
    %v584 = vadd.f32 %v386, %v583
    %585 = vmatprep.mubr.bf16.mxu0 0
    %586 = vmatmul.mubr.bf16.gmra.mxu0 %v477
    %v587 = vpop.f32.mrf.mxu0
    %v588 = vadd.f32 %v382, %v587
    %v589 = vpop.f32.mrf.mxu0
    %v590 = vadd.f32 %v386, %v589
    %v591 = vpop.f32.mrf.mxu0
    %v592 = vadd.f32 %v382, %v591
    %v593 = vpop.f32.mrf.mxu0
    %v594 = vadd.f32 %v386, %v593
    %595 = vmatprep.mubr.bf16.mxu0 0
    %596 = vmatmul.mubr.bf16.gmra.mxu0 %v480
    %v597 = vpop.f32.mrf.mxu0
    %v598 = vadd.f32 %v382, %v597
    %v599 = vpop.f32.mrf.mxu0
    %v600 = vadd.f32 %v386, %v599
    %v601 = vpop.f32.mrf.mxu0
    %v602 = vadd.f32 %v382, %v601
    %v603 = vpop.f32.mrf.mxu0
    %v604 = vadd.f32 %v386, %v603
    %605 = vmatprep.mubr.bf16.mxu0 0
    %606 = vmatmul.mubr.bf16.gmra.mxu0 %v483
    %v607 = vpop.f32.mrf.mxu0
    %v608 = vadd.f32 %v382, %v607
    %v609 = vpop.f32.mrf.mxu0
    %v610 = vadd.f32 %v386, %v609
    %v611 = vpop.f32.mrf.mxu0
    %v612 = vadd.f32 %v382, %v611
    %v613 = vpop.f32.mrf.mxu0
    %v614 = vadd.f32 %v386, %v613
    %615 = vmatprep.mubr.bf16.mxu0 0
    %616 = vmatmul.mubr.bf16.gmra.mxu0 %v486
    %v617 = vpop.f32.mrf.mxu0
    %v618 = vadd.f32 %v382, %v617
    %v619 = vpop.f32.mrf.mxu0
    %v620 = vadd.f32 %v386, %v619
    %v621 = vpop.f32.mrf.mxu0
    %v622 = vadd.f32 %v382, %v621
    %v623 = vpop.f32.mrf.mxu0
    %v624 = vadd.f32 %v386, %v623
    %625 = vdwg.mxu0
    %626 = vmatprep.subr.bf16.mxu0 0
    %627 = vmatpush1.bf16.msra.mxu0 0
    %628 = vmatprep.subr.bf16.mxu0 0
    %629 = vmatpush1.bf16.msra.mxu0 0
    %630 = vmatprep.subr.bf16.mxu0 0
    %631 = vmatpush1.bf16.msra.mxu0 0
    %632 = vmatprep.subr.bf16.mxu0 0
    %633 = vmatpush1.bf16.msra.mxu0 0
    %634 = vmatprep.subr.bf16.mxu0 0
    %635 = vmatpush1.bf16.msra.mxu0 0
    %636 = vmatprep.subr.bf16.mxu0 0
    %637 = vmatpush1.bf16.msra.mxu0 0
    %638 = vmatprep.subr.bf16.mxu0 0
    %639 = vmatpush1.bf16.msra.mxu0 0
    %640 = vmatprep.subr.bf16.mxu0 %v499
    %641 = vmatpush1.bf16.msra.mxu0 %v496
    %642 = vmatprep.subr.bf16.mxu0 0
    %643 = vmatpush2.bf16.msra.mxu0 0
    %644 = vmatprep.subr.bf16.mxu0 0
    %645 = vmatpush2.bf16.msra.mxu0 0
    %646 = vmatprep.subr.bf16.mxu0 0
    %647 = vmatpush2.bf16.msra.mxu0 0
    %648 = vmatprep.subr.bf16.mxu0 0
    %649 = vmatpush2.bf16.msra.mxu0 0
    %650 = vmatprep.subr.bf16.mxu0 0
    %651 = vmatpush2.bf16.msra.mxu0 0
    %652 = vmatprep.subr.bf16.mxu0 0
    %653 = vmatpush2.bf16.msra.mxu0 0
    %654 = vmatprep.subr.bf16.mxu0 0
    %655 = vmatpush2.bf16.msra.mxu0 0
    %656 = vmatprep.subr.bf16.mxu0 0
    %657 = vmatpush2.bf16.msra.mxu0 0
    %658 = vmatprep.mubr.bf16.mxu0 0
    %659 = vmatmul.mubr.bf16.gmra.mxu0 %v465
    %v660 = vpop.f32.mrf.mxu0
    %v661 = vadd.f32 %v390, %v660
    %v662 = vpop.f32.mrf.mxu0
    %v663 = vadd.f32 %v394, %v662
    %v664 = vpop.f32.mrf.mxu0
    %v665 = vadd.f32 %v390, %v664
    %v666 = vpop.f32.mrf.mxu0
    %v667 = vadd.f32 %v394, %v666
    %668 = vmatprep.mubr.bf16.mxu0 0
    %669 = vmatmul.mubr.bf16.gmra.mxu0 %v468
    %v670 = vpop.f32.mrf.mxu0
    %v671 = vadd.f32 %v390, %v670
    %v672 = vpop.f32.mrf.mxu0
    %v673 = vadd.f32 %v394, %v672
    %v674 = vpop.f32.mrf.mxu0
    %v675 = vadd.f32 %v390, %v674
    %v676 = vpop.f32.mrf.mxu0
    %v677 = vadd.f32 %v394, %v676
    %678 = vmatprep.mubr.bf16.mxu0 0
    %679 = vmatmul.mubr.bf16.gmra.mxu0 %v471
    %v680 = vpop.f32.mrf.mxu0
    %v681 = vadd.f32 %v390, %v680
    %v682 = vpop.f32.mrf.mxu0
    %v683 = vadd.f32 %v394, %v682
    %v684 = vpop.f32.mrf.mxu0
    %v685 = vadd.f32 %v390, %v684
    %v686 = vpop.f32.mrf.mxu0
    %v687 = vadd.f32 %v394, %v686
    %688 = vmatprep.mubr.bf16.mxu0 0
    %689 = vmatmul.mubr.bf16.gmra.mxu0 %v474
    %v690 = vpop.f32.mrf.mxu0
    %v691 = vadd.f32 %v390, %v690
    %v692 = vpop.f32.mrf.mxu0
    %v693 = vadd.f32 %v394, %v692
    %v694 = vpop.f32.mrf.mxu0
    %v695 = vadd.f32 %v390, %v694
    %v696 = vpop.f32.mrf.mxu0
    %v697 = vadd.f32 %v394, %v696
    %698 = vmatprep.mubr.bf16.mxu0 0
    %699 = vmatmul.mubr.bf16.gmra.mxu0 %v477
    %v700 = vpop.f32.mrf.mxu0
    %v701 = vadd.f32 %v390, %v700
    %v702 = vpop.f32.mrf.mxu0
    %v703 = vadd.f32 %v394, %v702
    %v704 = vpop.f32.mrf.mxu0
    %v705 = vadd.f32 %v390, %v704
    %v706 = vpop.f32.mrf.mxu0
    %v707 = vadd.f32 %v394, %v706
    %708 = vmatprep.mubr.bf16.mxu0 0
    %709 = vmatmul.mubr.bf16.gmra.mxu0 %v480
    %v710 = vpop.f32.mrf.mxu0
    %v711 = vadd.f32 %v390, %v710
    %v712 = vpop.f32.mrf.mxu0
    %v713 = vadd.f32 %v394, %v712
    %v714 = vpop.f32.mrf.mxu0
    %v715 = vadd.f32 %v390, %v714
    %v716 = vpop.f32.mrf.mxu0
    %v717 = vadd.f32 %v394, %v716
    %718 = vmatprep.mubr.bf16.mxu0 0
    %719 = vmatmul.mubr.bf16.gmra.mxu0 %v483
    %v720 = vpop.f32.mrf.mxu0
    %v721 = vadd.f32 %v390, %v720
    %v722 = vpop.f32.mrf.mxu0
    %v723 = vadd.f32 %v394, %v722
    %v724 = vpop.f32.mrf.mxu0
    %v725 = vadd.f32 %v390, %v724
    %v726 = vpop.f32.mrf.mxu0
    %v727 = vadd.f32 %v394, %v726
    %728 = vmatprep.mubr.bf16.mxu0 0
    %729 = vmatmul.mubr.bf16.gmra.mxu0 %v486
    %v730 = vpop.f32.mrf.mxu0
    %v731 = vadd.f32 %v390, %v730
    %v732 = vpop.f32.mrf.mxu0
    %v733 = vadd.f32 %v394, %v732
    %v734 = vpop.f32.mrf.mxu0
    %v735 = vadd.f32 %v390, %v734
    %v736 = vpop.f32.mrf.mxu0
    %v737 = vadd.f32 %v394, %v736
    %738 = vdwg.mxu0
    %739 = vmatprep.subr.bf16.mxu0 0
    %740 = vmatpush1.bf16.msra.mxu0 0
    %741 = vmatprep.subr.bf16.mxu0 0
    %742 = vmatpush1.bf16.msra.mxu0 0
    %743 = vmatprep.subr.bf16.mxu0 0
    %744 = vmatpush1.bf16.msra.mxu0 0
    %745 = vmatprep.subr.bf16.mxu0 0
    %746 = vmatpush1.bf16.msra.mxu0 0
    %747 = vmatprep.subr.bf16.mxu0 0
    %748 = vmatpush1.bf16.msra.mxu0 0
    %749 = vmatprep.subr.bf16.mxu0 0
    %750 = vmatpush1.bf16.msra.mxu0 0
    %751 = vmatprep.subr.bf16.mxu0 0
    %752 = vmatpush1.bf16.msra.mxu0 0
    %753 = vmatprep.subr.bf16.mxu0 %v505
    %754 = vmatpush1.bf16.msra.mxu0 %v502
    %755 = vmatprep.subr.bf16.mxu0 0
    %756 = vmatpush2.bf16.msra.mxu0 0
    %757 = vmatprep.subr.bf16.mxu0 0
    %758 = vmatpush2.bf16.msra.mxu0 0
    %759 = vmatprep.subr.bf16.mxu0 0
    %760 = vmatpush2.bf16.msra.mxu0 0
    %761 = vmatprep.subr.bf16.mxu0 0
    %762 = vmatpush2.bf16.msra.mxu0 0
    %763 = vmatprep.subr.bf16.mxu0 0
    %764 = vmatpush2.bf16.msra.mxu0 0
    %765 = vmatprep.subr.bf16.mxu0 0
    %766 = vmatpush2.bf16.msra.mxu0 0
    %767 = vmatprep.subr.bf16.mxu0 0
    %768 = vmatpush2.bf16.msra.mxu0 0
    %769 = vmatprep.subr.bf16.mxu0 0
    %770 = vmatpush2.bf16.msra.mxu0 0
    %771 = vmatprep.mubr.bf16.mxu0 0
    %772 = vmatmul.mubr.bf16.gmra.mxu0 %v465
    %v773 = vpop.f32.mrf.mxu0
    %v774 = vadd.f32 %v398, %v773
    %v775 = vpop.f32.mrf.mxu0
    %v776 = vadd.f32 %v402, %v775
    %v777 = vpop.f32.mrf.mxu0
    %v778 = vadd.f32 %v398, %v777
    %v779 = vpop.f32.mrf.mxu0
    %v780 = vadd.f32 %v402, %v779
    %781 = vmatprep.mubr.bf16.mxu0 0
    %782 = vmatmul.mubr.bf16.gmra.mxu0 %v468
    %v783 = vpop.f32.mrf.mxu0
    %v784 = vadd.f32 %v398, %v783
    %v785 = vpop.f32.mrf.mxu0
    %v786 = vadd.f32 %v402, %v785
    %v787 = vpop.f32.mrf.mxu0
    %v788 = vadd.f32 %v398, %v787
    %v789 = vpop.f32.mrf.mxu0
    %v790 = vadd.f32 %v402, %v789
    %791 = vmatprep.mubr.bf16.mxu0 0
    %792 = vmatmul.mubr.bf16.gmra.mxu0 %v471
    %v793 = vpop.f32.mrf.mxu0
    %v794 = vadd.f32 %v398, %v793
    %v795 = vpop.f32.mrf.mxu0
    %v796 = vadd.f32 %v402, %v795
    %v797 = vpop.f32.mrf.mxu0
    %v798 = vadd.f32 %v398, %v797
    %v799 = vpop.f32.mrf.mxu0
    %v800 = vadd.f32 %v402, %v799
    %801 = vmatprep.mubr.bf16.mxu0 0
    %802 = vmatmul.mubr.bf16.gmra.mxu0 %v474
    %v803 = vpop.f32.mrf.mxu0
    %v804 = vadd.f32 %v398, %v803
    %v805 = vpop.f32.mrf.mxu0
    %v806 = vadd.f32 %v402, %v805
    %v807 = vpop.f32.mrf.mxu0
    %v808 = vadd.f32 %v398, %v807
    %v809 = vpop.f32.mrf.mxu0
    %v810 = vadd.f32 %v402, %v809
    %811 = vmatprep.mubr.bf16.mxu0 0
    %812 = vmatmul.mubr.bf16.gmra.mxu0 %v477
    %v813 = vpop.f32.mrf.mxu0
    %v814 = vadd.f32 %v398, %v813
    %v815 = vpop.f32.mrf.mxu0
    %v816 = vadd.f32 %v402, %v815
    %v817 = vpop.f32.mrf.mxu0
    %v818 = vadd.f32 %v398, %v817
    %v819 = vpop.f32.mrf.mxu0
    %v820 = vadd.f32 %v402, %v819
    %821 = vmatprep.mubr.bf16.mxu0 0
    %822 = vmatmul.mubr.bf16.gmra.mxu0 %v480
    %v823 = vpop.f32.mrf.mxu0
    %v824 = vadd.f32 %v398, %v823
    %v825 = vpop.f32.mrf.mxu0
    %v826 = vadd.f32 %v402, %v825
    %v827 = vpop.f32.mrf.mxu0
    %v828 = vadd.f32 %v398, %v827
    %v829 = vpop.f32.mrf.mxu0
    %v830 = vadd.f32 %v402, %v829
    %831 = vmatprep.mubr.bf16.mxu0 0
    %832 = vmatmul.mubr.bf16.gmra.mxu0 %v483
    %v833 = vpop.f32.mrf.mxu0
    %v834 = vadd.f32 %v398, %v833
    %v835 = vpop.f32.mrf.mxu0
    %v836 = vadd.f32 %v402, %v835
    %v837 = vpop.f32.mrf.mxu0
    %v838 = vadd.f32 %v398, %v837
    %v839 = vpop.f32.mrf.mxu0
    %v840 = vadd.f32 %v402, %v839
    %841 = vmatprep.mubr.bf16.mxu0 0
    %842 = vmatmul.mubr.bf16.gmra.mxu0 %v486
    %v843 = vpop.f32.mrf.mxu0
    %v844 = vadd.f32 %v398, %v843
    %v845 = vpop.f32.mrf.mxu0
    %v846 = vadd.f32 %v402, %v845
    %v847 = vpop.f32.mrf.mxu0
    %v848 = vadd.f32 %v398, %v847
    %v849 = vpop.f32.mrf.mxu0
    %v850 = vadd.f32 %v402, %v849
    %851 = vdwg.mxu0
    %852 = vmatprep.subr.bf16.mxu0 0
    %853 = vmatpush1.bf16.msra.mxu0 0
    %854 = vmatprep.subr.bf16.mxu0 0
    %855 = vmatpush1.bf16.msra.mxu0 0
    %856 = vmatprep.subr.bf16.mxu0 0
    %857 = vmatpush1.bf16.msra.mxu0 0
    %858 = vmatprep.subr.bf16.mxu0 0
    %859 = vmatpush1.bf16.msra.mxu0 0
    %860 = vmatprep.subr.bf16.mxu0 0
    %861 = vmatpush1.bf16.msra.mxu0 0
    %862 = vmatprep.subr.bf16.mxu0 0
    %863 = vmatpush1.bf16.msra.mxu0 0
    %864 = vmatprep.subr.bf16.mxu0 0
    %865 = vmatpush1.bf16.msra.mxu0 0
    %866 = vmatprep.subr.bf16.mxu0 %v511
    %867 = vmatpush1.bf16.msra.mxu0 %v508
    %868 = vmatprep.subr.bf16.mxu0 0
    %869 = vmatpush2.bf16.msra.mxu0 0
    %870 = vmatprep.subr.bf16.mxu0 0
    %871 = vmatpush2.bf16.msra.mxu0 0
    %872 = vmatprep.subr.bf16.mxu0 0
    %873 = vmatpush2.bf16.msra.mxu0 0
    %874 = vmatprep.subr.bf16.mxu0 0
    %875 = vmatpush2.bf16.msra.mxu0 0
    %876 = vmatprep.subr.bf16.mxu0 0
    %877 = vmatpush2.bf16.msra.mxu0 0
    %878 = vmatprep.subr.bf16.mxu0 0
    %879 = vmatpush2.bf16.msra.mxu0 0
    %880 = vmatprep.subr.bf16.mxu0 0
    %881 = vmatpush2.bf16.msra.mxu0 0
    %882 = vmatprep.subr.bf16.mxu0 0
    %883 = vmatpush2.bf16.msra.mxu0 0
    %884 = vmatprep.mubr.bf16.mxu0 0
    %885 = vmatmul.mubr.bf16.gmra.mxu0 %v465
    %v886 = vpop.f32.mrf.mxu0
    %v887 = vadd.f32 %v406, %v886
    %v888 = vpop.f32.mrf.mxu0
    %v889 = vadd.f32 %v410, %v888
    %v890 = vpop.f32.mrf.mxu0
    %v891 = vadd.f32 %v406, %v890
    %v892 = vpop.f32.mrf.mxu0
    %v893 = vadd.f32 %v410, %v892
    %894 = vmatprep.mubr.bf16.mxu0 0
    %895 = vmatmul.mubr.bf16.gmra.mxu0 %v468
    %v896 = vpop.f32.mrf.mxu0
    %v897 = vadd.f32 %v406, %v896
    %v898 = vpop.f32.mrf.mxu0
    %v899 = vadd.f32 %v410, %v898
    %v900 = vpop.f32.mrf.mxu0
    %v901 = vadd.f32 %v406, %v900
    %v902 = vpop.f32.mrf.mxu0
    %v903 = vadd.f32 %v410, %v902
    %904 = vmatprep.mubr.bf16.mxu0 0
    %905 = vmatmul.mubr.bf16.gmra.mxu0 %v471
    %v906 = vpop.f32.mrf.mxu0
    %v907 = vadd.f32 %v406, %v906
    %v908 = vpop.f32.mrf.mxu0
    %v909 = vadd.f32 %v410, %v908
    %v910 = vpop.f32.mrf.mxu0
    %v911 = vadd.f32 %v406, %v910
    %v912 = vpop.f32.mrf.mxu0
    %v913 = vadd.f32 %v410, %v912
    %914 = vmatprep.mubr.bf16.mxu0 0
    %915 = vmatmul.mubr.bf16.gmra.mxu0 %v474
    %v916 = vpop.f32.mrf.mxu0
    %v917 = vadd.f32 %v406, %v916
    %v918 = vpop.f32.mrf.mxu0
    %v919 = vadd.f32 %v410, %v918
    %v920 = vpop.f32.mrf.mxu0
    %v921 = vadd.f32 %v406, %v920
    %v922 = vpop.f32.mrf.mxu0
    %v923 = vadd.f32 %v410, %v922
    %924 = vmatprep.mubr.bf16.mxu0 0
    %925 = vmatmul.mubr.bf16.gmra.mxu0 %v477
    %v926 = vpop.f32.mrf.mxu0
    %v927 = vadd.f32 %v406, %v926
    %v928 = vpop.f32.mrf.mxu0
    %v929 = vadd.f32 %v410, %v928
    %v930 = vpop.f32.mrf.mxu0
    %v931 = vadd.f32 %v406, %v930
    %v932 = vpop.f32.mrf.mxu0
    %v933 = vadd.f32 %v410, %v932
    %934 = vmatprep.mubr.bf16.mxu0 0
    %935 = vmatmul.mubr.bf16.gmra.mxu0 %v480
    %v936 = vpop.f32.mrf.mxu0
    %v937 = vadd.f32 %v406, %v936
    %v938 = vpop.f32.mrf.mxu0
    %v939 = vadd.f32 %v410, %v938
    %v940 = vpop.f32.mrf.mxu0
    %v941 = vadd.f32 %v406, %v940
    %v942 = vpop.f32.mrf.mxu0
    %v943 = vadd.f32 %v410, %v942
    %944 = vmatprep.mubr.bf16.mxu0 0
    %945 = vmatmul.mubr.bf16.gmra.mxu0 %v483
    %v946 = vpop.f32.mrf.mxu0
    %v947 = vadd.f32 %v406, %v946
    %v948 = vpop.f32.mrf.mxu0
    %v949 = vadd.f32 %v410, %v948
    %v950 = vpop.f32.mrf.mxu0
    %v951 = vadd.f32 %v406, %v950
    %v952 = vpop.f32.mrf.mxu0
    %v953 = vadd.f32 %v410, %v952
    %954 = vmatprep.mubr.bf16.mxu0 0
    %955 = vmatmul.mubr.bf16.gmra.mxu0 %v486
    %v956 = vpop.f32.mrf.mxu0
    %v957 = vadd.f32 %v406, %v956
    %v958 = vpop.f32.mrf.mxu0
    %v959 = vadd.f32 %v410, %v958
    %v960 = vpop.f32.mrf.mxu0
    %v961 = vadd.f32 %v406, %v960
    %v962 = vpop.f32.mrf.mxu0
    %v963 = vadd.f32 %v410, %v962
    %964 = vdwg.mxu0
    %v965 = vld [vmem:[%s1] sm:$0xff]
    %v966 = vld [vmem:[%s1 + $0x8] sm:$0xff]
    %v967 = vld [vmem:[%s1 + $0x10] sm:$0xff]
    %v968 = vld [vmem:[%s1 + $0x18] sm:$0xff]
    %v969 = vld [vmem:[%s1 + $0x20] sm:$0xff]
    %v970 = vld [vmem:[%s1 + $0x28] sm:$0xff]
    %v971 = vld [vmem:[%s1 + $0x30] sm:$0xff]
    %v972 = vld [vmem:[%s1 + $0x38] sm:$0xff]
    %v973 = vld [vmem:[%s1 + $0x40] sm:$0xff]
    %v974 = vld [vmem:[%s1 + $0x48] sm:$0xff]
    %v975 = vld [vmem:[%s1 + $0x50] sm:$0xff]
    %v976 = vld [vmem:[%s1 + $0x58] sm:$0xff]
    %v977 = vld [vmem:[%s1 + $0x60] sm:$0xff]
    %v978 = vld [vmem:[%s1 + $0x68] sm:$0xff]
    %v979 = vld [vmem:[%s1 + $0x70] sm:$0xff]
    %v980 = vld [vmem:[%s1 + $0x78] sm:$0xff]
    %v981 = vld [vmem:[%s1 + $0x80] sm:$0xff]
    %v982 = vld [vmem:[%s1 + $0x88] sm:$0xff]
    %v983 = vld [vmem:[%s1 + $0x90] sm:$0xff]
    %v984 = vld [vmem:[%s1 + $0x98] sm:$0xff]
    %v985 = vld [vmem:[%s1 + $0xa0] sm:$0xff]
    %v986 = vld [vmem:[%s1 + $0xa8] sm:$0xff]
    %v987 = vld [vmem:[%s1 + $0xb0] sm:$0xff]
    %v988 = vld [vmem:[%s1 + $0xb8] sm:$0xff]
    %v989 = vld [vmem:[%s1 + $0xc0] sm:$0xff]
    %v990 = vld [vmem:[%s1 + $0xc8] sm:$0xff]
    %v991 = vld [vmem:[%s1 + $0xd0] sm:$0xff]
    %v992 = vld [vmem:[%s1 + $0xd8] sm:$0xff]
    %v993 = vld [vmem:[%s1 + $0xe0] sm:$0xff]
    %v994 = vld [vmem:[%s1 + $0xe8] sm:$0xff]
    %v995 = vld [vmem:[%s1 + $0xf0] sm:$0xff]
    %v996 = vld [vmem:[%s1 + $0xf8] sm:$0xff]
    %v997 = vld [vmem:[%s1 + $0x100] sm:$0xff]
    %v998 = vld [vmem:[%s1 + $0x108] sm:$0xff]
    %v999 = vld [vmem:[%s1 + $0x110] sm:$0xff]
    %v1000 = vld [vmem:[%s1 + $0x118] sm:$0xff]
    %v1001 = vld [vmem:[%s1 + $0x120] sm:$0xff]
    %v1002 = vld [vmem:[%s1 + $0x128] sm:$0xff]
    %v1003 = vld [vmem:[%s1 + $0x130] sm:$0xff]
    %v1004 = vld [vmem:[%s1 + $0x138] sm:$0xff]
    %v1005 = vld [vmem:[%s1 + $0x140] sm:$0xff]
    %v1006 = vld [vmem:[%s1 + $0x148] sm:$0xff]
    %v1007 = vld [vmem:[%s1 + $0x150] sm:$0xff]
    %v1008 = vld [vmem:[%s1 + $0x158] sm:$0xff]
    %v1009 = vld [vmem:[%s1 + $0x160] sm:$0xff]
    %v1010 = vld [vmem:[%s1 + $0x168] sm:$0xff]
    %v1011 = vld [vmem:[%s1 + $0x170] sm:$0xff]
    %v1012 = vld [vmem:[%s1 + $0x178] sm:$0xff]
    %v1013 = vld [vmem:[%s1 + $0x180] sm:$0xff]
    %v1014 = vld [vmem:[%s1 + $0x188] sm:$0xff]
    %v1015 = vld [vmem:[%s1 + $0x190] sm:$0xff]
    %v1016 = vld [vmem:[%s1 + $0x198] sm:$0xff]
    %v1017 = vld [vmem:[%s1 + $0x1a0] sm:$0xff]
    %v1018 = vld [vmem:[%s1 + $0x1a8] sm:$0xff]
    %v1019 = vld [vmem:[%s1 + $0x1b0] sm:$0xff]
    %v1020 = vld [vmem:[%s1 + $0x1b8] sm:$0xff]
    %v1021 = vld [vmem:[%s1 + $0x1c0] sm:$0xff]
    %v1022 = vld [vmem:[%s1 + $0x1c8] sm:$0xff]
    %v1023 = vld [vmem:[%s1 + $0x1d0] sm:$0xff]
    %v1024 = vld [vmem:[%s1 + $0x1d8] sm:$0xff]
    %v1025 = vld [vmem:[%s1 + $0x1e0] sm:$0xff]
    %v1026 = vld [vmem:[%s1 + $0x1e8] sm:$0xff]
    %v1027 = vld [vmem:[%s1 + $0x1f0] sm:$0xff]
    %v1028 = vld [vmem:[%s1 + $0x1f8] sm:$0xff]
    %v1029 = vunpack.c.l.bf16 %v965
    %v1030 = vunpack.c.h.bf16 %v965
    %v1031 = vunpack.c.l.bf16 %v966
    %v1032 = vunpack.c.h.bf16 %v966
    %v1033 = vunpack.c.l.bf16 %v967
    %v1034 = vunpack.c.h.bf16 %v967
    %v1035 = vunpack.c.l.bf16 %v968
    %v1036 = vunpack.c.h.bf16 %v968
    %v1037 = vunpack.c.l.bf16 %v969
    %v1038 = vunpack.c.h.bf16 %v969
    %v1039 = vunpack.c.l.bf16 %v970
    %v1040 = vunpack.c.h.bf16 %v970
    %v1041 = vunpack.c.l.bf16 %v971
    %v1042 = vunpack.c.h.bf16 %v971
    %v1043 = vunpack.c.l.bf16 %v972
    %v1044 = vunpack.c.h.bf16 %v972
    %v1045 = vunpack.c.l.bf16 %v973
    %v1046 = vunpack.c.h.bf16 %v973
    %v1047 = vunpack.c.l.bf16 %v974
    %v1048 = vunpack.c.h.bf16 %v974
    %v1049 = vunpack.c.l.bf16 %v975
    %v1050 = vunpack.c.h.bf16 %v975
    %v1051 = vunpack.c.l.bf16 %v976
    %v1052 = vunpack.c.h.bf16 %v976
    %v1053 = vunpack.c.l.bf16 %v977
    %v1054 = vunpack.c.h.bf16 %v977
    %v1055 = vunpack.c.l.bf16 %v978
    %v1056 = vunpack.c.h.bf16 %v978
    %v1057 = vunpack.c.l.bf16 %v979
    %v1058 = vunpack.c.h.bf16 %v979
    %v1059 = vunpack.c.l.bf16 %v980
    %v1060 = vunpack.c.h.bf16 %v980
    %v1061 = vunpack.c.l.bf16 %v981
    %v1062 = vunpack.c.h.bf16 %v981
    %v1063 = vunpack.c.l.bf16 %v982
    %v1064 = vunpack.c.h.bf16 %v982
    %v1065 = vunpack.c.l.bf16 %v983
    %v1066 = vunpack.c.h.bf16 %v983
    %v1067 = vunpack.c.l.bf16 %v984
    %v1068 = vunpack.c.h.bf16 %v984
    %v1069 = vunpack.c.l.bf16 %v985
    %v1070 = vunpack.c.h.bf16 %v985
    %v1071 = vunpack.c.l.bf16 %v986
    %v1072 = vunpack.c.h.bf16 %v986
    %v1073 = vunpack.c.l.bf16 %v987
    %v1074 = vunpack.c.h.bf16 %v987
    %v1075 = vunpack.c.l.bf16 %v988
    %v1076 = vunpack.c.h.bf16 %v988
    %v1077 = vunpack.c.l.bf16 %v989
    %v1078 = vunpack.c.h.bf16 %v989
    %v1079 = vunpack.c.l.bf16 %v990
    %v1080 = vunpack.c.h.bf16 %v990
    %v1081 = vunpack.c.l.bf16 %v991
    %v1082 = vunpack.c.h.bf16 %v991
    %v1083 = vunpack.c.l.bf16 %v992
    %v1084 = vunpack.c.h.bf16 %v992
    %v1085 = vunpack.c.l.bf16 %v993
    %v1086 = vunpack.c.h.bf16 %v993
    %v1087 = vunpack.c.l.bf16 %v994
    %v1088 = vunpack.c.h.bf16 %v994
    %v1089 = vunpack.c.l.bf16 %v995
    %v1090 = vunpack.c.h.bf16 %v995
    %v1091 = vunpack.c.l.bf16 %v996
    %v1092 = vunpack.c.h.bf16 %v996
    %v1093 = vunpack.c.l.bf16 %v997
    %v1094 = vunpack.c.h.bf16 %v997
    %v1095 = vunpack.c.l.bf16 %v998
    %v1096 = vunpack.c.h.bf16 %v998
    %v1097 = vunpack.c.l.bf16 %v999
    %v1098 = vunpack.c.h.bf16 %v999
    %v1099 = vunpack.c.l.bf16 %v1000
    %v1100 = vunpack.c.h.bf16 %v1000
    %v1101 = vunpack.c.l.bf16 %v1001
    %v1102 = vunpack.c.h.bf16 %v1001
    %v1103 = vunpack.c.l.bf16 %v1002
    %v1104 = vunpack.c.h.bf16 %v1002
    %v1105 = vunpack.c.l.bf16 %v1003
    %v1106 = vunpack.c.h.bf16 %v1003
    %v1107 = vunpack.c.l.bf16 %v1004
    %v1108 = vunpack.c.h.bf16 %v1004
    %v1109 = vunpack.c.l.bf16 %v1005
    %v1110 = vunpack.c.h.bf16 %v1005
    %v1111 = vunpack.c.l.bf16 %v1006
    %v1112 = vunpack.c.h.bf16 %v1006
    %v1113 = vunpack.c.l.bf16 %v1007
    %v1114 = vunpack.c.h.bf16 %v1007
    %v1115 = vunpack.c.l.bf16 %v1008
    %v1116 = vunpack.c.h.bf16 %v1008
    %v1117 = vunpack.c.l.bf16 %v1009
    %v1118 = vunpack.c.h.bf16 %v1009
    %v1119 = vunpack.c.l.bf16 %v1010
    %v1120 = vunpack.c.h.bf16 %v1010
    %v1121 = vunpack.c.l.bf16 %v1011
    %v1122 = vunpack.c.h.bf16 %v1011
    %v1123 = vunpack.c.l.bf16 %v1012
    %v1124 = vunpack.c.h.bf16 %v1012
    %v1125 = vunpack.c.l.bf16 %v1013
    %v1126 = vunpack.c.h.bf16 %v1013
    %v1127 = vunpack.c.l.bf16 %v1014
    %v1128 = vunpack.c.h.bf16 %v1014
    %v1129 = vunpack.c.l.bf16 %v1015
    %v1130 = vunpack.c.h.bf16 %v1015
    %v1131 = vunpack.c.l.bf16 %v1016
    %v1132 = vunpack.c.h.bf16 %v1016
    %v1133 = vunpack.c.l.bf16 %v1017
    %v1134 = vunpack.c.h.bf16 %v1017
    %v1135 = vunpack.c.l.bf16 %v1018
    %v1136 = vunpack.c.h.bf16 %v1018
    %v1137 = vunpack.c.l.bf16 %v1019
    %v1138 = vunpack.c.h.bf16 %v1019
    %v1139 = vunpack.c.l.bf16 %v1020
    %v1140 = vunpack.c.h.bf16 %v1020
    %v1141 = vunpack.c.l.bf16 %v1021
    %v1142 = vunpack.c.h.bf16 %v1021
    %v1143 = vunpack.c.l.bf16 %v1022
    %v1144 = vunpack.c.h.bf16 %v1022
    %v1145 = vunpack.c.l.bf16 %v1023
    %v1146 = vunpack.c.h.bf16 %v1023
    %v1147 = vunpack.c.l.bf16 %v1024
    %v1148 = vunpack.c.h.bf16 %v1024
    %v1149 = vunpack.c.l.bf16 %v1025
    %v1150 = vunpack.c.h.bf16 %v1025
    %v1151 = vunpack.c.l.bf16 %v1026
    %v1152 = vunpack.c.h.bf16 %v1026
    %v1153 = vunpack.c.l.bf16 %v1027
    %v1154 = vunpack.c.h.bf16 %v1027
    %v1155 = vunpack.c.l.bf16 %v1028
    %v1156 = vunpack.c.h.bf16 %v1028
    %v1157 = vadd.f32 %v548, %v1029
    %v1158 = vadd.f32 %v550, %v1030
    %v1159 = vadd.f32 %v661, %v1031
    %v1160 = vadd.f32 %v663, %v1032
    %v1161 = vadd.f32 %v774, %v1033
    %v1162 = vadd.f32 %v776, %v1034
    %v1163 = vadd.f32 %v887, %v1035
    %v1164 = vadd.f32 %v889, %v1036
    %v1165 = vadd.f32 %v552, %v1037
    %v1166 = vadd.f32 %v554, %v1038
    %v1167 = vadd.f32 %v665, %v1039
    %v1168 = vadd.f32 %v667, %v1040
    %v1169 = vadd.f32 %v778, %v1041
    %v1170 = vadd.f32 %v780, %v1042
    %v1171 = vadd.f32 %v891, %v1043
    %v1172 = vadd.f32 %v893, %v1044
    %v1173 = vadd.f32 %v558, %v1045
    %v1174 = vadd.f32 %v560, %v1046
    %v1175 = vadd.f32 %v671, %v1047
    %v1176 = vadd.f32 %v673, %v1048
    %v1177 = vadd.f32 %v784, %v1049
    %v1178 = vadd.f32 %v786, %v1050
    %v1179 = vadd.f32 %v897, %v1051
    %v1180 = vadd.f32 %v899, %v1052
    %v1181 = vadd.f32 %v562, %v1053
    %v1182 = vadd.f32 %v564, %v1054
    %v1183 = vadd.f32 %v675, %v1055
    %v1184 = vadd.f32 %v677, %v1056
    %v1185 = vadd.f32 %v788, %v1057
    %v1186 = vadd.f32 %v790, %v1058
    %v1187 = vadd.f32 %v901, %v1059
    %v1188 = vadd.f32 %v903, %v1060
    %v1189 = vadd.f32 %v568, %v1061
    %v1190 = vadd.f32 %v570, %v1062
    %v1191 = vadd.f32 %v681, %v1063
    %v1192 = vadd.f32 %v683, %v1064
    %v1193 = vadd.f32 %v794, %v1065
    %v1194 = vadd.f32 %v796, %v1066
    %v1195 = vadd.f32 %v907, %v1067
    %v1196 = vadd.f32 %v909, %v1068
    %v1197 = vadd.f32 %v572, %v1069
    %v1198 = vadd.f32 %v574, %v1070
    %v1199 = vadd.f32 %v685, %v1071
    %v1200 = vadd.f32 %v687, %v1072
    %v1201 = vadd.f32 %v798, %v1073
    %v1202 = vadd.f32 %v800, %v1074
    %v1203 = vadd.f32 %v911, %v1075
    %v1204 = vadd.f32 %v913, %v1076
    %v1205 = vadd.f32 %v578, %v1077
    %v1206 = vadd.f32 %v580, %v1078
    %v1207 = vadd.f32 %v691, %v1079
    %v1208 = vadd.f32 %v693, %v1080
    %v1209 = vadd.f32 %v804, %v1081
    %v1210 = vadd.f32 %v806, %v1082
    %v1211 = vadd.f32 %v917, %v1083
    %v1212 = vadd.f32 %v919, %v1084
    %v1213 = vadd.f32 %v582, %v1085
    %v1214 = vadd.f32 %v584, %v1086
    %v1215 = vadd.f32 %v695, %v1087
    %v1216 = vadd.f32 %v697, %v1088
    %v1217 = vadd.f32 %v808, %v1089
    %v1218 = vadd.f32 %v810, %v1090
    %v1219 = vadd.f32 %v921, %v1091
    %v1220 = vadd.f32 %v923, %v1092
    %v1221 = vadd.f32 %v588, %v1093
    %v1222 = vadd.f32 %v590, %v1094
    %v1223 = vadd.f32 %v701, %v1095
    %v1224 = vadd.f32 %v703, %v1096
    %v1225 = vadd.f32 %v814, %v1097
    %v1226 = vadd.f32 %v816, %v1098
    %v1227 = vadd.f32 %v927, %v1099
    %v1228 = vadd.f32 %v929, %v1100
    %v1229 = vadd.f32 %v592, %v1101
    %v1230 = vadd.f32 %v594, %v1102
    %v1231 = vadd.f32 %v705, %v1103
    %v1232 = vadd.f32 %v707, %v1104
    %v1233 = vadd.f32 %v818, %v1105
    %v1234 = vadd.f32 %v820, %v1106
    %v1235 = vadd.f32 %v931, %v1107
    %v1236 = vadd.f32 %v933, %v1108
    %v1237 = vadd.f32 %v598, %v1109
    %v1238 = vadd.f32 %v600, %v1110
    %v1239 = vadd.f32 %v711, %v1111
    %v1240 = vadd.f32 %v713, %v1112
    %v1241 = vadd.f32 %v824, %v1113
    %v1242 = vadd.f32 %v826, %v1114
    %v1243 = vadd.f32 %v937, %v1115
    %v1244 = vadd.f32 %v939, %v1116
    %v1245 = vadd.f32 %v602, %v1117
    %v1246 = vadd.f32 %v604, %v1118
    %v1247 = vadd.f32 %v715, %v1119
    %v1248 = vadd.f32 %v717, %v1120
    %v1249 = vadd.f32 %v828, %v1121
    %v1250 = vadd.f32 %v830, %v1122
    %v1251 = vadd.f32 %v941, %v1123
    %v1252 = vadd.f32 %v943, %v1124
    %v1253 = vadd.f32 %v608, %v1125
    %v1254 = vadd.f32 %v610, %v1126
    %v1255 = vadd.f32 %v721, %v1127
    %v1256 = vadd.f32 %v723, %v1128
    %v1257 = vadd.f32 %v834, %v1129
    %v1258 = vadd.f32 %v836, %v1130
    %v1259 = vadd.f32 %v947, %v1131
    %v1260 = vadd.f32 %v949, %v1132
    %v1261 = vadd.f32 %v612, %v1133
    %v1262 = vadd.f32 %v614, %v1134
    %v1263 = vadd.f32 %v725, %v1135
    %v1264 = vadd.f32 %v727, %v1136
    %v1265 = vadd.f32 %v838, %v1137
    %v1266 = vadd.f32 %v840, %v1138
    %v1267 = vadd.f32 %v951, %v1139
    %v1268 = vadd.f32 %v953, %v1140
    %v1269 = vadd.f32 %v618, %v1141
    %v1270 = vadd.f32 %v620, %v1142
    %v1271 = vadd.f32 %v731, %v1143
    %v1272 = vadd.f32 %v733, %v1144
    %v1273 = vadd.f32 %v844, %v1145
    %v1274 = vadd.f32 %v846, %v1146
    %v1275 = vadd.f32 %v957, %v1147
    %v1276 = vadd.f32 %v959, %v1148
    %v1277 = vadd.f32 %v622, %v1149
    %v1278 = vadd.f32 %v624, %v1150
    %v1279 = vadd.f32 %v735, %v1151
    %v1280 = vadd.f32 %v737, %v1152
    %v1281 = vadd.f32 %v848, %v1153
    %v1282 = vadd.f32 %v850, %v1154
    %v1283 = vadd.f32 %v961, %v1155
    %v1284 = vadd.f32 %v963, %v1156
    %v1285 = vmul.f32 %v1157, 0.2
    %v1286 = vmul.f32 %v1158, 0.2
    %v1287 = vmul.f32 %v1159, 0.2
    %v1288 = vmul.f32 %v1160, 0.2
    %v1289 = vmul.f32 %v1161, 0.2
    %v1290 = vmul.f32 %v1162, 0.2
    %v1291 = vmul.f32 %v1163, 0.2
    %v1292 = vmul.f32 %v1164, 0.2
    %v1293 = vmul.f32 %v1165, 0.2
    %v1294 = vmul.f32 %v1166, 0.2
    %v1295 = vmul.f32 %v1167, 0.2
    %v1296 = vmul.f32 %v1168, 0.2
    %v1297 = vmul.f32 %v1169, 0.2
    %v1298 = vmul.f32 %v1170, 0.2
    %v1299 = vmul.f32 %v1171, 0.2
    %v1300 = vmul.f32 %v1172, 0.2
    %v1301 = vmul.f32 %v1173, 0.2
    %v1302 = vmul.f32 %v1174, 0.2
    %v1303 = vmul.f32 %v1175, 0.2
    %v1304 = vmul.f32 %v1176, 0.2
    %v1305 = vmul.f32 %v1177, 0.2
    %v1306 = vmul.f32 %v1178, 0.2
    %v1307 = vmul.f32 %v1179, 0.2
    %v1308 = vmul.f32 %v1180, 0.2
    %v1309 = vmul.f32 %v1181, 0.2
    %v1310 = vmul.f32 %v1182, 0.2
    %v1311 = vmul.f32 %v1183, 0.2
    %v1312 = vmul.f32 %v1184, 0.2
    %v1313 = vmul.f32 %v1185, 0.2
    %v1314 = vmul.f32 %v1186, 0.2
    %v1315 = vmul.f32 %v1187, 0.2
    %v1316 = vmul.f32 %v1188, 0.2
    %v1317 = vmul.f32 %v1189, 0.2
    %v1318 = vmul.f32 %v1190, 0.2
    %v1319 = vmul.f32 %v1191, 0.2
    %v1320 = vmul.f32 %v1192, 0.2
    %v1321 = vmul.f32 %v1193, 0.2
    %v1322 = vmul.f32 %v1194, 0.2
    %v1323 = vmul.f32 %v1195, 0.2
    %v1324 = vmul.f32 %v1196, 0.2
    %v1325 = vmul.f32 %v1197, 0.2
    %v1326 = vmul.f32 %v1198, 0.2
    %v1327 = vmul.f32 %v1199, 0.2
    %v1328 = vmul.f32 %v1200, 0.2
    %v1329 = vmul.f32 %v1201, 0.2
    %v1330 = vmul.f32 %v1202, 0.2
    %v1331 = vmul.f32 %v1203, 0.2
    %v1332 = vmul.f32 %v1204, 0.2
    %v1333 = vmul.f32 %v1205, 0.2
    %v1334 = vmul.f32 %v1206, 0.2
    %v1335 = vmul.f32 %v1207, 0.2
    %v1336 = vmul.f32 %v1208, 0.2
    %v1337 = vmul.f32 %v1209, 0.2
    %v1338 = vmul.f32 %v1210, 0.2
    %v1339 = vmul.f32 %v1211, 0.2
    %v1340 = vmul.f32 %v1212, 0.2
    %v1341 = vmul.f32 %v1213, 0.2
    %v1342 = vmul.f32 %v1214, 0.2
    %v1343 = vmul.f32 %v1215, 0.2
    %v1344 = vmul.f32 %v1216, 0.2
    %v1345 = vmul.f32 %v1217, 0.2
    %v1346 = vmul.f32 %v1218, 0.2
    %v1347 = vmul.f32 %v1219, 0.2
    %v1348 = vmul.f32 %v1220, 0.2
    %v1349 = vmul.f32 %v1221, 0.2
    %v1350 = vmul.f32 %v1222, 0.2
    %v1351 = vmul.f32 %v1223, 0.2
    %v1352 = vmul.f32 %v1224, 0.2
    %v1353 = vmul.f32 %v1225, 0.2
    %v1354 = vmul.f32 %v1226, 0.2
    %v1355 = vmul.f32 %v1227, 0.2
    %v1356 = vmul.f32 %v1228, 0.2
    %v1357 = vmul.f32 %v1229, 0.2
    %v1358 = vmul.f32 %v1230, 0.2
    %v1359 = vmul.f32 %v1231, 0.2
    %v1360 = vmul.f32 %v1232, 0.2
    %v1361 = vmul.f32 %v1233, 0.2
    %v1362 = vmul.f32 %v1234, 0.2
    %v1363 = vmul.f32 %v1235, 0.2
    %v1364 = vmul.f32 %v1236, 0.2
    %v1365 = vmul.f32 %v1237, 0.2
    %v1366 = vmul.f32 %v1238, 0.2
    %v1367 = vmul.f32 %v1239, 0.2
    %v1368 = vmul.f32 %v1240, 0.2
    %v1369 = vmul.f32 %v1241, 0.2
    %v1370 = vmul.f32 %v1242, 0.2
    %v1371 = vmul.f32 %v1243, 0.2
    %v1372 = vmul.f32 %v1244, 0.2
    %v1373 = vmul.f32 %v1245, 0.2
    %v1374 = vmul.f32 %v1246, 0.2
    %v1375 = vmul.f32 %v1247, 0.2
    %v1376 = vmul.f32 %v1248, 0.2
    %v1377 = vmul.f32 %v1249, 0.2
    %v1378 = vmul.f32 %v1250, 0.2
    %v1379 = vmul.f32 %v1251, 0.2
    %v1380 = vmul.f32 %v1252, 0.2
    %v1381 = vmul.f32 %v1253, 0.2
    %v1382 = vmul.f32 %v1254, 0.2
    %v1383 = vmul.f32 %v1255, 0.2
    %v1384 = vmul.f32 %v1256, 0.2
    %v1385 = vmul.f32 %v1257, 0.2
    %v1386 = vmul.f32 %v1258, 0.2
    %v1387 = vmul.f32 %v1259, 0.2
    %v1388 = vmul.f32 %v1260, 0.2
    %v1389 = vmul.f32 %v1261, 0.2
    %v1390 = vmul.f32 %v1262, 0.2
    %v1391 = vmul.f32 %v1263, 0.2
    %v1392 = vmul.f32 %v1264, 0.2
    %v1393 = vmul.f32 %v1265, 0.2
    %v1394 = vmul.f32 %v1266, 0.2
    %v1395 = vmul.f32 %v1267, 0.2
    %v1396 = vmul.f32 %v1268, 0.2
    %v1397 = vmul.f32 %v1269, 0.2
    %v1398 = vmul.f32 %v1270, 0.2
    %v1399 = vmul.f32 %v1271, 0.2
    %v1400 = vmul.f32 %v1272, 0.2
    %v1401 = vmul.f32 %v1273, 0.2
    %v1402 = vmul.f32 %v1274, 0.2
    %v1403 = vmul.f32 %v1275, 0.2
    %v1404 = vmul.f32 %v1276, 0.2
    %v1405 = vmul.f32 %v1277, 0.2
    %v1406 = vmul.f32 %v1278, 0.2
    %v1407 = vmul.f32 %v1279, 0.2
    %v1408 = vmul.f32 %v1280, 0.2
    %v1409 = vmul.f32 %v1281, 0.2
    %v1410 = vmul.f32 %v1282, 0.2
    %v1411 = vmul.f32 %v1283, 0.2
    %v1412 = vmul.f32 %v1284, 0.2
    %v1413 = vmax.f32 %v1157, %v1285
    %v1414 = vmax.f32 %v1158, %v1286
    %v1415 = vmax.f32 %v1159, %v1287
    %v1416 = vmax.f32 %v1160, %v1288
    %v1417 = vmax.f32 %v1161, %v1289
    %v1418 = vmax.f32 %v1162, %v1290
    %v1419 = vmax.f32 %v1163, %v1291
    %v1420 = vmax.f32 %v1164, %v1292
    %v1421 = vmax.f32 %v1165, %v1293
    %v1422 = vmax.f32 %v1166, %v1294
    %v1423 = vmax.f32 %v1167, %v1295
    %v1424 = vmax.f32 %v1168, %v1296
    %v1425 = vmax.f32 %v1169, %v1297
    %v1426 = vmax.f32 %v1170, %v1298
    %v1427 = vmax.f32 %v1171, %v1299
    %v1428 = vmax.f32 %v1172, %v1300
    %v1429 = vmax.f32 %v1173, %v1301
    %v1430 = vmax.f32 %v1174, %v1302
    %v1431 = vmax.f32 %v1175, %v1303
    %v1432 = vmax.f32 %v1176, %v1304
    %v1433 = vmax.f32 %v1177, %v1305
    %v1434 = vmax.f32 %v1178, %v1306
    %v1435 = vmax.f32 %v1179, %v1307
    %v1436 = vmax.f32 %v1180, %v1308
    %v1437 = vmax.f32 %v1181, %v1309
    %v1438 = vmax.f32 %v1182, %v1310
    %v1439 = vmax.f32 %v1183, %v1311
    %v1440 = vmax.f32 %v1184, %v1312
    %v1441 = vmax.f32 %v1185, %v1313
    %v1442 = vmax.f32 %v1186, %v1314
    %v1443 = vmax.f32 %v1187, %v1315
    %v1444 = vmax.f32 %v1188, %v1316
    %v1445 = vmax.f32 %v1189, %v1317
    %v1446 = vmax.f32 %v1190, %v1318
    %v1447 = vmax.f32 %v1191, %v1319
    %v1448 = vmax.f32 %v1192, %v1320
    %v1449 = vmax.f32 %v1193, %v1321
    %v1450 = vmax.f32 %v1194, %v1322
    %v1451 = vmax.f32 %v1195, %v1323
    %v1452 = vmax.f32 %v1196, %v1324
    %v1453 = vmax.f32 %v1197, %v1325
    %v1454 = vmax.f32 %v1198, %v1326
    %v1455 = vmax.f32 %v1199, %v1327
    %v1456 = vmax.f32 %v1200, %v1328
    %v1457 = vmax.f32 %v1201, %v1329
    %v1458 = vmax.f32 %v1202, %v1330
    %v1459 = vmax.f32 %v1203, %v1331
    %v1460 = vmax.f32 %v1204, %v1332
    %v1461 = vmax.f32 %v1205, %v1333
    %v1462 = vmax.f32 %v1206, %v1334
    %v1463 = vmax.f32 %v1207, %v1335
    %v1464 = vmax.f32 %v1208, %v1336
    %v1465 = vmax.f32 %v1209, %v1337
    %v1466 = vmax.f32 %v1210, %v1338
    %v1467 = vmax.f32 %v1211, %v1339
    %v1468 = vmax.f32 %v1212, %v1340
    %v1469 = vmax.f32 %v1213, %v1341
    %v1470 = vmax.f32 %v1214, %v1342
    %v1471 = vmax.f32 %v1215, %v1343
    %v1472 = vmax.f32 %v1216, %v1344
    %v1473 = vmax.f32 %v1217, %v1345
    %v1474 = vmax.f32 %v1218, %v1346
    %v1475 = vmax.f32 %v1219, %v1347
    %v1476 = vmax.f32 %v1220, %v1348
    %v1477 = vmax.f32 %v1221, %v1349
    %v1478 = vmax.f32 %v1222, %v1350
    %v1479 = vmax.f32 %v1223, %v1351
    %v1480 = vmax.f32 %v1224, %v1352
    %v1481 = vmax.f32 %v1225, %v1353
    %v1482 = vmax.f32 %v1226, %v1354
    %v1483 = vmax.f32 %v1227, %v1355
    %v1484 = vmax.f32 %v1228, %v1356
    %v1485 = vmax.f32 %v1229, %v1357
    %v1486 = vmax.f32 %v1230, %v1358
    %v1487 = vmax.f32 %v1231, %v1359
    %v1488 = vmax.f32 %v1232, %v1360
    %v1489 = vmax.f32 %v1233, %v1361
    %v1490 = vmax.f32 %v1234, %v1362
    %v1491 = vmax.f32 %v1235, %v1363
    %v1492 = vmax.f32 %v1236, %v1364
    %v1493 = vmax.f32 %v1237, %v1365
    %v1494 = vmax.f32 %v1238, %v1366
    %v1495 = vmax.f32 %v1239, %v1367
    %v1496 = vmax.f32 %v1240, %v1368
    %v1497 = vmax.f32 %v1241, %v1369
    %v1498 = vmax.f32 %v1242, %v1370
    %v1499 = vmax.f32 %v1243, %v1371
    %v1500 = vmax.f32 %v1244, %v1372
    %v1501 = vmax.f32 %v1245, %v1373
    %v1502 = vmax.f32 %v1246, %v1374
    %v1503 = vmax.f32 %v1247, %v1375
    %v1504 = vmax.f32 %v1248, %v1376
    %v1505 = vmax.f32 %v1249, %v1377
    %v1506 = vmax.f32 %v1250, %v1378
    %v1507 = vmax.f32 %v1251, %v1379
    %v1508 = vmax.f32 %v1252, %v1380
    %v1509 = vmax.f32 %v1253, %v1381
    %v1510 = vmax.f32 %v1254, %v1382
    %v1511 = vmax.f32 %v1255, %v1383
    %v1512 = vmax.f32 %v1256, %v1384
    %v1513 = vmax.f32 %v1257, %v1385
    %v1514 = vmax.f32 %v1258, %v1386
    %v1515 = vmax.f32 %v1259, %v1387
    %v1516 = vmax.f32 %v1260, %v1388
    %v1517 = vmax.f32 %v1261, %v1389
    %v1518 = vmax.f32 %v1262, %v1390
    %v1519 = vmax.f32 %v1263, %v1391
    %v1520 = vmax.f32 %v1264, %v1392
    %v1521 = vmax.f32 %v1265, %v1393
    %v1522 = vmax.f32 %v1266, %v1394
    %v1523 = vmax.f32 %v1267, %v1395
    %v1524 = vmax.f32 %v1268, %v1396
    %v1525 = vmax.f32 %v1269, %v1397
    %v1526 = vmax.f32 %v1270, %v1398
    %v1527 = vmax.f32 %v1271, %v1399
    %v1528 = vmax.f32 %v1272, %v1400
    %v1529 = vmax.f32 %v1273, %v1401
    %v1530 = vmax.f32 %v1274, %v1402
    %v1531 = vmax.f32 %v1275, %v1403
    %v1532 = vmax.f32 %v1276, %v1404
    %v1533 = vmax.f32 %v1277, %v1405
    %v1534 = vmax.f32 %v1278, %v1406
    %v1535 = vmax.f32 %v1279, %v1407
    %v1536 = vmax.f32 %v1280, %v1408
    %v1537 = vmax.f32 %v1281, %v1409
    %v1538 = vmax.f32 %v1282, %v1410
    %v1539 = vmax.f32 %v1283, %v1411
    %v1540 = vmax.f32 %v1284, %v1412
    %v1541 = vmax.f32 %v1413, %v1414
    %v1542 = vmax.f32 %v1541, %v1415
    %v1543 = vmax.f32 %v1542, %v1416
    %v1544 = vmax.f32 %v1543, %v1417
    %v1545 = vmax.f32 %v1544, %v1418
    %v1546 = vmax.f32 %v1545, %v1419
    %v1547 = vmax.f32 %v1546, %v1420
    %1548 = vmax.xlane.f32.xlu0 %v1547
    %v1549 = vpop.xlane.xlu0 %1548
    %v1550 = vmax.f32 %v1421, %v1422
    %v1551 = vmax.f32 %v1550, %v1423
    %v1552 = vmax.f32 %v1551, %v1424
    %v1553 = vmax.f32 %v1552, %v1425
    %v1554 = vmax.f32 %v1553, %v1426
    %v1555 = vmax.f32 %v1554, %v1427
    %v1556 = vmax.f32 %v1555, %v1428
    %1557 = vmax.xlane.f32.xlu0 %v1556
    %v1558 = vpop.xlane.xlu0 %1557
    %v1559 = vmax.f32 %v1429, %v1430
    %v1560 = vmax.f32 %v1559, %v1431
    %v1561 = vmax.f32 %v1560, %v1432
    %v1562 = vmax.f32 %v1561, %v1433
    %v1563 = vmax.f32 %v1562, %v1434
    %v1564 = vmax.f32 %v1563, %v1435
    %v1565 = vmax.f32 %v1564, %v1436
    %1566 = vmax.xlane.f32.xlu0 %v1565
    %v1567 = vpop.xlane.xlu0 %1566
    %v1568 = vmax.f32 %v1437, %v1438
    %v1569 = vmax.f32 %v1568, %v1439
    %v1570 = vmax.f32 %v1569, %v1440
    %v1571 = vmax.f32 %v1570, %v1441
    %v1572 = vmax.f32 %v1571, %v1442
    %v1573 = vmax.f32 %v1572, %v1443
    %v1574 = vmax.f32 %v1573, %v1444
    %1575 = vmax.xlane.f32.xlu0 %v1574
    %v1576 = vpop.xlane.xlu0 %1575
    %v1577 = vmax.f32 %v1445, %v1446
    %v1578 = vmax.f32 %v1577, %v1447
    %v1579 = vmax.f32 %v1578, %v1448
    %v1580 = vmax.f32 %v1579, %v1449
    %v1581 = vmax.f32 %v1580, %v1450
    %v1582 = vmax.f32 %v1581, %v1451
    %v1583 = vmax.f32 %v1582, %v1452
    %1584 = vmax.xlane.f32.xlu0 %v1583
    %v1585 = vpop.xlane.xlu0 %1584
    %v1586 = vmax.f32 %v1453, %v1454
    %v1587 = vmax.f32 %v1586, %v1455
    %v1588 = vmax.f32 %v1587, %v1456
    %v1589 = vmax.f32 %v1588, %v1457
    %v1590 = vmax.f32 %v1589, %v1458
    %v1591 = vmax.f32 %v1590, %v1459
    %v1592 = vmax.f32 %v1591, %v1460
    %1593 = vmax.xlane.f32.xlu0 %v1592
    %v1594 = vpop.xlane.xlu0 %1593
    %v1595 = vmax.f32 %v1461, %v1462
    %v1596 = vmax.f32 %v1595, %v1463
    %v1597 = vmax.f32 %v1596, %v1464
    %v1598 = vmax.f32 %v1597, %v1465
    %v1599 = vmax.f32 %v1598, %v1466
    %v1600 = vmax.f32 %v1599, %v1467
    %v1601 = vmax.f32 %v1600, %v1468
    %1602 = vmax.xlane.f32.xlu0 %v1601
    %v1603 = vpop.xlane.xlu0 %1602
    %v1604 = vmax.f32 %v1469, %v1470
    %v1605 = vmax.f32 %v1604, %v1471
    %v1606 = vmax.f32 %v1605, %v1472
    %v1607 = vmax.f32 %v1606, %v1473
    %v1608 = vmax.f32 %v1607, %v1474
    %v1609 = vmax.f32 %v1608, %v1475
    %v1610 = vmax.f32 %v1609, %v1476
    %1611 = vmax.xlane.f32.xlu0 %v1610
    %v1612 = vpop.xlane.xlu0 %1611
    %v1613 = vmax.f32 %v1477, %v1478
    %v1614 = vmax.f32 %v1613, %v1479
    %v1615 = vmax.f32 %v1614, %v1480
    %v1616 = vmax.f32 %v1615, %v1481
    %v1617 = vmax.f32 %v1616, %v1482
    %v1618 = vmax.f32 %v1617, %v1483
    %v1619 = vmax.f32 %v1618, %v1484
    %1620 = vmax.xlane.f32.xlu0 %v1619
    %v1621 = vpop.xlane.xlu0 %1620
    %v1622 = vmax.f32 %v1485, %v1486
    %v1623 = vmax.f32 %v1622, %v1487
    %v1624 = vmax.f32 %v1623, %v1488
    %v1625 = vmax.f32 %v1624, %v1489
    %v1626 = vmax.f32 %v1625, %v1490
    %v1627 = vmax.f32 %v1626, %v1491
    %v1628 = vmax.f32 %v1627, %v1492
    %1629 = vmax.xlane.f32.xlu0 %v1628
    %v1630 = vpop.xlane.xlu0 %1629
    %v1631 = vmax.f32 %v1493, %v1494
    %v1632 = vmax.f32 %v1631, %v1495
    %v1633 = vmax.f32 %v1632, %v1496
    %v1634 = vmax.f32 %v1633, %v1497
    %v1635 = vmax.f32 %v1634, %v1498
    %v1636 = vmax.f32 %v1635, %v1499
    %v1637 = vmax.f32 %v1636, %v1500
    %1638 = vmax.xlane.f32.xlu0 %v1637
    %v1639 = vpop.xlane.xlu0 %1638
    %v1640 = vmax.f32 %v1501, %v1502
    %v1641 = vmax.f32 %v1640, %v1503
    %v1642 = vmax.f32 %v1641, %v1504
    %v1643 = vmax.f32 %v1642, %v1505
    %v1644 = vmax.f32 %v1643, %v1506
    %v1645 = vmax.f32 %v1644, %v1507
    %v1646 = vmax.f32 %v1645, %v1508
    %1647 = vmax.xlane.f32.xlu0 %v1646
    %v1648 = vpop.xlane.xlu0 %1647
    %v1649 = vmax.f32 %v1509, %v1510
    %v1650 = vmax.f32 %v1649, %v1511
    %v1651 = vmax.f32 %v1650, %v1512
    %v1652 = vmax.f32 %v1651, %v1513
    %v1653 = vmax.f32 %v1652, %v1514
    %v1654 = vmax.f32 %v1653, %v1515
    %v1655 = vmax.f32 %v1654, %v1516
    %1656 = vmax.xlane.f32.xlu0 %v1655
    %v1657 = vpop.xlane.xlu0 %1656
    %v1658 = vmax.f32 %v1517, %v1518
    %v1659 = vmax.f32 %v1658, %v1519
    %v1660 = vmax.f32 %v1659, %v1520
    %v1661 = vmax.f32 %v1660, %v1521
    %v1662 = vmax.f32 %v1661, %v1522
    %v1663 = vmax.f32 %v1662, %v1523
    %v1664 = vmax.f32 %v1663, %v1524
    %1665 = vmax.xlane.f32.xlu0 %v1664
    %v1666 = vpop.xlane.xlu0 %1665
    %v1667 = vmax.f32 %v1525, %v1526
    %v1668 = vmax.f32 %v1667, %v1527
    %v1669 = vmax.f32 %v1668, %v1528
    %v1670 = vmax.f32 %v1669, %v1529
    %v1671 = vmax.f32 %v1670, %v1530
    %v1672 = vmax.f32 %v1671, %v1531
    %v1673 = vmax.f32 %v1672, %v1532
    %1674 = vmax.xlane.f32.xlu0 %v1673
    %v1675 = vpop.xlane.xlu0 %1674
    %v1676 = vmax.f32 %v1533, %v1534
    %v1677 = vmax.f32 %v1676, %v1535
    %v1678 = vmax.f32 %v1677, %v1536
    %v1679 = vmax.f32 %v1678, %v1537
    %v1680 = vmax.f32 %v1679, %v1538
    %v1681 = vmax.f32 %v1680, %v1539
    %v1682 = vmax.f32 %v1681, %v1540
    %1683 = vmax.xlane.f32.xlu0 %v1682
    %v1684 = vpop.xlane.xlu0 %1683
    %v1685 = vsub.f32 %v1413, %v1549
    %v1686 = vsub.f32 %v1414, %v1549
    %v1687 = vsub.f32 %v1415, %v1549
    %v1688 = vsub.f32 %v1416, %v1549
    %v1689 = vsub.f32 %v1417, %v1549
    %v1690 = vsub.f32 %v1418, %v1549
    %v1691 = vsub.f32 %v1419, %v1549
    %v1692 = vsub.f32 %v1420, %v1549
    %v1693 = vsub.f32 %v1421, %v1558
    %v1694 = vsub.f32 %v1422, %v1558
    %v1695 = vsub.f32 %v1423, %v1558
    %v1696 = vsub.f32 %v1424, %v1558
    %v1697 = vsub.f32 %v1425, %v1558
    %v1698 = vsub.f32 %v1426, %v1558
    %v1699 = vsub.f32 %v1427, %v1558
    %v1700 = vsub.f32 %v1428, %v1558
    %v1701 = vsub.f32 %v1429, %v1567
    %v1702 = vsub.f32 %v1430, %v1567
    %v1703 = vsub.f32 %v1431, %v1567
    %v1704 = vsub.f32 %v1432, %v1567
    %v1705 = vsub.f32 %v1433, %v1567
    %v1706 = vsub.f32 %v1434, %v1567
    %v1707 = vsub.f32 %v1435, %v1567
    %v1708 = vsub.f32 %v1436, %v1567
    %v1709 = vsub.f32 %v1437, %v1576
    %v1710 = vsub.f32 %v1438, %v1576
    %v1711 = vsub.f32 %v1439, %v1576
    %v1712 = vsub.f32 %v1440, %v1576
    %v1713 = vsub.f32 %v1441, %v1576
    %v1714 = vsub.f32 %v1442, %v1576
    %v1715 = vsub.f32 %v1443, %v1576
    %v1716 = vsub.f32 %v1444, %v1576
    %v1717 = vsub.f32 %v1445, %v1585
    %v1718 = vsub.f32 %v1446, %v1585
    %v1719 = vsub.f32 %v1447, %v1585
    %v1720 = vsub.f32 %v1448, %v1585
    %v1721 = vsub.f32 %v1449, %v1585
    %v1722 = vsub.f32 %v1450, %v1585
    %v1723 = vsub.f32 %v1451, %v1585
    %v1724 = vsub.f32 %v1452, %v1585
    %v1725 = vsub.f32 %v1453, %v1594
    %v1726 = vsub.f32 %v1454, %v1594
    %v1727 = vsub.f32 %v1455, %v1594
    %v1728 = vsub.f32 %v1456, %v1594
    %v1729 = vsub.f32 %v1457, %v1594
    %v1730 = vsub.f32 %v1458, %v1594
    %v1731 = vsub.f32 %v1459, %v1594
    %v1732 = vsub.f32 %v1460, %v1594
    %v1733 = vsub.f32 %v1461, %v1603
    %v1734 = vsub.f32 %v1462, %v1603
    %v1735 = vsub.f32 %v1463, %v1603
    %v1736 = vsub.f32 %v1464, %v1603
    %v1737 = vsub.f32 %v1465, %v1603
    %v1738 = vsub.f32 %v1466, %v1603
    %v1739 = vsub.f32 %v1467, %v1603
    %v1740 = vsub.f32 %v1468, %v1603
    %v1741 = vsub.f32 %v1469, %v1612
    %v1742 = vsub.f32 %v1470, %v1612
    %v1743 = vsub.f32 %v1471, %v1612
    %v1744 = vsub.f32 %v1472, %v1612
    %v1745 = vsub.f32 %v1473, %v1612
    %v1746 = vsub.f32 %v1474, %v1612
    %v1747 = vsub.f32 %v1475, %v1612
    %v1748 = vsub.f32 %v1476, %v1612
    %v1749 = vsub.f32 %v1477, %v1621
    %v1750 = vsub.f32 %v1478, %v1621
    %v1751 = vsub.f32 %v1479, %v1621
    %v1752 = vsub.f32 %v1480, %v1621
    %v1753 = vsub.f32 %v1481, %v1621
    %v1754 = vsub.f32 %v1482, %v1621
    %v1755 = vsub.f32 %v1483, %v1621
    %v1756 = vsub.f32 %v1484, %v1621
    %v1757 = vsub.f32 %v1485, %v1630
    %v1758 = vsub.f32 %v1486, %v1630
    %v1759 = vsub.f32 %v1487, %v1630
    %v1760 = vsub.f32 %v1488, %v1630
    %v1761 = vsub.f32 %v1489, %v1630
    %v1762 = vsub.f32 %v1490, %v1630
    %v1763 = vsub.f32 %v1491, %v1630
    %v1764 = vsub.f32 %v1492, %v1630
    %v1765 = vsub.f32 %v1493, %v1639
    %v1766 = vsub.f32 %v1494, %v1639
    %v1767 = vsub.f32 %v1495, %v1639
    %v1768 = vsub.f32 %v1496, %v1639
    %v1769 = vsub.f32 %v1497, %v1639
    %v1770 = vsub.f32 %v1498, %v1639
    %v1771 = vsub.f32 %v1499, %v1639
    %v1772 = vsub.f32 %v1500, %v1639
    %v1773 = vsub.f32 %v1501, %v1648
    %v1774 = vsub.f32 %v1502, %v1648
    %v1775 = vsub.f32 %v1503, %v1648
    %v1776 = vsub.f32 %v1504, %v1648
    %v1777 = vsub.f32 %v1505, %v1648
    %v1778 = vsub.f32 %v1506, %v1648
    %v1779 = vsub.f32 %v1507, %v1648
    %v1780 = vsub.f32 %v1508, %v1648
    %v1781 = vsub.f32 %v1509, %v1657
    %v1782 = vsub.f32 %v1510, %v1657
    %v1783 = vsub.f32 %v1511, %v1657
    %v1784 = vsub.f32 %v1512, %v1657
    %v1785 = vsub.f32 %v1513, %v1657
    %v1786 = vsub.f32 %v1514, %v1657
    %v1787 = vsub.f32 %v1515, %v1657
    %v1788 = vsub.f32 %v1516, %v1657
    %v1789 = vsub.f32 %v1517, %v1666
    %v1790 = vsub.f32 %v1518, %v1666
    %v1791 = vsub.f32 %v1519, %v1666
    %v1792 = vsub.f32 %v1520, %v1666
    %v1793 = vsub.f32 %v1521, %v1666
    %v1794 = vsub.f32 %v1522, %v1666
    %v1795 = vsub.f32 %v1523, %v1666
    %v1796 = vsub.f32 %v1524, %v1666
    %v1797 = vsub.f32 %v1525, %v1675
    %v1798 = vsub.f32 %v1526, %v1675
    %v1799 = vsub.f32 %v1527, %v1675
    %v1800 = vsub.f32 %v1528, %v1675
    %v1801 = vsub.f32 %v1529, %v1675
    %v1802 = vsub.f32 %v1530, %v1675
    %v1803 = vsub.f32 %v1531, %v1675
    %v1804 = vsub.f32 %v1532, %v1675
    %v1805 = vsub.f32 %v1533, %v1684
    %v1806 = vsub.f32 %v1534, %v1684
    %v1807 = vsub.f32 %v1535, %v1684
    %v1808 = vsub.f32 %v1536, %v1684
    %v1809 = vsub.f32 %v1537, %v1684
    %v1810 = vsub.f32 %v1538, %v1684
    %v1811 = vsub.f32 %v1539, %v1684
    %v1812 = vsub.f32 %v1540, %v1684
    %v1813 = vpack.c.bf16 %v1693, %v1685
    %v1814 = vpack.c.bf16 %v1694, %v1686
    %v1815 = vpack.c.bf16 %v1695, %v1687
    %v1816 = vpack.c.bf16 %v1696, %v1688
    %v1817 = vpack.c.bf16 %v1697, %v1689
    %v1818 = vpack.c.bf16 %v1698, %v1690
    %v1819 = vpack.c.bf16 %v1699, %v1691
    %v1820 = vpack.c.bf16 %v1700, %v1692
    %v1821 = vpack.c.bf16 %v1709, %v1701
    %v1822 = vpack.c.bf16 %v1710, %v1702
    %v1823 = vpack.c.bf16 %v1711, %v1703
    %v1824 = vpack.c.bf16 %v1712, %v1704
    %v1825 = vpack.c.bf16 %v1713, %v1705
    %v1826 = vpack.c.bf16 %v1714, %v1706
    %v1827 = vpack.c.bf16 %v1715, %v1707
    %v1828 = vpack.c.bf16 %v1716, %v1708
    %v1829 = vpack.c.bf16 %v1725, %v1717
    %v1830 = vpack.c.bf16 %v1726, %v1718
    %v1831 = vpack.c.bf16 %v1727, %v1719
    %v1832 = vpack.c.bf16 %v1728, %v1720
    %v1833 = vpack.c.bf16 %v1729, %v1721
    %v1834 = vpack.c.bf16 %v1730, %v1722
    %v1835 = vpack.c.bf16 %v1731, %v1723
    %v1836 = vpack.c.bf16 %v1732, %v1724
    %v1837 = vpack.c.bf16 %v1741, %v1733
    %v1838 = vpack.c.bf16 %v1742, %v1734
    %v1839 = vpack.c.bf16 %v1743, %v1735
    %v1840 = vpack.c.bf16 %v1744, %v1736
    %v1841 = vpack.c.bf16 %v1745, %v1737
    %v1842 = vpack.c.bf16 %v1746, %v1738
    %v1843 = vpack.c.bf16 %v1747, %v1739
    %v1844 = vpack.c.bf16 %v1748, %v1740
    %v1845 = vpack.c.bf16 %v1757, %v1749
    %v1846 = vpack.c.bf16 %v1758, %v1750
    %v1847 = vpack.c.bf16 %v1759, %v1751
    %v1848 = vpack.c.bf16 %v1760, %v1752
    %v1849 = vpack.c.bf16 %v1761, %v1753
    %v1850 = vpack.c.bf16 %v1762, %v1754
    %v1851 = vpack.c.bf16 %v1763, %v1755
    %v1852 = vpack.c.bf16 %v1764, %v1756
    %v1853 = vpack.c.bf16 %v1773, %v1765
    %v1854 = vpack.c.bf16 %v1774, %v1766
    %v1855 = vpack.c.bf16 %v1775, %v1767
    %v1856 = vpack.c.bf16 %v1776, %v1768
    %v1857 = vpack.c.bf16 %v1777, %v1769
    %v1858 = vpack.c.bf16 %v1778, %v1770
    %v1859 = vpack.c.bf16 %v1779, %v1771
    %v1860 = vpack.c.bf16 %v1780, %v1772
    %v1861 = vpack.c.bf16 %v1789, %v1781
    %v1862 = vpack.c.bf16 %v1790, %v1782
    %v1863 = vpack.c.bf16 %v1791, %v1783
    %v1864 = vpack.c.bf16 %v1792, %v1784
    %v1865 = vpack.c.bf16 %v1793, %v1785
    %v1866 = vpack.c.bf16 %v1794, %v1786
    %v1867 = vpack.c.bf16 %v1795, %v1787
    %v1868 = vpack.c.bf16 %v1796, %v1788
    %v1869 = vpack.c.bf16 %v1805, %v1797
    %v1870 = vpack.c.bf16 %v1806, %v1798
    %v1871 = vpack.c.bf16 %v1807, %v1799
    %v1872 = vpack.c.bf16 %v1808, %v1800
    %v1873 = vpack.c.bf16 %v1809, %v1801
    %v1874 = vpack.c.bf16 %v1810, %v1802
    %v1875 = vpack.c.bf16 %v1811, %v1803
    %v1876 = vpack.c.bf16 %v1812, %v1804
    %v1878 = vmul.bf16 %v1813, 1069105081
    %v1879 = vpow.bf16.pop %v1878
    %v1881 = vmul.bf16 %v1814, 1069105081
    %v1882 = vpow.bf16.pop %v1881
    %v1884 = vmul.bf16 %v1815, 1069105081
    %v1885 = vpow.bf16.pop %v1884
    %v1887 = vmul.bf16 %v1816, 1069105081
    %v1888 = vpow.bf16.pop %v1887
    %v1890 = vmul.bf16 %v1817, 1069105081
    %v1891 = vpow.bf16.pop %v1890
    %v1893 = vmul.bf16 %v1818, 1069105081
    %v1894 = vpow.bf16.pop %v1893
    %v1896 = vmul.bf16 %v1819, 1069105081
    %v1897 = vpow.bf16.pop %v1896
    %v1899 = vmul.bf16 %v1820, 1069105081
    %v1900 = vpow.bf16.pop %v1899
    %v1902 = vmul.bf16 %v1821, 1069105081
    %v1903 = vpow.bf16.pop %v1902
    %v1905 = vmul.bf16 %v1822, 1069105081
    %v1906 = vpow.bf16.pop %v1905
    %v1908 = vmul.bf16 %v1823, 1069105081
    %v1909 = vpow.bf16.pop %v1908
    %v1911 = vmul.bf16 %v1824, 1069105081
    %v1912 = vpow.bf16.pop %v1911
    %v1914 = vmul.bf16 %v1825, 1069105081
    %v1915 = vpow.bf16.pop %v1914
    %v1917 = vmul.bf16 %v1826, 1069105081
    %v1918 = vpow.bf16.pop %v1917
    %v1920 = vmul.bf16 %v1827, 1069105081
    %v1921 = vpow.bf16.pop %v1920
    %v1923 = vmul.bf16 %v1828, 1069105081
    %v1924 = vpow.bf16.pop %v1923
    %v1926 = vmul.bf16 %v1829, 1069105081
    %v1927 = vpow.bf16.pop %v1926
    %v1929 = vmul.bf16 %v1830, 1069105081
    %v1930 = vpow.bf16.pop %v1929
    %v1932 = vmul.bf16 %v1831, 1069105081
    %v1933 = vpow.bf16.pop %v1932
    %v1935 = vmul.bf16 %v1832, 1069105081
    %v1936 = vpow.bf16.pop %v1935
    %v1938 = vmul.bf16 %v1833, 1069105081
    %v1939 = vpow.bf16.pop %v1938
    %v1941 = vmul.bf16 %v1834, 1069105081
    %v1942 = vpow.bf16.pop %v1941
    %v1944 = vmul.bf16 %v1835, 1069105081
    %v1945 = vpow.bf16.pop %v1944
    %v1947 = vmul.bf16 %v1836, 1069105081
    %v1948 = vpow.bf16.pop %v1947
    %v1950 = vmul.bf16 %v1837, 1069105081
    %v1951 = vpow.bf16.pop %v1950
    %v1953 = vmul.bf16 %v1838, 1069105081
    %v1954 = vpow.bf16.pop %v1953
    %v1956 = vmul.bf16 %v1839, 1069105081
    %v1957 = vpow.bf16.pop %v1956
    %v1959 = vmul.bf16 %v1840, 1069105081
    %v1960 = vpow.bf16.pop %v1959
    %v1962 = vmul.bf16 %v1841, 1069105081
    %v1963 = vpow.bf16.pop %v1962
    %v1965 = vmul.bf16 %v1842, 1069105081
    %v1966 = vpow.bf16.pop %v1965
    %v1968 = vmul.bf16 %v1843, 1069105081
    %v1969 = vpow.bf16.pop %v1968
    %v1971 = vmul.bf16 %v1844, 1069105081
    %v1972 = vpow.bf16.pop %v1971
    %v1974 = vmul.bf16 %v1845, 1069105081
    %v1975 = vpow.bf16.pop %v1974
    %v1977 = vmul.bf16 %v1846, 1069105081
    %v1978 = vpow.bf16.pop %v1977
    %v1980 = vmul.bf16 %v1847, 1069105081
    %v1981 = vpow.bf16.pop %v1980
    %v1983 = vmul.bf16 %v1848, 1069105081
    %v1984 = vpow.bf16.pop %v1983
    %v1986 = vmul.bf16 %v1849, 1069105081
    %v1987 = vpow.bf16.pop %v1986
    %v1989 = vmul.bf16 %v1850, 1069105081
    %v1990 = vpow.bf16.pop %v1989
    %v1992 = vmul.bf16 %v1851, 1069105081
    %v1993 = vpow.bf16.pop %v1992
    %v1995 = vmul.bf16 %v1852, 1069105081
    %v1996 = vpow.bf16.pop %v1995
    %v1998 = vmul.bf16 %v1853, 1069105081
    %v1999 = vpow.bf16.pop %v1998
    %v2001 = vmul.bf16 %v1854, 1069105081
    %v2002 = vpow.bf16.pop %v2001
    %v2004 = vmul.bf16 %v1855, 1069105081
    %v2005 = vpow.bf16.pop %v2004
    %v2007 = vmul.bf16 %v1856, 1069105081
    %v2008 = vpow.bf16.pop %v2007
    %v2010 = vmul.bf16 %v1857, 1069105081
    %v2011 = vpow.bf16.pop %v2010
    %v2013 = vmul.bf16 %v1858, 1069105081
    %v2014 = vpow.bf16.pop %v2013
    %v2016 = vmul.bf16 %v1859, 1069105081
    %v2017 = vpow.bf16.pop %v2016
    %v2019 = vmul.bf16 %v1860, 1069105081
    %v2020 = vpow.bf16.pop %v2019
    %v2022 = vmul.bf16 %v1861, 1069105081
    %v2023 = vpow.bf16.pop %v2022
    %v2025 = vmul.bf16 %v1862, 1069105081
    %v2026 = vpow.bf16.pop %v2025
    %v2028 = vmul.bf16 %v1863, 1069105081
    %v2029 = vpow.bf16.pop %v2028
    %v2031 = vmul.bf16 %v1864, 1069105081
    %v2032 = vpow.bf16.pop %v2031
    %v2034 = vmul.bf16 %v1865, 1069105081
    %v2035 = vpow.bf16.pop %v2034
    %v2037 = vmul.bf16 %v1866, 1069105081
    %v2038 = vpow.bf16.pop %v2037
    %v2040 = vmul.bf16 %v1867, 1069105081
    %v2041 = vpow.bf16.pop %v2040
    %v2043 = vmul.bf16 %v1868, 1069105081
    %v2044 = vpow.bf16.pop %v2043
    %v2046 = vmul.bf16 %v1869, 1069105081
    %v2047 = vpow.bf16.pop %v2046
    %v2049 = vmul.bf16 %v1870, 1069105081
    %v2050 = vpow.bf16.pop %v2049
    %v2052 = vmul.bf16 %v1871, 1069105081
    %v2053 = vpow.bf16.pop %v2052
    %v2055 = vmul.bf16 %v1872, 1069105081
    %v2056 = vpow.bf16.pop %v2055
    %v2058 = vmul.bf16 %v1873, 1069105081
    %v2059 = vpow.bf16.pop %v2058
    %v2061 = vmul.bf16 %v1874, 1069105081
    %v2062 = vpow.bf16.pop %v2061
    %v2064 = vmul.bf16 %v1875, 1069105081
    %v2065 = vpow.bf16.pop %v2064
    %v2067 = vmul.bf16 %v1876, 1069105081
    %v2068 = vpow.bf16.pop %v2067
    %v2069 = vld [vmem:[%s7] sm:$0xf]
    %v2070 = vld [vmem:[%s7 + $0x4] sm:$0xf]
    %v2071 = vld [vmem:[%s7 + $0x8] sm:$0xf]
    %v2072 = vld [vmem:[%s7 + $0xc] sm:$0xf]
    %v2073 = vld [vmem:[%s7 + $0x10] sm:$0xf]
    %v2074 = vld [vmem:[%s7 + $0x14] sm:$0xf]
    %v2075 = vld [vmem:[%s7 + $0x18] sm:$0xf]
    %v2076 = vld [vmem:[%s7 + $0x1c] sm:$0xf]
    %v2077 = vld [vmem:[%s7 + $0x20] sm:$0xf]
    %v2078 = vld [vmem:[%s7 + $0x24] sm:$0xf]
    %v2079 = vld [vmem:[%s7 + $0x28] sm:$0xf]
    %v2080 = vld [vmem:[%s7 + $0x2c] sm:$0xf]
    %v2081 = vld [vmem:[%s7 + $0x30] sm:$0xf]
    %v2082 = vld [vmem:[%s7 + $0x34] sm:$0xf]
    %v2083 = vld [vmem:[%s7 + $0x38] sm:$0xf]
    %v2084 = vld [vmem:[%s7 + $0x3c] sm:$0xf]
    %v2085 = vld [vmem:[%s7 + $0x40] sm:$0xf]
    %v2086 = vld [vmem:[%s7 + $0x44] sm:$0xf]
    %v2087 = vld [vmem:[%s7 + $0x48] sm:$0xf]
    %v2088 = vld [vmem:[%s7 + $0x4c] sm:$0xf]
    %v2089 = vld [vmem:[%s7 + $0x50] sm:$0xf]
    %v2090 = vld [vmem:[%s7 + $0x54] sm:$0xf]
    %v2091 = vld [vmem:[%s7 + $0x58] sm:$0xf]
    %v2092 = vld [vmem:[%s7 + $0x5c] sm:$0xf]
    %v2093 = vld [vmem:[%s7 + $0x60] sm:$0xf]
    %v2094 = vld [vmem:[%s7 + $0x64] sm:$0xf]
    %v2095 = vld [vmem:[%s7 + $0x68] sm:$0xf]
    %v2096 = vld [vmem:[%s7 + $0x6c] sm:$0xf]
    %v2097 = vld [vmem:[%s7 + $0x70] sm:$0xf]
    %v2098 = vld [vmem:[%s7 + $0x74] sm:$0xf]
    %v2099 = vld [vmem:[%s7 + $0x78] sm:$0xf]
    %v2100 = vld [vmem:[%s7 + $0x7c] sm:$0xf]
    %v2101 = vld [vmem:[%s7 + $0x80] sm:$0xf]
    %v2102 = vld [vmem:[%s7 + $0x84] sm:$0xf]
    %v2103 = vld [vmem:[%s7 + $0x88] sm:$0xf]
    %v2104 = vld [vmem:[%s7 + $0x8c] sm:$0xf]
    %v2105 = vld [vmem:[%s7 + $0x90] sm:$0xf]
    %v2106 = vld [vmem:[%s7 + $0x94] sm:$0xf]
    %v2107 = vld [vmem:[%s7 + $0x98] sm:$0xf]
    %v2108 = vld [vmem:[%s7 + $0x9c] sm:$0xf]
    %v2109 = vld [vmem:[%s7 + $0xa0] sm:$0xf]
    %v2110 = vld [vmem:[%s7 + $0xa4] sm:$0xf]
    %v2111 = vld [vmem:[%s7 + $0xa8] sm:$0xf]
    %v2112 = vld [vmem:[%s7 + $0xac] sm:$0xf]
    %v2113 = vld [vmem:[%s7 + $0xb0] sm:$0xf]
    %v2114 = vld [vmem:[%s7 + $0xb4] sm:$0xf]
    %v2115 = vld [vmem:[%s7 + $0xb8] sm:$0xf]
    %v2116 = vld [vmem:[%s7 + $0xbc] sm:$0xf]
    %v2117 = vld [vmem:[%s7 + $0xc0] sm:$0xf]
    %v2118 = vld [vmem:[%s7 + $0xc4] sm:$0xf]
    %v2119 = vld [vmem:[%s7 + $0xc8] sm:$0xf]
    %v2120 = vld [vmem:[%s7 + $0xcc] sm:$0xf]
    %v2121 = vld [vmem:[%s7 + $0xd0] sm:$0xf]
    %v2122 = vld [vmem:[%s7 + $0xd4] sm:$0xf]
    %v2123 = vld [vmem:[%s7 + $0xd8] sm:$0xf]
    %v2124 = vld [vmem:[%s7 + $0xdc] sm:$0xf]
    %v2125 = vld [vmem:[%s7 + $0xe0] sm:$0xf]
    %v2126 = vld [vmem:[%s7 + $0xe4] sm:$0xf]
    %v2127 = vld [vmem:[%s7 + $0xe8] sm:$0xf]
    %v2128 = vld [vmem:[%s7 + $0xec] sm:$0xf]
    %v2129 = vld [vmem:[%s7 + $0xf0] sm:$0xf]
    %v2130 = vld [vmem:[%s7 + $0xf4] sm:$0xf]
    %v2131 = vld [vmem:[%s7 + $0xf8] sm:$0xf]
    %v2132 = vld [vmem:[%s7 + $0xfc] sm:$0xf]
    %v2133 = vld [vmem:[%s7 + $0x100] sm:$0xf]
    %v2134 = vld [vmem:[%s7 + $0x104] sm:$0xf]
    %v2135 = vld [vmem:[%s7 + $0x108] sm:$0xf]
    %v2136 = vld [vmem:[%s7 + $0x10c] sm:$0xf]
    %v2137 = vld [vmem:[%s7 + $0x110] sm:$0xf]
    %v2138 = vld [vmem:[%s7 + $0x114] sm:$0xf]
    %v2139 = vld [vmem:[%s7 + $0x118] sm:$0xf]
    %v2140 = vld [vmem:[%s7 + $0x11c] sm:$0xf]
    %v2141 = vld [vmem:[%s7 + $0x120] sm:$0xf]
    %v2142 = vld [vmem:[%s7 + $0x124] sm:$0xf]
    %v2143 = vld [vmem:[%s7 + $0x128] sm:$0xf]
    %v2144 = vld [vmem:[%s7 + $0x12c] sm:$0xf]
    %v2145 = vld [vmem:[%s7 + $0x130] sm:$0xf]
    %v2146 = vld [vmem:[%s7 + $0x134] sm:$0xf]
    %v2147 = vld [vmem:[%s7 + $0x138] sm:$0xf]
    %v2148 = vld [vmem:[%s7 + $0x13c] sm:$0xf]
    %v2149 = vld [vmem:[%s7 + $0x140] sm:$0xf]
    %v2150 = vld [vmem:[%s7 + $0x144] sm:$0xf]
    %v2151 = vld [vmem:[%s7 + $0x148] sm:$0xf]
    %v2152 = vld [vmem:[%s7 + $0x14c] sm:$0xf]
    %v2153 = vld [vmem:[%s7 + $0x150] sm:$0xf]
    %v2154 = vld [vmem:[%s7 + $0x154] sm:$0xf]
    %v2155 = vld [vmem:[%s7 + $0x158] sm:$0xf]
    %v2156 = vld [vmem:[%s7 + $0x15c] sm:$0xf]
    %v2157 = vld [vmem:[%s7 + $0x160] sm:$0xf]
    %v2158 = vld [vmem:[%s7 + $0x164] sm:$0xf]
    %v2159 = vld [vmem:[%s7 + $0x168] sm:$0xf]
    %v2160 = vld [vmem:[%s7 + $0x16c] sm:$0xf]
    %v2161 = vld [vmem:[%s7 + $0x170] sm:$0xf]
    %v2162 = vld [vmem:[%s7 + $0x174] sm:$0xf]
    %v2163 = vld [vmem:[%s7 + $0x178] sm:$0xf]
    %v2164 = vld [vmem:[%s7 + $0x17c] sm:$0xf]
    %v2165 = vld [vmem:[%s7 + $0x180] sm:$0xf]
    %v2166 = vld [vmem:[%s7 + $0x184] sm:$0xf]
    %v2167 = vld [vmem:[%s7 + $0x188] sm:$0xf]
    %v2168 = vld [vmem:[%s7 + $0x18c] sm:$0xf]
    %v2169 = vld [vmem:[%s7 + $0x190] sm:$0xf]
    %v2170 = vld [vmem:[%s7 + $0x194] sm:$0xf]
    %v2171 = vld [vmem:[%s7 + $0x198] sm:$0xf]
    %v2172 = vld [vmem:[%s7 + $0x19c] sm:$0xf]
    %v2173 = vld [vmem:[%s7 + $0x1a0] sm:$0xf]
    %v2174 = vld [vmem:[%s7 + $0x1a4] sm:$0xf]
    %v2175 = vld [vmem:[%s7 + $0x1a8] sm:$0xf]
    %v2176 = vld [vmem:[%s7 + $0x1ac] sm:$0xf]
    %v2177 = vld [vmem:[%s7 + $0x1b0] sm:$0xf]
    %v2178 = vld [vmem:[%s7 + $0x1b4] sm:$0xf]
    %v2179 = vld [vmem:[%s7 + $0x1b8] sm:$0xf]
    %v2180 = vld [vmem:[%s7 + $0x1bc] sm:$0xf]
    %v2181 = vld [vmem:[%s7 + $0x1c0] sm:$0xf]
    %v2182 = vld [vmem:[%s7 + $0x1c4] sm:$0xf]
    %v2183 = vld [vmem:[%s7 + $0x1c8] sm:$0xf]
    %v2184 = vld [vmem:[%s7 + $0x1cc] sm:$0xf]
    %v2185 = vld [vmem:[%s7 + $0x1d0] sm:$0xf]
    %v2186 = vld [vmem:[%s7 + $0x1d4] sm:$0xf]
    %v2187 = vld [vmem:[%s7 + $0x1d8] sm:$0xf]
    %v2188 = vld [vmem:[%s7 + $0x1dc] sm:$0xf]
    %v2189 = vld [vmem:[%s7 + $0x1e0] sm:$0xf]
    %v2190 = vld [vmem:[%s7 + $0x1e4] sm:$0xf]
    %v2191 = vld [vmem:[%s7 + $0x1e8] sm:$0xf]
    %v2192 = vld [vmem:[%s7 + $0x1ec] sm:$0xf]
    %v2193 = vld [vmem:[%s7 + $0x1f0] sm:$0xf]
    %v2194 = vld [vmem:[%s7 + $0x1f4] sm:$0xf]
    %v2195 = vld [vmem:[%s7 + $0x1f8] sm:$0xf]
    %v2196 = vld [vmem:[%s7 + $0x1fc] sm:$0xf]
    %v2325 = vunpack.c.l.b16 %v2069
    %v2326 = vunpack.c.l.b16 %v2070
    %v2327 = vunpack.c.l.b16 %v2071
    %v2328 = vunpack.c.l.b16 %v2072
    %v2329 = vunpack.c.l.b16 %v2073
    %v2330 = vunpack.c.l.b16 %v2074
    %v2331 = vunpack.c.l.b16 %v2075
    %v2332 = vunpack.c.l.b16 %v2076
    %v2333 = vunpack.c.l.b16 %v2077
    %v2334 = vunpack.c.l.b16 %v2078
    %v2335 = vunpack.c.l.b16 %v2079
    %v2336 = vunpack.c.l.b16 %v2080
    %v2337 = vunpack.c.l.b16 %v2081
    %v2338 = vunpack.c.l.b16 %v2082
    %v2339 = vunpack.c.l.b16 %v2083
    %v2340 = vunpack.c.l.b16 %v2084
    %v2341 = vunpack.c.l.b16 %v2085
    %v2342 = vunpack.c.l.b16 %v2086
    %v2343 = vunpack.c.l.b16 %v2087
    %v2344 = vunpack.c.l.b16 %v2088
    %v2345 = vunpack.c.l.b16 %v2089
    %v2346 = vunpack.c.l.b16 %v2090
    %v2347 = vunpack.c.l.b16 %v2091
    %v2348 = vunpack.c.l.b16 %v2092
    %v2349 = vunpack.c.l.b16 %v2093
    %v2350 = vunpack.c.l.b16 %v2094
    %v2351 = vunpack.c.l.b16 %v2095
    %v2352 = vunpack.c.l.b16 %v2096
    %v2353 = vunpack.c.l.b16 %v2097
    %v2354 = vunpack.c.l.b16 %v2098
    %v2355 = vunpack.c.l.b16 %v2099
    %v2356 = vunpack.c.l.b16 %v2100
    %v2357 = vunpack.c.l.b16 %v2101
    %v2358 = vunpack.c.l.b16 %v2102
    %v2359 = vunpack.c.l.b16 %v2103
    %v2360 = vunpack.c.l.b16 %v2104
    %v2361 = vunpack.c.l.b16 %v2105
    %v2362 = vunpack.c.l.b16 %v2106
    %v2363 = vunpack.c.l.b16 %v2107
    %v2364 = vunpack.c.l.b16 %v2108
    %v2365 = vunpack.c.l.b16 %v2109
    %v2366 = vunpack.c.l.b16 %v2110
    %v2367 = vunpack.c.l.b16 %v2111
    %v2368 = vunpack.c.l.b16 %v2112
    %v2369 = vunpack.c.l.b16 %v2113
    %v2370 = vunpack.c.l.b16 %v2114
    %v2371 = vunpack.c.l.b16 %v2115
    %v2372 = vunpack.c.l.b16 %v2116
    %v2373 = vunpack.c.l.b16 %v2117
    %v2374 = vunpack.c.l.b16 %v2118
    %v2375 = vunpack.c.l.b16 %v2119
    %v2376 = vunpack.c.l.b16 %v2120
    %v2377 = vunpack.c.l.b16 %v2121
    %v2378 = vunpack.c.l.b16 %v2122
    %v2379 = vunpack.c.l.b16 %v2123
    %v2380 = vunpack.c.l.b16 %v2124
    %v2381 = vunpack.c.l.b16 %v2125
    %v2382 = vunpack.c.l.b16 %v2126
    %v2383 = vunpack.c.l.b16 %v2127
    %v2384 = vunpack.c.l.b16 %v2128
    %v2385 = vunpack.c.l.b16 %v2129
    %v2386 = vunpack.c.l.b16 %v2130
    %v2387 = vunpack.c.l.b16 %v2131
    %v2388 = vunpack.c.l.b16 %v2132
    %v2389 = vunpack.c.l.b16 %v2133
    %v2390 = vunpack.c.l.b16 %v2134
    %v2391 = vunpack.c.l.b16 %v2135
    %v2392 = vunpack.c.l.b16 %v2136
    %v2393 = vunpack.c.l.b16 %v2137
    %v2394 = vunpack.c.l.b16 %v2138
    %v2395 = vunpack.c.l.b16 %v2139
    %v2396 = vunpack.c.l.b16 %v2140
    %v2397 = vunpack.c.l.b16 %v2141
    %v2398 = vunpack.c.l.b16 %v2142
    %v2399 = vunpack.c.l.b16 %v2143
    %v2400 = vunpack.c.l.b16 %v2144
    %v2401 = vunpack.c.l.b16 %v2145
    %v2402 = vunpack.c.l.b16 %v2146
    %v2403 = vunpack.c.l.b16 %v2147
    %v2404 = vunpack.c.l.b16 %v2148
    %v2405 = vunpack.c.l.b16 %v2149
    %v2406 = vunpack.c.l.b16 %v2150
    %v2407 = vunpack.c.l.b16 %v2151
    %v2408 = vunpack.c.l.b16 %v2152
    %v2409 = vunpack.c.l.b16 %v2153
    %v2410 = vunpack.c.l.b16 %v2154
    %v2411 = vunpack.c.l.b16 %v2155
    %v2412 = vunpack.c.l.b16 %v2156
    %v2413 = vunpack.c.l.b16 %v2157
    %v2414 = vunpack.c.l.b16 %v2158
    %v2415 = vunpack.c.l.b16 %v2159
    %v2416 = vunpack.c.l.b16 %v2160
    %v2417 = vunpack.c.l.b16 %v2161
    %v2418 = vunpack.c.l.b16 %v2162
    %v2419 = vunpack.c.l.b16 %v2163
    %v2420 = vunpack.c.l.b16 %v2164
    %v2421 = vunpack.c.l.b16 %v2165
    %v2422 = vunpack.c.l.b16 %v2166
    %v2423 = vunpack.c.l.b16 %v2167
    %v2424 = vunpack.c.l.b16 %v2168
    %v2425 = vunpack.c.l.b16 %v2169
    %v2426 = vunpack.c.l.b16 %v2170
    %v2427 = vunpack.c.l.b16 %v2171
    %v2428 = vunpack.c.l.b16 %v2172
    %v2429 = vunpack.c.l.b16 %v2173
    %v2430 = vunpack.c.l.b16 %v2174
    %v2431 = vunpack.c.l.b16 %v2175
    %v2432 = vunpack.c.l.b16 %v2176
    %v2433 = vunpack.c.l.b16 %v2177
    %v2434 = vunpack.c.l.b16 %v2178
    %v2435 = vunpack.c.l.b16 %v2179
    %v2436 = vunpack.c.l.b16 %v2180
    %v2437 = vunpack.c.l.b16 %v2181
    %v2438 = vunpack.c.l.b16 %v2182
    %v2439 = vunpack.c.l.b16 %v2183
    %v2440 = vunpack.c.l.b16 %v2184
    %v2441 = vunpack.c.l.b16 %v2185
    %v2442 = vunpack.c.l.b16 %v2186
    %v2443 = vunpack.c.l.b16 %v2187
    %v2444 = vunpack.c.l.b16 %v2188
    %v2445 = vunpack.c.l.b16 %v2189
    %v2446 = vunpack.c.l.b16 %v2190
    %v2447 = vunpack.c.l.b16 %v2191
    %v2448 = vunpack.c.l.b16 %v2192
    %v2449 = vunpack.c.l.b16 %v2193
    %v2450 = vunpack.c.l.b16 %v2194
    %v2451 = vunpack.c.l.b16 %v2195
    %v2452 = vunpack.c.l.b16 %v2196
    %v2453 = vpack.c.b16 %v2326, %v2325
    %v2454 = vpack.c.b16 %v2328, %v2327
    %v2455 = vpack.c.b16 %v2330, %v2329
    %v2456 = vpack.c.b16 %v2332, %v2331
    %v2457 = vpack.c.b16 %v2334, %v2333
    %v2458 = vpack.c.b16 %v2336, %v2335
    %v2459 = vpack.c.b16 %v2338, %v2337
    %v2460 = vpack.c.b16 %v2340, %v2339
    %v2461 = vpack.c.b16 %v2342, %v2341
    %v2462 = vpack.c.b16 %v2344, %v2343
    %v2463 = vpack.c.b16 %v2346, %v2345
    %v2464 = vpack.c.b16 %v2348, %v2347
    %v2465 = vpack.c.b16 %v2350, %v2349
    %v2466 = vpack.c.b16 %v2352, %v2351
    %v2467 = vpack.c.b16 %v2354, %v2353
    %v2468 = vpack.c.b16 %v2356, %v2355
    %v2469 = vpack.c.b16 %v2358, %v2357
    %v2470 = vpack.c.b16 %v2360, %v2359
    %v2471 = vpack.c.b16 %v2362, %v2361
    %v2472 = vpack.c.b16 %v2364, %v2363
    %v2473 = vpack.c.b16 %v2366, %v2365
    %v2474 = vpack.c.b16 %v2368, %v2367
    %v2475 = vpack.c.b16 %v2370, %v2369
    %v2476 = vpack.c.b16 %v2372, %v2371
    %v2477 = vpack.c.b16 %v2374, %v2373
    %v2478 = vpack.c.b16 %v2376, %v2375
    %v2479 = vpack.c.b16 %v2378, %v2377
    %v2480 = vpack.c.b16 %v2380, %v2379
    %v2481 = vpack.c.b16 %v2382, %v2381
    %v2482 = vpack.c.b16 %v2384, %v2383
    %v2483 = vpack.c.b16 %v2386, %v2385
    %v2484 = vpack.c.b16 %v2388, %v2387
    %v2485 = vpack.c.b16 %v2390, %v2389
    %v2486 = vpack.c.b16 %v2392, %v2391
    %v2487 = vpack.c.b16 %v2394, %v2393
    %v2488 = vpack.c.b16 %v2396, %v2395
    %v2489 = vpack.c.b16 %v2398, %v2397
    %v2490 = vpack.c.b16 %v2400, %v2399
    %v2491 = vpack.c.b16 %v2402, %v2401
    %v2492 = vpack.c.b16 %v2404, %v2403
    %v2493 = vpack.c.b16 %v2406, %v2405
    %v2494 = vpack.c.b16 %v2408, %v2407
    %v2495 = vpack.c.b16 %v2410, %v2409
    %v2496 = vpack.c.b16 %v2412, %v2411
    %v2497 = vpack.c.b16 %v2414, %v2413
    %v2498 = vpack.c.b16 %v2416, %v2415
    %v2499 = vpack.c.b16 %v2418, %v2417
    %v2500 = vpack.c.b16 %v2420, %v2419
    %v2501 = vpack.c.b16 %v2422, %v2421
    %v2502 = vpack.c.b16 %v2424, %v2423
    %v2503 = vpack.c.b16 %v2426, %v2425
    %v2504 = vpack.c.b16 %v2428, %v2427
    %v2505 = vpack.c.b16 %v2430, %v2429
    %v2506 = vpack.c.b16 %v2432, %v2431
    %v2507 = vpack.c.b16 %v2434, %v2433
    %v2508 = vpack.c.b16 %v2436, %v2435
    %v2509 = vpack.c.b16 %v2438, %v2437
    %v2510 = vpack.c.b16 %v2440, %v2439
    %v2511 = vpack.c.b16 %v2442, %v2441
    %v2512 = vpack.c.b16 %v2444, %v2443
    %v2513 = vpack.c.b16 %v2446, %v2445
    %v2514 = vpack.c.b16 %v2448, %v2447
    %v2515 = vpack.c.b16 %v2450, %v2449
    %v2516 = vpack.c.b16 %v2452, %v2451
    %2581 = vmatprep.subr.bf16.mxu0 0
    %2582 = vmatpush1.bf16.msra.mxu0 %v2460
    %2583 = vmatprep.subr.bf16.mxu0 0
    %2584 = vmatpush1.bf16.msra.mxu0 %v2459
    %2585 = vmatprep.subr.bf16.mxu0 0
    %2586 = vmatpush1.bf16.msra.mxu0 %v2458
    %2587 = vmatprep.subr.bf16.mxu0 0
    %2588 = vmatpush1.bf16.msra.mxu0 %v2457
    %2589 = vmatprep.subr.bf16.mxu0 0
    %2590 = vmatpush1.bf16.msra.mxu0 %v2456
    %2591 = vmatprep.subr.bf16.mxu0 0
    %2592 = vmatpush1.bf16.msra.mxu0 %v2455
    %2593 = vmatprep.subr.bf16.mxu0 0
    %2594 = vmatpush1.bf16.msra.mxu0 %v2454
    %2595 = vmatprep.subr.bf16.mxu0 0
    %2596 = vmatpush1.bf16.msra.mxu0 %v2453
    %2597 = vmatprep.subr.bf16.mxu0 0
    %2598 = vmatpush2.bf16.msra.mxu0 %v2468
    %2599 = vmatprep.subr.bf16.mxu0 0
    %2600 = vmatpush2.bf16.msra.mxu0 %v2467
    %2601 = vmatprep.subr.bf16.mxu0 0
    %2602 = vmatpush2.bf16.msra.mxu0 %v2466
    %2603 = vmatprep.subr.bf16.mxu0 0
    %2604 = vmatpush2.bf16.msra.mxu0 %v2465
    %2605 = vmatprep.subr.bf16.mxu0 0
    %2606 = vmatpush2.bf16.msra.mxu0 %v2464
    %2607 = vmatprep.subr.bf16.mxu0 0
    %2608 = vmatpush2.bf16.msra.mxu0 %v2463
    %2609 = vmatprep.subr.bf16.mxu0 0
    %2610 = vmatpush2.bf16.msra.mxu0 %v2462
    %2611 = vmatprep.subr.bf16.mxu0 0
    %2612 = vmatpush2.bf16.msra.mxu0 %v2461
    %2613 = vmatprep.mubr.bf16.mxu0 %v1882
    %2614 = vmatmul.mubr.bf16.gmra.mxu0 %v1879
    %v2615 = vpop.f32.mrf.mxu0
    %v2616 = vadd.f32 0.0, %v2615
    %v2617 = vpop.f32.mrf.mxu0
    %v2618 = vpop.f32.mrf.mxu0
    %v2619 = vadd.f32 0.0, %v2618
    %v2620 = vpop.f32.mrf.mxu0
    %2621 = vmatprep.mubr.bf16.mxu0 %v1906
    %2622 = vmatmul.mubr.bf16.gmra.mxu0 %v1903
    %v2623 = vpop.f32.mrf.mxu0
    %v2624 = vadd.f32 0.0, %v2623
    %v2625 = vpop.f32.mrf.mxu0
    %v2626 = vpop.f32.mrf.mxu0
    %v2627 = vadd.f32 0.0, %v2626
    %v2628 = vpop.f32.mrf.mxu0
    %2629 = vmatprep.mubr.bf16.mxu0 %v1930
    %2630 = vmatmul.mubr.bf16.gmra.mxu0 %v1927
    %v2631 = vpop.f32.mrf.mxu0
    %v2632 = vadd.f32 0.0, %v2631
    %v2633 = vpop.f32.mrf.mxu0
    %v2634 = vpop.f32.mrf.mxu0
    %v2635 = vadd.f32 0.0, %v2634
    %v2636 = vpop.f32.mrf.mxu0
    %2637 = vmatprep.mubr.bf16.mxu0 %v1954
    %2638 = vmatmul.mubr.bf16.gmra.mxu0 %v1951
    %v2639 = vpop.f32.mrf.mxu0
    %v2640 = vadd.f32 0.0, %v2639
    %v2641 = vpop.f32.mrf.mxu0
    %v2642 = vpop.f32.mrf.mxu0
    %v2643 = vadd.f32 0.0, %v2642
    %v2644 = vpop.f32.mrf.mxu0
    %2645 = vmatprep.mubr.bf16.mxu0 %v1978
    %2646 = vmatmul.mubr.bf16.gmra.mxu0 %v1975
    %v2647 = vpop.f32.mrf.mxu0
    %v2648 = vadd.f32 0.0, %v2647
    %v2649 = vpop.f32.mrf.mxu0
    %v2650 = vpop.f32.mrf.mxu0
    %v2651 = vadd.f32 0.0, %v2650
    %v2652 = vpop.f32.mrf.mxu0
    %2653 = vmatprep.mubr.bf16.mxu0 %v2002
    %2654 = vmatmul.mubr.bf16.gmra.mxu0 %v1999
    %v2655 = vpop.f32.mrf.mxu0
    %v2656 = vadd.f32 0.0, %v2655
    %v2657 = vpop.f32.mrf.mxu0
    %v2658 = vpop.f32.mrf.mxu0
    %v2659 = vadd.f32 0.0, %v2658
    %v2660 = vpop.f32.mrf.mxu0
    %2661 = vmatprep.mubr.bf16.mxu0 %v2026
    %2662 = vmatmul.mubr.bf16.gmra.mxu0 %v2023
    %v2663 = vpop.f32.mrf.mxu0
    %v2664 = vadd.f32 0.0, %v2663
    %v2665 = vpop.f32.mrf.mxu0
    %v2666 = vpop.f32.mrf.mxu0
    %v2667 = vadd.f32 0.0, %v2666
    %v2668 = vpop.f32.mrf.mxu0
    %2669 = vmatprep.mubr.bf16.mxu0 %v2050
    %2670 = vmatmul.mubr.bf16.gmra.mxu0 %v2047
    %v2671 = vpop.f32.mrf.mxu0
    %v2672 = vadd.f32 0.0, %v2671
    %v2673 = vpop.f32.mrf.mxu0
    %v2674 = vpop.f32.mrf.mxu0
    %v2675 = vadd.f32 0.0, %v2674
    %v2676 = vpop.f32.mrf.mxu0
    %2677 = vdwg.mxu0
    %2678 = vmatprep.subr.bf16.mxu0 0
    %2679 = vmatpush1.bf16.msra.mxu0 %v2476
    %2680 = vmatprep.subr.bf16.mxu0 0
    %2681 = vmatpush1.bf16.msra.mxu0 %v2475
    %2682 = vmatprep.subr.bf16.mxu0 0
    %2683 = vmatpush1.bf16.msra.mxu0 %v2474
    %2684 = vmatprep.subr.bf16.mxu0 0
    %2685 = vmatpush1.bf16.msra.mxu0 %v2473
    %2686 = vmatprep.subr.bf16.mxu0 0
    %2687 = vmatpush1.bf16.msra.mxu0 %v2472
    %2688 = vmatprep.subr.bf16.mxu0 0
    %2689 = vmatpush1.bf16.msra.mxu0 %v2471
    %2690 = vmatprep.subr.bf16.mxu0 0
    %2691 = vmatpush1.bf16.msra.mxu0 %v2470
    %2692 = vmatprep.subr.bf16.mxu0 0
    %2693 = vmatpush1.bf16.msra.mxu0 %v2469
    %2694 = vmatprep.subr.bf16.mxu0 0
    %2695 = vmatpush2.bf16.msra.mxu0 %v2484
    %2696 = vmatprep.subr.bf16.mxu0 0
    %2697 = vmatpush2.bf16.msra.mxu0 %v2483
    %2698 = vmatprep.subr.bf16.mxu0 0
    %2699 = vmatpush2.bf16.msra.mxu0 %v2482
    %2700 = vmatprep.subr.bf16.mxu0 0
    %2701 = vmatpush2.bf16.msra.mxu0 %v2481
    %2702 = vmatprep.subr.bf16.mxu0 0
    %2703 = vmatpush2.bf16.msra.mxu0 %v2480
    %2704 = vmatprep.subr.bf16.mxu0 0
    %2705 = vmatpush2.bf16.msra.mxu0 %v2479
    %2706 = vmatprep.subr.bf16.mxu0 0
    %2707 = vmatpush2.bf16.msra.mxu0 %v2478
    %2708 = vmatprep.subr.bf16.mxu0 0
    %2709 = vmatpush2.bf16.msra.mxu0 %v2477
    %2710 = vmatprep.mubr.bf16.mxu0 %v1888
    %2711 = vmatmul.mubr.bf16.gmra.mxu0 %v1885
    %v2712 = vpop.f32.mrf.mxu0
    %v2713 = vadd.f32 %v2616, %v2712
    %v2714 = vpop.f32.mrf.mxu0
    %v2715 = vpop.f32.mrf.mxu0
    %v2716 = vadd.f32 %v2619, %v2715
    %v2717 = vpop.f32.mrf.mxu0
    %2718 = vmatprep.mubr.bf16.mxu0 %v1912
    %2719 = vmatmul.mubr.bf16.gmra.mxu0 %v1909
    %v2720 = vpop.f32.mrf.mxu0
    %v2721 = vadd.f32 %v2624, %v2720
    %v2722 = vpop.f32.mrf.mxu0
    %v2723 = vpop.f32.mrf.mxu0
    %v2724 = vadd.f32 %v2627, %v2723
    %v2725 = vpop.f32.mrf.mxu0
    %2726 = vmatprep.mubr.bf16.mxu0 %v1936
    %2727 = vmatmul.mubr.bf16.gmra.mxu0 %v1933
    %v2728 = vpop.f32.mrf.mxu0
    %v2729 = vadd.f32 %v2632, %v2728
    %v2730 = vpop.f32.mrf.mxu0
    %v2731 = vpop.f32.mrf.mxu0
    %v2732 = vadd.f32 %v2635, %v2731
    %v2733 = vpop.f32.mrf.mxu0
    %2734 = vmatprep.mubr.bf16.mxu0 %v1960
    %2735 = vmatmul.mubr.bf16.gmra.mxu0 %v1957
    %v2736 = vpop.f32.mrf.mxu0
    %v2737 = vadd.f32 %v2640, %v2736
    %v2738 = vpop.f32.mrf.mxu0
    %v2739 = vpop.f32.mrf.mxu0
    %v2740 = vadd.f32 %v2643, %v2739
    %v2741 = vpop.f32.mrf.mxu0
    %2742 = vmatprep.mubr.bf16.mxu0 %v1984
    %2743 = vmatmul.mubr.bf16.gmra.mxu0 %v1981
    %v2744 = vpop.f32.mrf.mxu0
    %v2745 = vadd.f32 %v2648, %v2744
    %v2746 = vpop.f32.mrf.mxu0
    %v2747 = vpop.f32.mrf.mxu0
    %v2748 = vadd.f32 %v2651, %v2747
    %v2749 = vpop.f32.mrf.mxu0
    %2750 = vmatprep.mubr.bf16.mxu0 %v2008
    %2751 = vmatmul.mubr.bf16.gmra.mxu0 %v2005
    %v2752 = vpop.f32.mrf.mxu0
    %v2753 = vadd.f32 %v2656, %v2752
    %v2754 = vpop.f32.mrf.mxu0
    %v2755 = vpop.f32.mrf.mxu0
    %v2756 = vadd.f32 %v2659, %v2755
    %v2757 = vpop.f32.mrf.mxu0
    %2758 = vmatprep.mubr.bf16.mxu0 %v2032
    %2759 = vmatmul.mubr.bf16.gmra.mxu0 %v2029
    %v2760 = vpop.f32.mrf.mxu0
    %v2761 = vadd.f32 %v2664, %v2760
    %v2762 = vpop.f32.mrf.mxu0
    %v2763 = vpop.f32.mrf.mxu0
    %v2764 = vadd.f32 %v2667, %v2763
    %v2765 = vpop.f32.mrf.mxu0
    %2766 = vmatprep.mubr.bf16.mxu0 %v2056
    %2767 = vmatmul.mubr.bf16.gmra.mxu0 %v2053
    %v2768 = vpop.f32.mrf.mxu0
    %v2769 = vadd.f32 %v2672, %v2768
    %v2770 = vpop.f32.mrf.mxu0
    %v2771 = vpop.f32.mrf.mxu0
    %v2772 = vadd.f32 %v2675, %v2771
    %v2773 = vpop.f32.mrf.mxu0
    %2774 = vdwg.mxu0
    %2775 = vmatprep.subr.bf16.mxu0 0
    %2776 = vmatpush1.bf16.msra.mxu0 %v2492
    %2777 = vmatprep.subr.bf16.mxu0 0
    %2778 = vmatpush1.bf16.msra.mxu0 %v2491
    %2779 = vmatprep.subr.bf16.mxu0 0
    %2780 = vmatpush1.bf16.msra.mxu0 %v2490
    %2781 = vmatprep.subr.bf16.mxu0 0
    %2782 = vmatpush1.bf16.msra.mxu0 %v2489
    %2783 = vmatprep.subr.bf16.mxu0 0
    %2784 = vmatpush1.bf16.msra.mxu0 %v2488
    %2785 = vmatprep.subr.bf16.mxu0 0
    %2786 = vmatpush1.bf16.msra.mxu0 %v2487
    %2787 = vmatprep.subr.bf16.mxu0 0
    %2788 = vmatpush1.bf16.msra.mxu0 %v2486
    %2789 = vmatprep.subr.bf16.mxu0 0
    %2790 = vmatpush1.bf16.msra.mxu0 %v2485
    %2791 = vmatprep.subr.bf16.mxu0 0
    %2792 = vmatpush2.bf16.msra.mxu0 %v2500
    %2793 = vmatprep.subr.bf16.mxu0 0
    %2794 = vmatpush2.bf16.msra.mxu0 %v2499
    %2795 = vmatprep.subr.bf16.mxu0 0
    %2796 = vmatpush2.bf16.msra.mxu0 %v2498
    %2797 = vmatprep.subr.bf16.mxu0 0
    %2798 = vmatpush2.bf16.msra.mxu0 %v2497
    %2799 = vmatprep.subr.bf16.mxu0 0
    %2800 = vmatpush2.bf16.msra.mxu0 %v2496
    %2801 = vmatprep.subr.bf16.mxu0 0
    %2802 = vmatpush2.bf16.msra.mxu0 %v2495
    %2803 = vmatprep.subr.bf16.mxu0 0
    %2804 = vmatpush2.bf16.msra.mxu0 %v2494
    %2805 = vmatprep.subr.bf16.mxu0 0
    %2806 = vmatpush2.bf16.msra.mxu0 %v2493
    %2807 = vmatprep.mubr.bf16.mxu0 %v1894
    %2808 = vmatmul.mubr.bf16.gmra.mxu0 %v1891
    %v2809 = vpop.f32.mrf.mxu0
    %v2810 = vadd.f32 %v2713, %v2809
    %v2811 = vpop.f32.mrf.mxu0
    %v2812 = vpop.f32.mrf.mxu0
    %v2813 = vadd.f32 %v2716, %v2812
    %v2814 = vpop.f32.mrf.mxu0
    %2815 = vmatprep.mubr.bf16.mxu0 %v1918
    %2816 = vmatmul.mubr.bf16.gmra.mxu0 %v1915
    %v2817 = vpop.f32.mrf.mxu0
    %v2818 = vadd.f32 %v2721, %v2817
    %v2819 = vpop.f32.mrf.mxu0
    %v2820 = vpop.f32.mrf.mxu0
    %v2821 = vadd.f32 %v2724, %v2820
    %v2822 = vpop.f32.mrf.mxu0
    %2823 = vmatprep.mubr.bf16.mxu0 %v1942
    %2824 = vmatmul.mubr.bf16.gmra.mxu0 %v1939
    %v2825 = vpop.f32.mrf.mxu0
    %v2826 = vadd.f32 %v2729, %v2825
    %v2827 = vpop.f32.mrf.mxu0
    %v2828 = vpop.f32.mrf.mxu0
    %v2829 = vadd.f32 %v2732, %v2828
    %v2830 = vpop.f32.mrf.mxu0
    %2831 = vmatprep.mubr.bf16.mxu0 %v1966
    %2832 = vmatmul.mubr.bf16.gmra.mxu0 %v1963
    %v2833 = vpop.f32.mrf.mxu0
    %v2834 = vadd.f32 %v2737, %v2833
    %v2835 = vpop.f32.mrf.mxu0
    %v2836 = vpop.f32.mrf.mxu0
    %v2837 = vadd.f32 %v2740, %v2836
    %v2838 = vpop.f32.mrf.mxu0
    %2839 = vmatprep.mubr.bf16.mxu0 %v1990
    %2840 = vmatmul.mubr.bf16.gmra.mxu0 %v1987
    %v2841 = vpop.f32.mrf.mxu0
    %v2842 = vadd.f32 %v2745, %v2841
    %v2843 = vpop.f32.mrf.mxu0
    %v2844 = vpop.f32.mrf.mxu0
    %v2845 = vadd.f32 %v2748, %v2844
    %v2846 = vpop.f32.mrf.mxu0
    %2847 = vmatprep.mubr.bf16.mxu0 %v2014
    %2848 = vmatmul.mubr.bf16.gmra.mxu0 %v2011
    %v2849 = vpop.f32.mrf.mxu0
    %v2850 = vadd.f32 %v2753, %v2849
    %v2851 = vpop.f32.mrf.mxu0
    %v2852 = vpop.f32.mrf.mxu0
    %v2853 = vadd.f32 %v2756, %v2852
    %v2854 = vpop.f32.mrf.mxu0
    %2855 = vmatprep.mubr.bf16.mxu0 %v2038
    %2856 = vmatmul.mubr.bf16.gmra.mxu0 %v2035
    %v2857 = vpop.f32.mrf.mxu0
    %v2858 = vadd.f32 %v2761, %v2857
    %v2859 = vpop.f32.mrf.mxu0
    %v2860 = vpop.f32.mrf.mxu0
    %v2861 = vadd.f32 %v2764, %v2860
    %v2862 = vpop.f32.mrf.mxu0
    %2863 = vmatprep.mubr.bf16.mxu0 %v2062
    %2864 = vmatmul.mubr.bf16.gmra.mxu0 %v2059
    %v2865 = vpop.f32.mrf.mxu0
    %v2866 = vadd.f32 %v2769, %v2865
    %v2867 = vpop.f32.mrf.mxu0
    %v2868 = vpop.f32.mrf.mxu0
    %v2869 = vadd.f32 %v2772, %v2868
    %v2870 = vpop.f32.mrf.mxu0
    %2871 = vdwg.mxu0
    %2872 = vmatprep.subr.bf16.mxu0 0
    %2873 = vmatpush1.bf16.msra.mxu0 %v2508
    %2874 = vmatprep.subr.bf16.mxu0 0
    %2875 = vmatpush1.bf16.msra.mxu0 %v2507
    %2876 = vmatprep.subr.bf16.mxu0 0
    %2877 = vmatpush1.bf16.msra.mxu0 %v2506
    %2878 = vmatprep.subr.bf16.mxu0 0
    %2879 = vmatpush1.bf16.msra.mxu0 %v2505
    %2880 = vmatprep.subr.bf16.mxu0 0
    %2881 = vmatpush1.bf16.msra.mxu0 %v2504
    %2882 = vmatprep.subr.bf16.mxu0 0
    %2883 = vmatpush1.bf16.msra.mxu0 %v2503
    %2884 = vmatprep.subr.bf16.mxu0 0
    %2885 = vmatpush1.bf16.msra.mxu0 %v2502
    %2886 = vmatprep.subr.bf16.mxu0 0
    %2887 = vmatpush1.bf16.msra.mxu0 %v2501
    %2888 = vmatprep.subr.bf16.mxu0 0
    %2889 = vmatpush2.bf16.msra.mxu0 %v2516
    %2890 = vmatprep.subr.bf16.mxu0 0
    %2891 = vmatpush2.bf16.msra.mxu0 %v2515
    %2892 = vmatprep.subr.bf16.mxu0 0
    %2893 = vmatpush2.bf16.msra.mxu0 %v2514
    %2894 = vmatprep.subr.bf16.mxu0 0
    %2895 = vmatpush2.bf16.msra.mxu0 %v2513
    %2896 = vmatprep.subr.bf16.mxu0 0
    %2897 = vmatpush2.bf16.msra.mxu0 %v2512
    %2898 = vmatprep.subr.bf16.mxu0 0
    %2899 = vmatpush2.bf16.msra.mxu0 %v2511
    %2900 = vmatprep.subr.bf16.mxu0 0
    %2901 = vmatpush2.bf16.msra.mxu0 %v2510
    %2902 = vmatprep.subr.bf16.mxu0 0
    %2903 = vmatpush2.bf16.msra.mxu0 %v2509
    %2904 = vmatprep.mubr.bf16.mxu0 %v1900
    %2905 = vmatmul.mubr.bf16.gmra.mxu0 %v1897
    %v2906 = vpop.f32.mrf.mxu0
    %v2907 = vadd.f32 %v2810, %v2906
    %v2908 = vpop.f32.mrf.mxu0
    %v2909 = vpop.f32.mrf.mxu0
    %v2910 = vadd.f32 %v2813, %v2909
    %v2911 = vpop.f32.mrf.mxu0
    %2912 = vmatprep.mubr.bf16.mxu0 %v1924
    %2913 = vmatmul.mubr.bf16.gmra.mxu0 %v1921
    %v2914 = vpop.f32.mrf.mxu0
    %v2915 = vadd.f32 %v2818, %v2914
    %v2916 = vpop.f32.mrf.mxu0
    %v2917 = vpop.f32.mrf.mxu0
    %v2918 = vadd.f32 %v2821, %v2917
    %v2919 = vpop.f32.mrf.mxu0
    %2920 = vmatprep.mubr.bf16.mxu0 %v1948
    %2921 = vmatmul.mubr.bf16.gmra.mxu0 %v1945
    %v2922 = vpop.f32.mrf.mxu0
    %v2923 = vadd.f32 %v2826, %v2922
    %v2924 = vpop.f32.mrf.mxu0
    %v2925 = vpop.f32.mrf.mxu0
    %v2926 = vadd.f32 %v2829, %v2925
    %v2927 = vpop.f32.mrf.mxu0
    %2928 = vmatprep.mubr.bf16.mxu0 %v1972
    %2929 = vmatmul.mubr.bf16.gmra.mxu0 %v1969
    %v2930 = vpop.f32.mrf.mxu0
    %v2931 = vadd.f32 %v2834, %v2930
    %v2932 = vpop.f32.mrf.mxu0
    %v2933 = vpop.f32.mrf.mxu0
    %v2934 = vadd.f32 %v2837, %v2933
    %v2935 = vpop.f32.mrf.mxu0
    %2936 = vmatprep.mubr.bf16.mxu0 %v1996
    %2937 = vmatmul.mubr.bf16.gmra.mxu0 %v1993
    %v2938 = vpop.f32.mrf.mxu0
    %v2939 = vadd.f32 %v2842, %v2938
    %v2940 = vpop.f32.mrf.mxu0
    %v2941 = vpop.f32.mrf.mxu0
    %v2942 = vadd.f32 %v2845, %v2941
    %v2943 = vpop.f32.mrf.mxu0
    %2944 = vmatprep.mubr.bf16.mxu0 %v2020
    %2945 = vmatmul.mubr.bf16.gmra.mxu0 %v2017
    %v2946 = vpop.f32.mrf.mxu0
    %v2947 = vadd.f32 %v2850, %v2946
    %v2948 = vpop.f32.mrf.mxu0
    %v2949 = vpop.f32.mrf.mxu0
    %v2950 = vadd.f32 %v2853, %v2949
    %v2951 = vpop.f32.mrf.mxu0
    %2952 = vmatprep.mubr.bf16.mxu0 %v2044
    %2953 = vmatmul.mubr.bf16.gmra.mxu0 %v2041
    %v2954 = vpop.f32.mrf.mxu0
    %v2955 = vadd.f32 %v2858, %v2954
    %v2956 = vpop.f32.mrf.mxu0
    %v2957 = vpop.f32.mrf.mxu0
    %v2958 = vadd.f32 %v2861, %v2957
    %v2959 = vpop.f32.mrf.mxu0
    %2960 = vmatprep.mubr.bf16.mxu0 %v2068
    %2961 = vmatmul.mubr.bf16.gmra.mxu0 %v2065
    %v2962 = vpop.f32.mrf.mxu0
    %v2963 = vadd.f32 %v2866, %v2962
    %v2964 = vpop.f32.mrf.mxu0
    %v2965 = vpop.f32.mrf.mxu0
    %v2966 = vadd.f32 %v2869, %v2965
    %v2967 = vpop.f32.mrf.mxu0
    %2968 = vdwg.mxu0
    %v2969 = vrcp.pop %v2907
    %v2970 = vrcp.pop %v2910
    %v2971 = vrcp.pop %v2915
    %v2972 = vrcp.pop %v2918
    %v2973 = vrcp.pop %v2923
    %v2974 = vrcp.pop %v2926
    %v2975 = vrcp.pop %v2931
    %v2976 = vrcp.pop %v2934
    %v2977 = vrcp.pop %v2939
    %v2978 = vrcp.pop %v2942
    %v2979 = vrcp.pop %v2947
    %v2980 = vrcp.pop %v2950
    %v2981 = vrcp.pop %v2955
    %v2982 = vrcp.pop %v2958
    %v2983 = vrcp.pop %v2963
    %v2984 = vrcp.pop %v2966
    %v2985 = vld [vmem:[%s8] sm:$0xff]
    %v2987 = vsel %vm463, %v2969, 0
    %v2990 = vsel %vm463, %v2970, 0
    %v2993 = vsel %vm463, %v2971, 0
    %v2996 = vsel %vm463, %v2972, 0
    %v2999 = vsel %vm463, %v2973, 0
    %v3002 = vsel %vm463, %v2974, 0
    %v3005 = vsel %vm463, %v2975, 0
    %v3008 = vsel %vm463, %v2976, 0
    %v3011 = vsel %vm463, %v2977, 0
    %v3014 = vsel %vm463, %v2978, 0
    %v3017 = vsel %vm463, %v2979, 0
    %v3020 = vsel %vm463, %v2980, 0
    %v3023 = vsel %vm463, %v2981, 0
    %v3026 = vsel %vm463, %v2982, 0
    %v3029 = vsel %vm463, %v2983, 0
    %v3032 = vsel %vm463, %v2984, 0
    %3034 = vmatprep.subr.mxu0 0.0
    %3035 = vmatpush1.msra.mxu0 0.0
    %3036 = vmatprep.subr.mxu0 0.0
    %3037 = vmatpush1.msra.mxu0 0.0
    %3038 = vmatprep.subr.mxu0 0.0
    %3039 = vmatpush1.msra.mxu0 0.0
    %3040 = vmatprep.subr.mxu0 0.0
    %3041 = vmatpush1.msra.mxu0 0.0
    %3042 = vmatprep.subr.mxu0 0.0
    %3043 = vmatpush1.msra.mxu0 0.0
    %3044 = vmatprep.subr.mxu0 0.0
    %3045 = vmatpush1.msra.mxu0 0.0
    %3046 = vmatprep.subr.mxu0 0.0
    %3047 = vmatpush1.msra.mxu0 0.0
    %3048 = vmatprep.subr.mxu0 0.0
    %3049 = vmatpush1.msra.mxu0 0.0
    %3050 = vmatprep.subr.mxu0 0.0
    %3051 = vmatpush1.msra.mxu0 0.0
    %3052 = vmatprep.subr.mxu0 0.0
    %3053 = vmatpush1.msra.mxu0 0.0
    %3054 = vmatprep.subr.mxu0 0.0
    %3055 = vmatpush1.msra.mxu0 0.0
    %3056 = vmatprep.subr.mxu0 0.0
    %3057 = vmatpush1.msra.mxu0 0.0
    %3058 = vmatprep.subr.mxu0 0.0
    %3059 = vmatpush1.msra.mxu0 0.0
    %3060 = vmatprep.subr.mxu0 0.0
    %3061 = vmatpush1.msra.mxu0 0.0
    %3062 = vmatprep.subr.mxu0 0.0
    %3063 = vmatpush1.msra.mxu0 0.0
    %3064 = vmatprep.subr.mxu0 0.0
    %3065 = vmatpush1.msra.mxu0 %v2985
    %3066 = vmatprep.subr.mxu0 0.0
    %3067 = vmatpush2.msra.mxu0 0.0
    %3068 = vmatprep.subr.mxu0 0.0
    %3069 = vmatpush2.msra.mxu0 0.0
    %3070 = vmatprep.subr.mxu0 0.0
    %3071 = vmatpush2.msra.mxu0 0.0
    %3072 = vmatprep.subr.mxu0 0.0
    %3073 = vmatpush2.msra.mxu0 0.0
    %3074 = vmatprep.subr.mxu0 0.0
    %3075 = vmatpush2.msra.mxu0 0.0
    %3076 = vmatprep.subr.mxu0 0.0
    %3077 = vmatpush2.msra.mxu0 0.0
    %3078 = vmatprep.subr.mxu0 0.0
    %3079 = vmatpush2.msra.mxu0 0.0
    %3080 = vmatprep.subr.mxu0 0.0
    %3081 = vmatpush2.msra.mxu0 0.0
    %3082 = vmatprep.subr.mxu0 0.0
    %3083 = vmatpush2.msra.mxu0 0.0
    %3084 = vmatprep.subr.mxu0 0.0
    %3085 = vmatpush2.msra.mxu0 0.0
    %3086 = vmatprep.subr.mxu0 0.0
    %3087 = vmatpush2.msra.mxu0 0.0
    %3088 = vmatprep.subr.mxu0 0.0
    %3089 = vmatpush2.msra.mxu0 0.0
    %3090 = vmatprep.subr.mxu0 0.0
    %3091 = vmatpush2.msra.mxu0 0.0
    %3092 = vmatprep.subr.mxu0 0.0
    %3093 = vmatpush2.msra.mxu0 0.0
    %3094 = vmatprep.subr.mxu0 0.0
    %3095 = vmatpush2.msra.mxu0 0.0
    %3096 = vmatprep.subr.mxu0 0.0
    %3097 = vmatpush2.msra.mxu0 0.0
    %3098 = vmatprep.mubr.f32.mxu0 0.0
    %3099 = vmatmul.mubr.f32.gmra.mxu0 %v2987
    %v3100 = vpop.f32.mrf.mxu0
    %v3101 = vadd.f32 0.0, %v3100
    %v3102 = vpop.f32.mrf.mxu0
    %3103 = vmatprep.mubr.f32.mxu0 0.0
    %3104 = vmatmul.mubr.f32.gmra.mxu0 %v2990
    %v3105 = vpop.f32.mrf.mxu0
    %v3106 = vadd.f32 0.0, %v3105
    %v3107 = vpop.f32.mrf.mxu0
    %3108 = vmatprep.mubr.f32.mxu0 0.0
    %3109 = vmatmul.mubr.f32.gmra.mxu0 %v2993
    %v3110 = vpop.f32.mrf.mxu0
    %v3111 = vadd.f32 0.0, %v3110
    %v3112 = vpop.f32.mrf.mxu0
    %3113 = vmatprep.mubr.f32.mxu0 0.0
    %3114 = vmatmul.mubr.f32.gmra.mxu0 %v2996
    %v3115 = vpop.f32.mrf.mxu0
    %v3116 = vadd.f32 0.0, %v3115
    %v3117 = vpop.f32.mrf.mxu0
    %3118 = vmatprep.mubr.f32.mxu0 0.0
    %3119 = vmatmul.mubr.f32.gmra.mxu0 %v2999
    %v3120 = vpop.f32.mrf.mxu0
    %v3121 = vadd.f32 0.0, %v3120
    %v3122 = vpop.f32.mrf.mxu0
    %3123 = vmatprep.mubr.f32.mxu0 0.0
    %3124 = vmatmul.mubr.f32.gmra.mxu0 %v3002
    %v3125 = vpop.f32.mrf.mxu0
    %v3126 = vadd.f32 0.0, %v3125
    %v3127 = vpop.f32.mrf.mxu0
    %3128 = vmatprep.mubr.f32.mxu0 0.0
    %3129 = vmatmul.mubr.f32.gmra.mxu0 %v3005
    %v3130 = vpop.f32.mrf.mxu0
    %v3131 = vadd.f32 0.0, %v3130
    %v3132 = vpop.f32.mrf.mxu0
    %3133 = vmatprep.mubr.f32.mxu0 0.0
    %3134 = vmatmul.mubr.f32.gmra.mxu0 %v3008
    %v3135 = vpop.f32.mrf.mxu0
    %v3136 = vadd.f32 0.0, %v3135
    %v3137 = vpop.f32.mrf.mxu0
    %3138 = vmatprep.mubr.f32.mxu0 0.0
    %3139 = vmatmul.mubr.f32.gmra.mxu0 %v3011
    %v3140 = vpop.f32.mrf.mxu0
    %v3141 = vadd.f32 0.0, %v3140
    %v3142 = vpop.f32.mrf.mxu0
    %3143 = vmatprep.mubr.f32.mxu0 0.0
    %3144 = vmatmul.mubr.f32.gmra.mxu0 %v3014
    %v3145 = vpop.f32.mrf.mxu0
    %v3146 = vadd.f32 0.0, %v3145
    %v3147 = vpop.f32.mrf.mxu0
    %3148 = vmatprep.mubr.f32.mxu0 0.0
    %3149 = vmatmul.mubr.f32.gmra.mxu0 %v3017
    %v3150 = vpop.f32.mrf.mxu0
    %v3151 = vadd.f32 0.0, %v3150
    %v3152 = vpop.f32.mrf.mxu0
    %3153 = vmatprep.mubr.f32.mxu0 0.0
    %3154 = vmatmul.mubr.f32.gmra.mxu0 %v3020
    %v3155 = vpop.f32.mrf.mxu0
    %v3156 = vadd.f32 0.0, %v3155
    %v3157 = vpop.f32.mrf.mxu0
    %3158 = vmatprep.mubr.f32.mxu0 0.0
    %3159 = vmatmul.mubr.f32.gmra.mxu0 %v3023
    %v3160 = vpop.f32.mrf.mxu0
    %v3161 = vadd.f32 0.0, %v3160
    %v3162 = vpop.f32.mrf.mxu0
    %3163 = vmatprep.mubr.f32.mxu0 0.0
    %3164 = vmatmul.mubr.f32.gmra.mxu0 %v3026
    %v3165 = vpop.f32.mrf.mxu0
    %v3166 = vadd.f32 0.0, %v3165
    %v3167 = vpop.f32.mrf.mxu0
    %3168 = vmatprep.mubr.f32.mxu0 0.0
    %3169 = vmatmul.mubr.f32.gmra.mxu0 %v3029
    %v3170 = vpop.f32.mrf.mxu0
    %v3171 = vadd.f32 0.0, %v3170
    %v3172 = vpop.f32.mrf.mxu0
    %3173 = vmatprep.mubr.f32.mxu0 0.0
    %3174 = vmatmul.mubr.f32.gmra.mxu0 %v3032
    %v3175 = vpop.f32.mrf.mxu0
    %v3176 = vadd.f32 0.0, %v3175
    %v3177 = vpop.f32.mrf.mxu0
    %3178 = vdwg.mxu0
    %v3179 = vld [vmem:[%s8] sm:$0x1]
    %v3180 = vlaneseq
    %v3181 = vshrl.u32 %v3180, 7
    %v3182 = vsub.s32 0, %v3181
    %v3183 = vrot.slane %v3179, %v3182
    %v3184 = vmul.f32 %v190, %v3183
    %v3185 = vmul.f32 %v193, %v3183
    %v3186 = vmul.f32 %v198, %v3183
    %v3187 = vmul.f32 %v201, %v3183
    %v3188 = vmul.f32 %v206, %v3183
    %v3189 = vmul.f32 %v209, %v3183
    %v3190 = vmul.f32 %v214, %v3183
    %v3191 = vmul.f32 %v217, %v3183
    %v3192 = vmul.f32 %v222, %v3183
    %v3193 = vmul.f32 %v225, %v3183
    %v3194 = vmul.f32 %v230, %v3183
    %v3195 = vmul.f32 %v233, %v3183
    %v3196 = vmul.f32 %v238, %v3183
    %v3197 = vmul.f32 %v241, %v3183
    %v3198 = vmul.f32 %v246, %v3183
    %v3199 = vmul.f32 %v249, %v3183
    %v3200 = vpack.c.bf16 %v3185, %v3184
    %v3201 = vpack.c.bf16 %v3187, %v3186
    %v3202 = vpack.c.bf16 %v3189, %v3188
    %v3203 = vpack.c.bf16 %v3191, %v3190
    %v3204 = vpack.c.bf16 %v3193, %v3192
    %v3205 = vpack.c.bf16 %v3195, %v3194
    %v3206 = vpack.c.bf16 %v3197, %v3196
    %v3207 = vpack.c.bf16 %v3199, %v3198
    %v3216 = vunpack.c.l.b16 %v3200
    %v3217 = vunpack.c.h.b16 %v3200
    %v3218 = vunpack.c.l.b16 %v3201
    %v3219 = vunpack.c.h.b16 %v3201
    %v3220 = vunpack.c.l.b16 %v3202
    %v3221 = vunpack.c.h.b16 %v3202
    %v3222 = vunpack.c.l.b16 %v3203
    %v3223 = vunpack.c.h.b16 %v3203
    %v3224 = vunpack.c.l.b16 %v3204
    %v3225 = vunpack.c.h.b16 %v3204
    %v3226 = vunpack.c.l.b16 %v3205
    %v3227 = vunpack.c.h.b16 %v3205
    %v3228 = vunpack.c.l.b16 %v3206
    %v3229 = vunpack.c.h.b16 %v3206
    %v3230 = vunpack.c.l.b16 %v3207
    %v3231 = vunpack.c.h.b16 %v3207
    %v3232 = vpack.c.b16 %v3216, %v3216
    %v3233 = vpack.c.b16 %v3217, %v3217
    %v3234 = vpack.c.b16 %v3218, %v3218
    %v3235 = vpack.c.b16 %v3219, %v3219
    %v3236 = vpack.c.b16 %v3220, %v3220
    %v3237 = vpack.c.b16 %v3221, %v3221
    %v3238 = vpack.c.b16 %v3222, %v3222
    %v3239 = vpack.c.b16 %v3223, %v3223
    %v3240 = vpack.c.b16 %v3224, %v3224
    %v3241 = vpack.c.b16 %v3225, %v3225
    %v3242 = vpack.c.b16 %v3226, %v3226
    %v3243 = vpack.c.b16 %v3227, %v3227
    %v3244 = vpack.c.b16 %v3228, %v3228
    %v3245 = vpack.c.b16 %v3229, %v3229
    %v3246 = vpack.c.b16 %v3230, %v3230
    %v3247 = vpack.c.b16 %v3231, %v3231
    %vm3264 = vcmask 519168
    %3265 = vst.msk [vmem:[#allocation2] sm:$0xf] %vm3264, %v3232
    %3266 = vst.msk [vmem:[#allocation2 + $0x4] sm:$0xf] %vm3264, %v3233
    %3267 = vst.msk [vmem:[#allocation2 + $0x8] sm:$0xf] %vm3264, %v3234
    %3268 = vst.msk [vmem:[#allocation2 + $0xc] sm:$0xf] %vm3264, %v3235
    %3269 = vst.msk [vmem:[#allocation2 + $0x10] sm:$0xf] %vm3264, %v3236
    %3270 = vst.msk [vmem:[#allocation2 + $0x14] sm:$0xf] %vm3264, %v3237
    %3271 = vst.msk [vmem:[#allocation2 + $0x18] sm:$0xf] %vm3264, %v3238
    %3272 = vst.msk [vmem:[#allocation2 + $0x1c] sm:$0xf] %vm3264, %v3239
    %3273 = vst.msk [vmem:[#allocation2 + $0x20] sm:$0xf] %vm3264, %v3240
    %3274 = vst.msk [vmem:[#allocation2 + $0x24] sm:$0xf] %vm3264, %v3241
    %3275 = vst.msk [vmem:[#allocation2 + $0x28] sm:$0xf] %vm3264, %v3242
    %3276 = vst.msk [vmem:[#allocation2 + $0x2c] sm:$0xf] %vm3264, %v3243
    %3277 = vst.msk [vmem:[#allocation2 + $0x30] sm:$0xf] %vm3264, %v3244
    %3278 = vst.msk [vmem:[#allocation2 + $0x34] sm:$0xf] %vm3264, %v3245
    %3279 = vst.msk [vmem:[#allocation2 + $0x38] sm:$0xf] %vm3264, %v3246
    %3280 = vst.msk [vmem:[#allocation2 + $0x3c] sm:$0xf] %vm3264, %v3247
    %v3281 = vld [vmem:[%s8 + $0x1] sm:$0x1]
    %v3282 = vlaneseq
    %v3283 = vshrl.u32 %v3282, 7
    %v3284 = vsub.s32 0, %v3283
    %v3285 = vrot.slane %v3281, %v3284
    %v3286 = vmul.f32 %v190, %v3285
    %v3287 = vmul.f32 %v193, %v3285
    %v3288 = vmul.f32 %v198, %v3285
    %v3289 = vmul.f32 %v201, %v3285
    %v3290 = vmul.f32 %v206, %v3285
    %v3291 = vmul.f32 %v209, %v3285
    %v3292 = vmul.f32 %v214, %v3285
    %v3293 = vmul.f32 %v217, %v3285
    %v3294 = vmul.f32 %v222, %v3285
    %v3295 = vmul.f32 %v225, %v3285
    %v3296 = vmul.f32 %v230, %v3285
    %v3297 = vmul.f32 %v233, %v3285
    %v3298 = vmul.f32 %v238, %v3285
    %v3299 = vmul.f32 %v241, %v3285
    %v3300 = vmul.f32 %v246, %v3285
    %v3301 = vmul.f32 %v249, %v3285
    %v3302 = vpack.c.bf16 %v3287, %v3286
    %v3303 = vpack.c.bf16 %v3289, %v3288
    %v3304 = vpack.c.bf16 %v3291, %v3290
    %v3305 = vpack.c.bf16 %v3293, %v3292
    %v3306 = vpack.c.bf16 %v3295, %v3294
    %v3307 = vpack.c.bf16 %v3297, %v3296
    %v3308 = vpack.c.bf16 %v3299, %v3298
    %v3309 = vpack.c.bf16 %v3301, %v3300
    %v3318 = vunpack.c.l.b16 %v3302
    %v3319 = vunpack.c.h.b16 %v3302
    %v3320 = vunpack.c.l.b16 %v3303
    %v3321 = vunpack.c.h.b16 %v3303
    %v3322 = vunpack.c.l.b16 %v3304
    %v3323 = vunpack.c.h.b16 %v3304
    %v3324 = vunpack.c.l.b16 %v3305
    %v3325 = vunpack.c.h.b16 %v3305
    %v3326 = vunpack.c.l.b16 %v3306
    %v3327 = vunpack.c.h.b16 %v3306
    %v3328 = vunpack.c.l.b16 %v3307
    %v3329 = vunpack.c.h.b16 %v3307
    %v3330 = vunpack.c.l.b16 %v3308
    %v3331 = vunpack.c.h.b16 %v3308
    %v3332 = vunpack.c.l.b16 %v3309
    %v3333 = vunpack.c.h.b16 %v3309
    %v3334 = vpack.c.b16 %v3318, %v3318
    %v3335 = vpack.c.b16 %v3319, %v3319
    %v3336 = vpack.c.b16 %v3320, %v3320
    %v3337 = vpack.c.b16 %v3321, %v3321
    %v3338 = vpack.c.b16 %v3322, %v3322
    %v3339 = vpack.c.b16 %v3323, %v3323
    %v3340 = vpack.c.b16 %v3324, %v3324
    %v3341 = vpack.c.b16 %v3325, %v3325
    %v3342 = vpack.c.b16 %v3326, %v3326
    %v3343 = vpack.c.b16 %v3327, %v3327
    %v3344 = vpack.c.b16 %v3328, %v3328
    %v3345 = vpack.c.b16 %v3329, %v3329
    %v3346 = vpack.c.b16 %v3330, %v3330
    %v3347 = vpack.c.b16 %v3331, %v3331
    %v3348 = vpack.c.b16 %v3332, %v3332
    %v3349 = vpack.c.b16 %v3333, %v3333
    %3366 = vst.msk [vmem:[#allocation2 + $0x40] sm:$0xf] %vm3264, %v3334
    %3367 = vst.msk [vmem:[#allocation2 + $0x44] sm:$0xf] %vm3264, %v3335
    %3368 = vst.msk [vmem:[#allocation2 + $0x48] sm:$0xf] %vm3264, %v3336
    %3369 = vst.msk [vmem:[#allocation2 + $0x4c] sm:$0xf] %vm3264, %v3337
    %3370 = vst.msk [vmem:[#allocation2 + $0x50] sm:$0xf] %vm3264, %v3338
    %3371 = vst.msk [vmem:[#allocation2 + $0x54] sm:$0xf] %vm3264, %v3339
    %3372 = vst.msk [vmem:[#allocation2 + $0x58] sm:$0xf] %vm3264, %v3340
    %3373 = vst.msk [vmem:[#allocation2 + $0x5c] sm:$0xf] %vm3264, %v3341
    %3374 = vst.msk [vmem:[#allocation2 + $0x60] sm:$0xf] %vm3264, %v3342
    %3375 = vst.msk [vmem:[#allocation2 + $0x64] sm:$0xf] %vm3264, %v3343
    %3376 = vst.msk [vmem:[#allocation2 + $0x68] sm:$0xf] %vm3264, %v3344
    %3377 = vst.msk [vmem:[#allocation2 + $0x6c] sm:$0xf] %vm3264, %v3345
    %3378 = vst.msk [vmem:[#allocation2 + $0x70] sm:$0xf] %vm3264, %v3346
    %3379 = vst.msk [vmem:[#allocation2 + $0x74] sm:$0xf] %vm3264, %v3347
    %3380 = vst.msk [vmem:[#allocation2 + $0x78] sm:$0xf] %vm3264, %v3348
    %3381 = vst.msk [vmem:[#allocation2 + $0x7c] sm:$0xf] %vm3264, %v3349
    %v3382 = vld [vmem:[%s8 + $0x2] sm:$0x1]
    %v3383 = vlaneseq
    %v3384 = vshrl.u32 %v3383, 7
    %v3385 = vsub.s32 0, %v3384
    %v3386 = vrot.slane %v3382, %v3385
    %v3387 = vmul.f32 %v190, %v3386
    %v3388 = vmul.f32 %v193, %v3386
    %v3389 = vmul.f32 %v198, %v3386
    %v3390 = vmul.f32 %v201, %v3386
    %v3391 = vmul.f32 %v206, %v3386
    %v3392 = vmul.f32 %v209, %v3386
    %v3393 = vmul.f32 %v214, %v3386
    %v3394 = vmul.f32 %v217, %v3386
    %v3395 = vmul.f32 %v222, %v3386
    %v3396 = vmul.f32 %v225, %v3386
    %v3397 = vmul.f32 %v230, %v3386
    %v3398 = vmul.f32 %v233, %v3386
    %v3399 = vmul.f32 %v238, %v3386
    %v3400 = vmul.f32 %v241, %v3386
    %v3401 = vmul.f32 %v246, %v3386
    %v3402 = vmul.f32 %v249, %v3386
    %v3403 = vpack.c.bf16 %v3388, %v3387
    %v3404 = vpack.c.bf16 %v3390, %v3389
    %v3405 = vpack.c.bf16 %v3392, %v3391
    %v3406 = vpack.c.bf16 %v3394, %v3393
    %v3407 = vpack.c.bf16 %v3396, %v3395
    %v3408 = vpack.c.bf16 %v3398, %v3397
    %v3409 = vpack.c.bf16 %v3400, %v3399
    %v3410 = vpack.c.bf16 %v3402, %v3401
    %v3419 = vunpack.c.l.b16 %v3403
    %v3420 = vunpack.c.h.b16 %v3403
    %v3421 = vunpack.c.l.b16 %v3404
    %v3422 = vunpack.c.h.b16 %v3404
    %v3423 = vunpack.c.l.b16 %v3405
    %v3424 = vunpack.c.h.b16 %v3405
    %v3425 = vunpack.c.l.b16 %v3406
    %v3426 = vunpack.c.h.b16 %v3406
    %v3427 = vunpack.c.l.b16 %v3407
    %v3428 = vunpack.c.h.b16 %v3407
    %v3429 = vunpack.c.l.b16 %v3408
    %v3430 = vunpack.c.h.b16 %v3408
    %v3431 = vunpack.c.l.b16 %v3409
    %v3432 = vunpack.c.h.b16 %v3409
    %v3433 = vunpack.c.l.b16 %v3410
    %v3434 = vunpack.c.h.b16 %v3410
    %v3435 = vpack.c.b16 %v3419, %v3419
    %v3436 = vpack.c.b16 %v3420, %v3420
    %v3437 = vpack.c.b16 %v3421, %v3421
    %v3438 = vpack.c.b16 %v3422, %v3422
    %v3439 = vpack.c.b16 %v3423, %v3423
    %v3440 = vpack.c.b16 %v3424, %v3424
    %v3441 = vpack.c.b16 %v3425, %v3425
    %v3442 = vpack.c.b16 %v3426, %v3426
    %v3443 = vpack.c.b16 %v3427, %v3427
    %v3444 = vpack.c.b16 %v3428, %v3428
    %v3445 = vpack.c.b16 %v3429, %v3429
    %v3446 = vpack.c.b16 %v3430, %v3430
    %v3447 = vpack.c.b16 %v3431, %v3431
    %v3448 = vpack.c.b16 %v3432, %v3432
    %v3449 = vpack.c.b16 %v3433, %v3433
    %v3450 = vpack.c.b16 %v3434, %v3434
    %3467 = vst.msk [vmem:[#allocation2 + $0x80] sm:$0xf] %vm3264, %v3435
    %3468 = vst.msk [vmem:[#allocation2 + $0x84] sm:$0xf] %vm3264, %v3436
    %3469 = vst.msk [vmem:[#allocation2 + $0x88] sm:$0xf] %vm3264, %v3437
    %3470 = vst.msk [vmem:[#allocation2 + $0x8c] sm:$0xf] %vm3264, %v3438
    %3471 = vst.msk [vmem:[#allocation2 + $0x90] sm:$0xf] %vm3264, %v3439
    %3472 = vst.msk [vmem:[#allocation2 + $0x94] sm:$0xf] %vm3264, %v3440
    %3473 = vst.msk [vmem:[#allocation2 + $0x98] sm:$0xf] %vm3264, %v3441
    %3474 = vst.msk [vmem:[#allocation2 + $0x9c] sm:$0xf] %vm3264, %v3442
    %3475 = vst.msk [vmem:[#allocation2 + $0xa0] sm:$0xf] %vm3264, %v3443
    %3476 = vst.msk [vmem:[#allocation2 + $0xa4] sm:$0xf] %vm3264, %v3444
    %3477 = vst.msk [vmem:[#allocation2 + $0xa8] sm:$0xf] %vm3264, %v3445
    %3478 = vst.msk [vmem:[#allocation2 + $0xac] sm:$0xf] %vm3264, %v3446
    %3479 = vst.msk [vmem:[#allocation2 + $0xb0] sm:$0xf] %vm3264, %v3447
    %3480 = vst.msk [vmem:[#allocation2 + $0xb4] sm:$0xf] %vm3264, %v3448
    %3481 = vst.msk [vmem:[#allocation2 + $0xb8] sm:$0xf] %vm3264, %v3449
    %3482 = vst.msk [vmem:[#allocation2 + $0xbc] sm:$0xf] %vm3264, %v3450
    %v3483 = vld [vmem:[%s8 + $0x3] sm:$0x1]
    %v3484 = vlaneseq
    %v3485 = vshrl.u32 %v3484, 7
    %v3486 = vsub.s32 0, %v3485
    %v3487 = vrot.slane %v3483, %v3486
    %v3488 = vmul.f32 %v190, %v3487
    %v3489 = vmul.f32 %v193, %v3487
    %v3490 = vmul.f32 %v198, %v3487
    %v3491 = vmul.f32 %v201, %v3487
    %v3492 = vmul.f32 %v206, %v3487
    %v3493 = vmul.f32 %v209, %v3487
    %v3494 = vmul.f32 %v214, %v3487
    %v3495 = vmul.f32 %v217, %v3487
    %v3496 = vmul.f32 %v222, %v3487
    %v3497 = vmul.f32 %v225, %v3487
    %v3498 = vmul.f32 %v230, %v3487
    %v3499 = vmul.f32 %v233, %v3487
    %v3500 = vmul.f32 %v238, %v3487
    %v3501 = vmul.f32 %v241, %v3487
    %v3502 = vmul.f32 %v246, %v3487
    %v3503 = vmul.f32 %v249, %v3487
    %v3504 = vpack.c.bf16 %v3489, %v3488
    %v3505 = vpack.c.bf16 %v3491, %v3490
    %v3506 = vpack.c.bf16 %v3493, %v3492
    %v3507 = vpack.c.bf16 %v3495, %v3494
    %v3508 = vpack.c.bf16 %v3497, %v3496
    %v3509 = vpack.c.bf16 %v3499, %v3498
    %v3510 = vpack.c.bf16 %v3501, %v3500
    %v3511 = vpack.c.bf16 %v3503, %v3502
    %v3520 = vunpack.c.l.b16 %v3504
    %v3521 = vunpack.c.h.b16 %v3504
    %v3522 = vunpack.c.l.b16 %v3505
    %v3523 = vunpack.c.h.b16 %v3505
    %v3524 = vunpack.c.l.b16 %v3506
    %v3525 = vunpack.c.h.b16 %v3506
    %v3526 = vunpack.c.l.b16 %v3507
    %v3527 = vunpack.c.h.b16 %v3507
    %v3528 = vunpack.c.l.b16 %v3508
    %v3529 = vunpack.c.h.b16 %v3508
    %v3530 = vunpack.c.l.b16 %v3509
    %v3531 = vunpack.c.h.b16 %v3509
    %v3532 = vunpack.c.l.b16 %v3510
    %v3533 = vunpack.c.h.b16 %v3510
    %v3534 = vunpack.c.l.b16 %v3511
    %v3535 = vunpack.c.h.b16 %v3511
    %v3536 = vpack.c.b16 %v3520, %v3520
    %v3537 = vpack.c.b16 %v3521, %v3521
    %v3538 = vpack.c.b16 %v3522, %v3522
    %v3539 = vpack.c.b16 %v3523, %v3523
    %v3540 = vpack.c.b16 %v3524, %v3524
    %v3541 = vpack.c.b16 %v3525, %v3525
    %v3542 = vpack.c.b16 %v3526, %v3526
    %v3543 = vpack.c.b16 %v3527, %v3527
    %v3544 = vpack.c.b16 %v3528, %v3528
    %v3545 = vpack.c.b16 %v3529, %v3529
    %v3546 = vpack.c.b16 %v3530, %v3530
    %v3547 = vpack.c.b16 %v3531, %v3531
    %v3548 = vpack.c.b16 %v3532, %v3532
    %v3549 = vpack.c.b16 %v3533, %v3533
    %v3550 = vpack.c.b16 %v3534, %v3534
    %v3551 = vpack.c.b16 %v3535, %v3535
    %3568 = vst.msk [vmem:[#allocation2 + $0xc0] sm:$0xf] %vm3264, %v3536
    %3569 = vst.msk [vmem:[#allocation2 + $0xc4] sm:$0xf] %vm3264, %v3537
    %3570 = vst.msk [vmem:[#allocation2 + $0xc8] sm:$0xf] %vm3264, %v3538
    %3571 = vst.msk [vmem:[#allocation2 + $0xcc] sm:$0xf] %vm3264, %v3539
    %3572 = vst.msk [vmem:[#allocation2 + $0xd0] sm:$0xf] %vm3264, %v3540
    %3573 = vst.msk [vmem:[#allocation2 + $0xd4] sm:$0xf] %vm3264, %v3541
    %3574 = vst.msk [vmem:[#allocation2 + $0xd8] sm:$0xf] %vm3264, %v3542
    %3575 = vst.msk [vmem:[#allocation2 + $0xdc] sm:$0xf] %vm3264, %v3543
    %3576 = vst.msk [vmem:[#allocation2 + $0xe0] sm:$0xf] %vm3264, %v3544
    %3577 = vst.msk [vmem:[#allocation2 + $0xe4] sm:$0xf] %vm3264, %v3545
    %3578 = vst.msk [vmem:[#allocation2 + $0xe8] sm:$0xf] %vm3264, %v3546
    %3579 = vst.msk [vmem:[#allocation2 + $0xec] sm:$0xf] %vm3264, %v3547
    %3580 = vst.msk [vmem:[#allocation2 + $0xf0] sm:$0xf] %vm3264, %v3548
    %3581 = vst.msk [vmem:[#allocation2 + $0xf4] sm:$0xf] %vm3264, %v3549
    %3582 = vst.msk [vmem:[#allocation2 + $0xf8] sm:$0xf] %vm3264, %v3550
    %3583 = vst.msk [vmem:[#allocation2 + $0xfc] sm:$0xf] %vm3264, %v3551
    %v3584 = vld [vmem:[%s8 + $0x4] sm:$0x1]
    %v3585 = vlaneseq
    %v3586 = vshrl.u32 %v3585, 7
    %v3587 = vsub.s32 0, %v3586
    %v3588 = vrot.slane %v3584, %v3587
    %v3589 = vmul.f32 %v190, %v3588
    %v3590 = vmul.f32 %v193, %v3588
    %v3591 = vmul.f32 %v198, %v3588
    %v3592 = vmul.f32 %v201, %v3588
    %v3593 = vmul.f32 %v206, %v3588
    %v3594 = vmul.f32 %v209, %v3588
    %v3595 = vmul.f32 %v214, %v3588
    %v3596 = vmul.f32 %v217, %v3588
    %v3597 = vmul.f32 %v222, %v3588
    %v3598 = vmul.f32 %v225, %v3588
    %v3599 = vmul.f32 %v230, %v3588
    %v3600 = vmul.f32 %v233, %v3588
    %v3601 = vmul.f32 %v238, %v3588
    %v3602 = vmul.f32 %v241, %v3588
    %v3603 = vmul.f32 %v246, %v3588
    %v3604 = vmul.f32 %v249, %v3588
    %v3605 = vpack.c.bf16 %v3590, %v3589
    %v3606 = vpack.c.bf16 %v3592, %v3591
    %v3607 = vpack.c.bf16 %v3594, %v3593
    %v3608 = vpack.c.bf16 %v3596, %v3595
    %v3609 = vpack.c.bf16 %v3598, %v3597
    %v3610 = vpack.c.bf16 %v3600, %v3599
    %v3611 = vpack.c.bf16 %v3602, %v3601
    %v3612 = vpack.c.bf16 %v3604, %v3603
    %v3621 = vunpack.c.l.b16 %v3605
    %v3622 = vunpack.c.h.b16 %v3605
    %v3623 = vunpack.c.l.b16 %v3606
    %v3624 = vunpack.c.h.b16 %v3606
    %v3625 = vunpack.c.l.b16 %v3607
    %v3626 = vunpack.c.h.b16 %v3607
    %v3627 = vunpack.c.l.b16 %v3608
    %v3628 = vunpack.c.h.b16 %v3608
    %v3629 = vunpack.c.l.b16 %v3609
    %v3630 = vunpack.c.h.b16 %v3609
    %v3631 = vunpack.c.l.b16 %v3610
    %v3632 = vunpack.c.h.b16 %v3610
    %v3633 = vunpack.c.l.b16 %v3611
    %v3634 = vunpack.c.h.b16 %v3611
    %v3635 = vunpack.c.l.b16 %v3612
    %v3636 = vunpack.c.h.b16 %v3612
    %v3637 = vpack.c.b16 %v3621, %v3621
    %v3638 = vpack.c.b16 %v3622, %v3622
    %v3639 = vpack.c.b16 %v3623, %v3623
    %v3640 = vpack.c.b16 %v3624, %v3624
    %v3641 = vpack.c.b16 %v3625, %v3625
    %v3642 = vpack.c.b16 %v3626, %v3626
    %v3643 = vpack.c.b16 %v3627, %v3627
    %v3644 = vpack.c.b16 %v3628, %v3628
    %v3645 = vpack.c.b16 %v3629, %v3629
    %v3646 = vpack.c.b16 %v3630, %v3630
    %v3647 = vpack.c.b16 %v3631, %v3631
    %v3648 = vpack.c.b16 %v3632, %v3632
    %v3649 = vpack.c.b16 %v3633, %v3633
    %v3650 = vpack.c.b16 %v3634, %v3634
    %v3651 = vpack.c.b16 %v3635, %v3635
    %v3652 = vpack.c.b16 %v3636, %v3636
    %3669 = vst.msk [vmem:[#allocation2 + $0x100] sm:$0xf] %vm3264, %v3637
    %3670 = vst.msk [vmem:[#allocation2 + $0x104] sm:$0xf] %vm3264, %v3638
    %3671 = vst.msk [vmem:[#allocation2 + $0x108] sm:$0xf] %vm3264, %v3639
    %3672 = vst.msk [vmem:[#allocation2 + $0x10c] sm:$0xf] %vm3264, %v3640
    %3673 = vst.msk [vmem:[#allocation2 + $0x110] sm:$0xf] %vm3264, %v3641
    %3674 = vst.msk [vmem:[#allocation2 + $0x114] sm:$0xf] %vm3264, %v3642
    %3675 = vst.msk [vmem:[#allocation2 + $0x118] sm:$0xf] %vm3264, %v3643
    %3676 = vst.msk [vmem:[#allocation2 + $0x11c] sm:$0xf] %vm3264, %v3644
    %3677 = vst.msk [vmem:[#allocation2 + $0x120] sm:$0xf] %vm3264, %v3645
    %3678 = vst.msk [vmem:[#allocation2 + $0x124] sm:$0xf] %vm3264, %v3646
    %3679 = vst.msk [vmem:[#allocation2 + $0x128] sm:$0xf] %vm3264, %v3647
    %3680 = vst.msk [vmem:[#allocation2 + $0x12c] sm:$0xf] %vm3264, %v3648
    %3681 = vst.msk [vmem:[#allocation2 + $0x130] sm:$0xf] %vm3264, %v3649
    %3682 = vst.msk [vmem:[#allocation2 + $0x134] sm:$0xf] %vm3264, %v3650
    %3683 = vst.msk [vmem:[#allocation2 + $0x138] sm:$0xf] %vm3264, %v3651
    %3684 = vst.msk [vmem:[#allocation2 + $0x13c] sm:$0xf] %vm3264, %v3652
    %v3685 = vld [vmem:[%s8 + $0x5] sm:$0x1]
    %v3686 = vlaneseq
    %v3687 = vshrl.u32 %v3686, 7
    %v3688 = vsub.s32 0, %v3687
    %v3689 = vrot.slane %v3685, %v3688
    %v3690 = vmul.f32 %v190, %v3689
    %v3691 = vmul.f32 %v193, %v3689
    %v3692 = vmul.f32 %v198, %v3689
    %v3693 = vmul.f32 %v201, %v3689
    %v3694 = vmul.f32 %v206, %v3689
    %v3695 = vmul.f32 %v209, %v3689
    %v3696 = vmul.f32 %v214, %v3689
    %v3697 = vmul.f32 %v217, %v3689
    %v3698 = vmul.f32 %v222, %v3689
    %v3699 = vmul.f32 %v225, %v3689
    %v3700 = vmul.f32 %v230, %v3689
    %v3701 = vmul.f32 %v233, %v3689
    %v3702 = vmul.f32 %v238, %v3689
    %v3703 = vmul.f32 %v241, %v3689
    %v3704 = vmul.f32 %v246, %v3689
    %v3705 = vmul.f32 %v249, %v3689
    %v3706 = vpack.c.bf16 %v3691, %v3690
    %v3707 = vpack.c.bf16 %v3693, %v3692
    %v3708 = vpack.c.bf16 %v3695, %v3694
    %v3709 = vpack.c.bf16 %v3697, %v3696
    %v3710 = vpack.c.bf16 %v3699, %v3698
    %v3711 = vpack.c.bf16 %v3701, %v3700
    %v3712 = vpack.c.bf16 %v3703, %v3702
    %v3713 = vpack.c.bf16 %v3705, %v3704
    %v3722 = vunpack.c.l.b16 %v3706
    %v3723 = vunpack.c.h.b16 %v3706
    %v3724 = vunpack.c.l.b16 %v3707
    %v3725 = vunpack.c.h.b16 %v3707
    %v3726 = vunpack.c.l.b16 %v3708
    %v3727 = vunpack.c.h.b16 %v3708
    %v3728 = vunpack.c.l.b16 %v3709
    %v3729 = vunpack.c.h.b16 %v3709
    %v3730 = vunpack.c.l.b16 %v3710
    %v3731 = vunpack.c.h.b16 %v3710
    %v3732 = vunpack.c.l.b16 %v3711
    %v3733 = vunpack.c.h.b16 %v3711
    %v3734 = vunpack.c.l.b16 %v3712
    %v3735 = vunpack.c.h.b16 %v3712
    %v3736 = vunpack.c.l.b16 %v3713
    %v3737 = vunpack.c.h.b16 %v3713
    %v3738 = vpack.c.b16 %v3722, %v3722
    %v3739 = vpack.c.b16 %v3723, %v3723
    %v3740 = vpack.c.b16 %v3724, %v3724
    %v3741 = vpack.c.b16 %v3725, %v3725
    %v3742 = vpack.c.b16 %v3726, %v3726
    %v3743 = vpack.c.b16 %v3727, %v3727
    %v3744 = vpack.c.b16 %v3728, %v3728
    %v3745 = vpack.c.b16 %v3729, %v3729
    %v3746 = vpack.c.b16 %v3730, %v3730
    %v3747 = vpack.c.b16 %v3731, %v3731
    %v3748 = vpack.c.b16 %v3732, %v3732
    %v3749 = vpack.c.b16 %v3733, %v3733
    %v3750 = vpack.c.b16 %v3734, %v3734
    %v3751 = vpack.c.b16 %v3735, %v3735
    %v3752 = vpack.c.b16 %v3736, %v3736
    %v3753 = vpack.c.b16 %v3737, %v3737
    %3770 = vst.msk [vmem:[#allocation2 + $0x140] sm:$0xf] %vm3264, %v3738
    %3771 = vst.msk [vmem:[#allocation2 + $0x144] sm:$0xf] %vm3264, %v3739
    %3772 = vst.msk [vmem:[#allocation2 + $0x148] sm:$0xf] %vm3264, %v3740
    %3773 = vst.msk [vmem:[#allocation2 + $0x14c] sm:$0xf] %vm3264, %v3741
    %3774 = vst.msk [vmem:[#allocation2 + $0x150] sm:$0xf] %vm3264, %v3742
    %3775 = vst.msk [vmem:[#allocation2 + $0x154] sm:$0xf] %vm3264, %v3743
    %3776 = vst.msk [vmem:[#allocation2 + $0x158] sm:$0xf] %vm3264, %v3744
    %3777 = vst.msk [vmem:[#allocation2 + $0x15c] sm:$0xf] %vm3264, %v3745
    %3778 = vst.msk [vmem:[#allocation2 + $0x160] sm:$0xf] %vm3264, %v3746
    %3779 = vst.msk [vmem:[#allocation2 + $0x164] sm:$0xf] %vm3264, %v3747
    %3780 = vst.msk [vmem:[#allocation2 + $0x168] sm:$0xf] %vm3264, %v3748
    %3781 = vst.msk [vmem:[#allocation2 + $0x16c] sm:$0xf] %vm3264, %v3749
    %3782 = vst.msk [vmem:[#allocation2 + $0x170] sm:$0xf] %vm3264, %v3750
    %3783 = vst.msk [vmem:[#allocation2 + $0x174] sm:$0xf] %vm3264, %v3751
    %3784 = vst.msk [vmem:[#allocation2 + $0x178] sm:$0xf] %vm3264, %v3752
    %3785 = vst.msk [vmem:[#allocation2 + $0x17c] sm:$0xf] %vm3264, %v3753
    %v3786 = vld [vmem:[%s8 + $0x6] sm:$0x1]
    %v3787 = vlaneseq
    %v3788 = vshrl.u32 %v3787, 7
    %v3789 = vsub.s32 0, %v3788
    %v3790 = vrot.slane %v3786, %v3789
    %v3791 = vmul.f32 %v190, %v3790
    %v3792 = vmul.f32 %v193, %v3790
    %v3793 = vmul.f32 %v198, %v3790
    %v3794 = vmul.f32 %v201, %v3790
    %v3795 = vmul.f32 %v206, %v3790
    %v3796 = vmul.f32 %v209, %v3790
    %v3797 = vmul.f32 %v214, %v3790
    %v3798 = vmul.f32 %v217, %v3790
    %v3799 = vmul.f32 %v222, %v3790
    %v3800 = vmul.f32 %v225, %v3790
    %v3801 = vmul.f32 %v230, %v3790
    %v3802 = vmul.f32 %v233, %v3790
    %v3803 = vmul.f32 %v238, %v3790
    %v3804 = vmul.f32 %v241, %v3790
    %v3805 = vmul.f32 %v246, %v3790
    %v3806 = vmul.f32 %v249, %v3790
    %v3807 = vpack.c.bf16 %v3792, %v3791
    %v3808 = vpack.c.bf16 %v3794, %v3793
    %v3809 = vpack.c.bf16 %v3796, %v3795
    %v3810 = vpack.c.bf16 %v3798, %v3797
    %v3811 = vpack.c.bf16 %v3800, %v3799
    %v3812 = vpack.c.bf16 %v3802, %v3801
    %v3813 = vpack.c.bf16 %v3804, %v3803
    %v3814 = vpack.c.bf16 %v3806, %v3805
    %v3823 = vunpack.c.l.b16 %v3807
    %v3824 = vunpack.c.h.b16 %v3807
    %v3825 = vunpack.c.l.b16 %v3808
    %v3826 = vunpack.c.h.b16 %v3808
    %v3827 = vunpack.c.l.b16 %v3809
    %v3828 = vunpack.c.h.b16 %v3809
    %v3829 = vunpack.c.l.b16 %v3810
    %v3830 = vunpack.c.h.b16 %v3810
    %v3831 = vunpack.c.l.b16 %v3811
    %v3832 = vunpack.c.h.b16 %v3811
    %v3833 = vunpack.c.l.b16 %v3812
    %v3834 = vunpack.c.h.b16 %v3812
    %v3835 = vunpack.c.l.b16 %v3813
    %v3836 = vunpack.c.h.b16 %v3813
    %v3837 = vunpack.c.l.b16 %v3814
    %v3838 = vunpack.c.h.b16 %v3814
    %v3839 = vpack.c.b16 %v3823, %v3823
    %v3840 = vpack.c.b16 %v3824, %v3824
    %v3841 = vpack.c.b16 %v3825, %v3825
    %v3842 = vpack.c.b16 %v3826, %v3826
    %v3843 = vpack.c.b16 %v3827, %v3827
    %v3844 = vpack.c.b16 %v3828, %v3828
    %v3845 = vpack.c.b16 %v3829, %v3829
    %v3846 = vpack.c.b16 %v3830, %v3830
    %v3847 = vpack.c.b16 %v3831, %v3831
    %v3848 = vpack.c.b16 %v3832, %v3832
    %v3849 = vpack.c.b16 %v3833, %v3833
    %v3850 = vpack.c.b16 %v3834, %v3834
    %v3851 = vpack.c.b16 %v3835, %v3835
    %v3852 = vpack.c.b16 %v3836, %v3836
    %v3853 = vpack.c.b16 %v3837, %v3837
    %v3854 = vpack.c.b16 %v3838, %v3838
    %3871 = vst.msk [vmem:[#allocation2 + $0x180] sm:$0xf] %vm3264, %v3839
    %3872 = vst.msk [vmem:[#allocation2 + $0x184] sm:$0xf] %vm3264, %v3840
    %3873 = vst.msk [vmem:[#allocation2 + $0x188] sm:$0xf] %vm3264, %v3841
    %3874 = vst.msk [vmem:[#allocation2 + $0x18c] sm:$0xf] %vm3264, %v3842
    %3875 = vst.msk [vmem:[#allocation2 + $0x190] sm:$0xf] %vm3264, %v3843
    %3876 = vst.msk [vmem:[#allocation2 + $0x194] sm:$0xf] %vm3264, %v3844
    %3877 = vst.msk [vmem:[#allocation2 + $0x198] sm:$0xf] %vm3264, %v3845
    %3878 = vst.msk [vmem:[#allocation2 + $0x19c] sm:$0xf] %vm3264, %v3846
    %3879 = vst.msk [vmem:[#allocation2 + $0x1a0] sm:$0xf] %vm3264, %v3847
    %3880 = vst.msk [vmem:[#allocation2 + $0x1a4] sm:$0xf] %vm3264, %v3848
    %3881 = vst.msk [vmem:[#allocation2 + $0x1a8] sm:$0xf] %vm3264, %v3849
    %3882 = vst.msk [vmem:[#allocation2 + $0x1ac] sm:$0xf] %vm3264, %v3850
    %3883 = vst.msk [vmem:[#allocation2 + $0x1b0] sm:$0xf] %vm3264, %v3851
    %3884 = vst.msk [vmem:[#allocation2 + $0x1b4] sm:$0xf] %vm3264, %v3852
    %3885 = vst.msk [vmem:[#allocation2 + $0x1b8] sm:$0xf] %vm3264, %v3853
    %3886 = vst.msk [vmem:[#allocation2 + $0x1bc] sm:$0xf] %vm3264, %v3854
    %v3887 = vld [vmem:[%s8 + $0x7] sm:$0x1]
    %v3888 = vlaneseq
    %v3889 = vshrl.u32 %v3888, 7
    %v3890 = vsub.s32 0, %v3889
    %v3891 = vrot.slane %v3887, %v3890
    %v3892 = vmul.f32 %v190, %v3891
    %v3893 = vmul.f32 %v193, %v3891
    %v3894 = vmul.f32 %v198, %v3891
    %v3895 = vmul.f32 %v201, %v3891
    %v3896 = vmul.f32 %v206, %v3891
    %v3897 = vmul.f32 %v209, %v3891
    %v3898 = vmul.f32 %v214, %v3891
    %v3899 = vmul.f32 %v217, %v3891
    %v3900 = vmul.f32 %v222, %v3891
    %v3901 = vmul.f32 %v225, %v3891
    %v3902 = vmul.f32 %v230, %v3891
    %v3903 = vmul.f32 %v233, %v3891
    %v3904 = vmul.f32 %v238, %v3891
    %v3905 = vmul.f32 %v241, %v3891
    %v3906 = vmul.f32 %v246, %v3891
    %v3907 = vmul.f32 %v249, %v3891
    %v3908 = vpack.c.bf16 %v3893, %v3892
    %v3909 = vpack.c.bf16 %v3895, %v3894
    %v3910 = vpack.c.bf16 %v3897, %v3896
    %v3911 = vpack.c.bf16 %v3899, %v3898
    %v3912 = vpack.c.bf16 %v3901, %v3900
    %v3913 = vpack.c.bf16 %v3903, %v3902
    %v3914 = vpack.c.bf16 %v3905, %v3904
    %v3915 = vpack.c.bf16 %v3907, %v3906
    %v3924 = vunpack.c.l.b16 %v3908
    %v3925 = vunpack.c.h.b16 %v3908
    %v3926 = vunpack.c.l.b16 %v3909
    %v3927 = vunpack.c.h.b16 %v3909
    %v3928 = vunpack.c.l.b16 %v3910
    %v3929 = vunpack.c.h.b16 %v3910
    %v3930 = vunpack.c.l.b16 %v3911
    %v3931 = vunpack.c.h.b16 %v3911
    %v3932 = vunpack.c.l.b16 %v3912
    %v3933 = vunpack.c.h.b16 %v3912
    %v3934 = vunpack.c.l.b16 %v3913
    %v3935 = vunpack.c.h.b16 %v3913
    %v3936 = vunpack.c.l.b16 %v3914
    %v3937 = vunpack.c.h.b16 %v3914
    %v3938 = vunpack.c.l.b16 %v3915
    %v3939 = vunpack.c.h.b16 %v3915
    %v3940 = vpack.c.b16 %v3924, %v3924
    %v3941 = vpack.c.b16 %v3925, %v3925
    %v3942 = vpack.c.b16 %v3926, %v3926
    %v3943 = vpack.c.b16 %v3927, %v3927
    %v3944 = vpack.c.b16 %v3928, %v3928
    %v3945 = vpack.c.b16 %v3929, %v3929
    %v3946 = vpack.c.b16 %v3930, %v3930
    %v3947 = vpack.c.b16 %v3931, %v3931
    %v3948 = vpack.c.b16 %v3932, %v3932
    %v3949 = vpack.c.b16 %v3933, %v3933
    %v3950 = vpack.c.b16 %v3934, %v3934
    %v3951 = vpack.c.b16 %v3935, %v3935
    %v3952 = vpack.c.b16 %v3936, %v3936
    %v3953 = vpack.c.b16 %v3937, %v3937
    %v3954 = vpack.c.b16 %v3938, %v3938
    %v3955 = vpack.c.b16 %v3939, %v3939
    %3972 = vst.msk [vmem:[#allocation2 + $0x1c0] sm:$0xf] %vm3264, %v3940
    %3973 = vst.msk [vmem:[#allocation2 + $0x1c4] sm:$0xf] %vm3264, %v3941
    %3974 = vst.msk [vmem:[#allocation2 + $0x1c8] sm:$0xf] %vm3264, %v3942
    %3975 = vst.msk [vmem:[#allocation2 + $0x1cc] sm:$0xf] %vm3264, %v3943
    %3976 = vst.msk [vmem:[#allocation2 + $0x1d0] sm:$0xf] %vm3264, %v3944
    %3977 = vst.msk [vmem:[#allocation2 + $0x1d4] sm:$0xf] %vm3264, %v3945
    %3978 = vst.msk [vmem:[#allocation2 + $0x1d8] sm:$0xf] %vm3264, %v3946
    %3979 = vst.msk [vmem:[#allocation2 + $0x1dc] sm:$0xf] %vm3264, %v3947
    %3980 = vst.msk [vmem:[#allocation2 + $0x1e0] sm:$0xf] %vm3264, %v3948
    %3981 = vst.msk [vmem:[#allocation2 + $0x1e4] sm:$0xf] %vm3264, %v3949
    %3982 = vst.msk [vmem:[#allocation2 + $0x1e8] sm:$0xf] %vm3264, %v3950
    %3983 = vst.msk [vmem:[#allocation2 + $0x1ec] sm:$0xf] %vm3264, %v3951
    %3984 = vst.msk [vmem:[#allocation2 + $0x1f0] sm:$0xf] %vm3264, %v3952
    %3985 = vst.msk [vmem:[#allocation2 + $0x1f4] sm:$0xf] %vm3264, %v3953
    %3986 = vst.msk [vmem:[#allocation2 + $0x1f8] sm:$0xf] %vm3264, %v3954
    %3987 = vst.msk [vmem:[#allocation2 + $0x1fc] sm:$0xf] %vm3264, %v3955
    %v3988 = vld [vmem:[#allocation2] sm:$0xf]
    %v3989 = vld [vmem:[#allocation2 + $0x4] sm:$0xf]
    %v3990 = vld [vmem:[#allocation2 + $0x8] sm:$0xf]
    %v3991 = vld [vmem:[#allocation2 + $0xc] sm:$0xf]
    %v3992 = vld [vmem:[#allocation2 + $0x10] sm:$0xf]
    %v3993 = vld [vmem:[#allocation2 + $0x14] sm:$0xf]
    %v3994 = vld [vmem:[#allocation2 + $0x18] sm:$0xf]
    %v3995 = vld [vmem:[#allocation2 + $0x1c] sm:$0xf]
    %v3996 = vld [vmem:[#allocation2 + $0x20] sm:$0xf]
    %v3997 = vld [vmem:[#allocation2 + $0x24] sm:$0xf]
    %v3998 = vld [vmem:[#allocation2 + $0x28] sm:$0xf]
    %v3999 = vld [vmem:[#allocation2 + $0x2c] sm:$0xf]
    %v4000 = vld [vmem:[#allocation2 + $0x30] sm:$0xf]
    %v4001 = vld [vmem:[#allocation2 + $0x34] sm:$0xf]
    %v4002 = vld [vmem:[#allocation2 + $0x38] sm:$0xf]
    %v4003 = vld [vmem:[#allocation2 + $0x3c] sm:$0xf]
    %v4004 = vld [vmem:[#allocation2 + $0x40] sm:$0xf]
    %v4005 = vld [vmem:[#allocation2 + $0x44] sm:$0xf]
    %v4006 = vld [vmem:[#allocation2 + $0x48] sm:$0xf]
    %v4007 = vld [vmem:[#allocation2 + $0x4c] sm:$0xf]
    %v4008 = vld [vmem:[#allocation2 + $0x50] sm:$0xf]
    %v4009 = vld [vmem:[#allocation2 + $0x54] sm:$0xf]
    %v4010 = vld [vmem:[#allocation2 + $0x58] sm:$0xf]
    %v4011 = vld [vmem:[#allocation2 + $0x5c] sm:$0xf]
    %v4012 = vld [vmem:[#allocation2 + $0x60] sm:$0xf]
    %v4013 = vld [vmem:[#allocation2 + $0x64] sm:$0xf]
    %v4014 = vld [vmem:[#allocation2 + $0x68] sm:$0xf]
    %v4015 = vld [vmem:[#allocation2 + $0x6c] sm:$0xf]
    %v4016 = vld [vmem:[#allocation2 + $0x70] sm:$0xf]
    %v4017 = vld [vmem:[#allocation2 + $0x74] sm:$0xf]
    %v4018 = vld [vmem:[#allocation2 + $0x78] sm:$0xf]
    %v4019 = vld [vmem:[#allocation2 + $0x7c] sm:$0xf]
    %v4020 = vld [vmem:[#allocation2 + $0x80] sm:$0xf]
    %v4021 = vld [vmem:[#allocation2 + $0x84] sm:$0xf]
    %v4022 = vld [vmem:[#allocation2 + $0x88] sm:$0xf]
    %v4023 = vld [vmem:[#allocation2 + $0x8c] sm:$0xf]
    %v4024 = vld [vmem:[#allocation2 + $0x90] sm:$0xf]
    %v4025 = vld [vmem:[#allocation2 + $0x94] sm:$0xf]
    %v4026 = vld [vmem:[#allocation2 + $0x98] sm:$0xf]
    %v4027 = vld [vmem:[#allocation2 + $0x9c] sm:$0xf]
    %v4028 = vld [vmem:[#allocation2 + $0xa0] sm:$0xf]
    %v4029 = vld [vmem:[#allocation2 + $0xa4] sm:$0xf]
    %v4030 = vld [vmem:[#allocation2 + $0xa8] sm:$0xf]
    %v4031 = vld [vmem:[#allocation2 + $0xac] sm:$0xf]
    %v4032 = vld [vmem:[#allocation2 + $0xb0] sm:$0xf]
    %v4033 = vld [vmem:[#allocation2 + $0xb4] sm:$0xf]
    %v4034 = vld [vmem:[#allocation2 + $0xb8] sm:$0xf]
    %v4035 = vld [vmem:[#allocation2 + $0xbc] sm:$0xf]
    %v4036 = vld [vmem:[#allocation2 + $0xc0] sm:$0xf]
    %v4037 = vld [vmem:[#allocation2 + $0xc4] sm:$0xf]
    %v4038 = vld [vmem:[#allocation2 + $0xc8] sm:$0xf]
    %v4039 = vld [vmem:[#allocation2 + $0xcc] sm:$0xf]
    %v4040 = vld [vmem:[#allocation2 + $0xd0] sm:$0xf]
    %v4041 = vld [vmem:[#allocation2 + $0xd4] sm:$0xf]
    %v4042 = vld [vmem:[#allocation2 + $0xd8] sm:$0xf]
    %v4043 = vld [vmem:[#allocation2 + $0xdc] sm:$0xf]
    %v4044 = vld [vmem:[#allocation2 + $0xe0] sm:$0xf]
    %v4045 = vld [vmem:[#allocation2 + $0xe4] sm:$0xf]
    %v4046 = vld [vmem:[#allocation2 + $0xe8] sm:$0xf]
    %v4047 = vld [vmem:[#allocation2 + $0xec] sm:$0xf]
    %v4048 = vld [vmem:[#allocation2 + $0xf0] sm:$0xf]
    %v4049 = vld [vmem:[#allocation2 + $0xf4] sm:$0xf]
    %v4050 = vld [vmem:[#allocation2 + $0xf8] sm:$0xf]
    %v4051 = vld [vmem:[#allocation2 + $0xfc] sm:$0xf]
    %v4052 = vld [vmem:[#allocation2 + $0x100] sm:$0xf]
    %v4053 = vld [vmem:[#allocation2 + $0x104] sm:$0xf]
    %v4054 = vld [vmem:[#allocation2 + $0x108] sm:$0xf]
    %v4055 = vld [vmem:[#allocation2 + $0x10c] sm:$0xf]
    %v4056 = vld [vmem:[#allocation2 + $0x110] sm:$0xf]
    %v4057 = vld [vmem:[#allocation2 + $0x114] sm:$0xf]
    %v4058 = vld [vmem:[#allocation2 + $0x118] sm:$0xf]
    %v4059 = vld [vmem:[#allocation2 + $0x11c] sm:$0xf]
    %v4060 = vld [vmem:[#allocation2 + $0x120] sm:$0xf]
    %v4061 = vld [vmem:[#allocation2 + $0x124] sm:$0xf]
    %v4062 = vld [vmem:[#allocation2 + $0x128] sm:$0xf]
    %v4063 = vld [vmem:[#allocation2 + $0x12c] sm:$0xf]
    %v4064 = vld [vmem:[#allocation2 + $0x130] sm:$0xf]
    %v4065 = vld [vmem:[#allocation2 + $0x134] sm:$0xf]
    %v4066 = vld [vmem:[#allocation2 + $0x138] sm:$0xf]
    %v4067 = vld [vmem:[#allocation2 + $0x13c] sm:$0xf]
    %v4068 = vld [vmem:[#allocation2 + $0x140] sm:$0xf]
    %v4069 = vld [vmem:[#allocation2 + $0x144] sm:$0xf]
    %v4070 = vld [vmem:[#allocation2 + $0x148] sm:$0xf]
    %v4071 = vld [vmem:[#allocation2 + $0x14c] sm:$0xf]
    %v4072 = vld [vmem:[#allocation2 + $0x150] sm:$0xf]
    %v4073 = vld [vmem:[#allocation2 + $0x154] sm:$0xf]
    %v4074 = vld [vmem:[#allocation2 + $0x158] sm:$0xf]
    %v4075 = vld [vmem:[#allocation2 + $0x15c] sm:$0xf]
    %v4076 = vld [vmem:[#allocation2 + $0x160] sm:$0xf]
    %v4077 = vld [vmem:[#allocation2 + $0x164] sm:$0xf]
    %v4078 = vld [vmem:[#allocation2 + $0x168] sm:$0xf]
    %v4079 = vld [vmem:[#allocation2 + $0x16c] sm:$0xf]
    %v4080 = vld [vmem:[#allocation2 + $0x170] sm:$0xf]
    %v4081 = vld [vmem:[#allocation2 + $0x174] sm:$0xf]
    %v4082 = vld [vmem:[#allocation2 + $0x178] sm:$0xf]
    %v4083 = vld [vmem:[#allocation2 + $0x17c] sm:$0xf]
    %v4084 = vld [vmem:[#allocation2 + $0x180] sm:$0xf]
    %v4085 = vld [vmem:[#allocation2 + $0x184] sm:$0xf]
    %v4086 = vld [vmem:[#allocation2 + $0x188] sm:$0xf]
    %v4087 = vld [vmem:[#allocation2 + $0x18c] sm:$0xf]
    %v4088 = vld [vmem:[#allocation2 + $0x190] sm:$0xf]
    %v4089 = vld [vmem:[#allocation2 + $0x194] sm:$0xf]
    %v4090 = vld [vmem:[#allocation2 + $0x198] sm:$0xf]
    %v4091 = vld [vmem:[#allocation2 + $0x19c] sm:$0xf]
    %v4092 = vld [vmem:[#allocation2 + $0x1a0] sm:$0xf]
    %v4093 = vld [vmem:[#allocation2 + $0x1a4] sm:$0xf]
    %v4094 = vld [vmem:[#allocation2 + $0x1a8] sm:$0xf]
    %v4095 = vld [vmem:[#allocation2 + $0x1ac] sm:$0xf]
    %v4096 = vld [vmem:[#allocation2 + $0x1b0] sm:$0xf]
    %v4097 = vld [vmem:[#allocation2 + $0x1b4] sm:$0xf]
    %v4098 = vld [vmem:[#allocation2 + $0x1b8] sm:$0xf]
    %v4099 = vld [vmem:[#allocation2 + $0x1bc] sm:$0xf]
    %v4100 = vld [vmem:[#allocation2 + $0x1c0] sm:$0xf]
    %v4101 = vld [vmem:[#allocation2 + $0x1c4] sm:$0xf]
    %v4102 = vld [vmem:[#allocation2 + $0x1c8] sm:$0xf]
    %v4103 = vld [vmem:[#allocation2 + $0x1cc] sm:$0xf]
    %v4104 = vld [vmem:[#allocation2 + $0x1d0] sm:$0xf]
    %v4105 = vld [vmem:[#allocation2 + $0x1d4] sm:$0xf]
    %v4106 = vld [vmem:[#allocation2 + $0x1d8] sm:$0xf]
    %v4107 = vld [vmem:[#allocation2 + $0x1dc] sm:$0xf]
    %v4108 = vld [vmem:[#allocation2 + $0x1e0] sm:$0xf]
    %v4109 = vld [vmem:[#allocation2 + $0x1e4] sm:$0xf]
    %v4110 = vld [vmem:[#allocation2 + $0x1e8] sm:$0xf]
    %v4111 = vld [vmem:[#allocation2 + $0x1ec] sm:$0xf]
    %v4112 = vld [vmem:[#allocation2 + $0x1f0] sm:$0xf]
    %v4113 = vld [vmem:[#allocation2 + $0x1f4] sm:$0xf]
    %v4114 = vld [vmem:[#allocation2 + $0x1f8] sm:$0xf]
    %v4115 = vld [vmem:[#allocation2 + $0x1fc] sm:$0xf]
    %v4244 = vunpack.c.l.b16 %v3988
    %v4245 = vunpack.c.l.b16 %v3989
    %v4246 = vunpack.c.l.b16 %v3990
    %v4247 = vunpack.c.l.b16 %v3991
    %v4248 = vunpack.c.l.b16 %v3992
    %v4249 = vunpack.c.l.b16 %v3993
    %v4250 = vunpack.c.l.b16 %v3994
    %v4251 = vunpack.c.l.b16 %v3995
    %v4252 = vunpack.c.l.b16 %v3996
    %v4253 = vunpack.c.l.b16 %v3997
    %v4254 = vunpack.c.l.b16 %v3998
    %v4255 = vunpack.c.l.b16 %v3999
    %v4256 = vunpack.c.l.b16 %v4000
    %v4257 = vunpack.c.l.b16 %v4001
    %v4258 = vunpack.c.l.b16 %v4002
    %v4259 = vunpack.c.l.b16 %v4003
    %v4260 = vunpack.c.l.b16 %v4004
    %v4261 = vunpack.c.l.b16 %v4005
    %v4262 = vunpack.c.l.b16 %v4006
    %v4263 = vunpack.c.l.b16 %v4007
    %v4264 = vunpack.c.l.b16 %v4008
    %v4265 = vunpack.c.l.b16 %v4009
    %v4266 = vunpack.c.l.b16 %v4010
    %v4267 = vunpack.c.l.b16 %v4011
    %v4268 = vunpack.c.l.b16 %v4012
    %v4269 = vunpack.c.l.b16 %v4013
    %v4270 = vunpack.c.l.b16 %v4014
    %v4271 = vunpack.c.l.b16 %v4015
    %v4272 = vunpack.c.l.b16 %v4016
    %v4273 = vunpack.c.l.b16 %v4017
    %v4274 = vunpack.c.l.b16 %v4018
    %v4275 = vunpack.c.l.b16 %v4019
    %v4276 = vunpack.c.l.b16 %v4020
    %v4277 = vunpack.c.l.b16 %v4021
    %v4278 = vunpack.c.l.b16 %v4022
    %v4279 = vunpack.c.l.b16 %v4023
    %v4280 = vunpack.c.l.b16 %v4024
    %v4281 = vunpack.c.l.b16 %v4025
    %v4282 = vunpack.c.l.b16 %v4026
    %v4283 = vunpack.c.l.b16 %v4027
    %v4284 = vunpack.c.l.b16 %v4028
    %v4285 = vunpack.c.l.b16 %v4029
    %v4286 = vunpack.c.l.b16 %v4030
    %v4287 = vunpack.c.l.b16 %v4031
    %v4288 = vunpack.c.l.b16 %v4032
    %v4289 = vunpack.c.l.b16 %v4033
    %v4290 = vunpack.c.l.b16 %v4034
    %v4291 = vunpack.c.l.b16 %v4035
    %v4292 = vunpack.c.l.b16 %v4036
    %v4293 = vunpack.c.l.b16 %v4037
    %v4294 = vunpack.c.l.b16 %v4038
    %v4295 = vunpack.c.l.b16 %v4039
    %v4296 = vunpack.c.l.b16 %v4040
    %v4297 = vunpack.c.l.b16 %v4041
    %v4298 = vunpack.c.l.b16 %v4042
    %v4299 = vunpack.c.l.b16 %v4043
    %v4300 = vunpack.c.l.b16 %v4044
    %v4301 = vunpack.c.l.b16 %v4045
    %v4302 = vunpack.c.l.b16 %v4046
    %v4303 = vunpack.c.l.b16 %v4047
    %v4304 = vunpack.c.l.b16 %v4048
    %v4305 = vunpack.c.l.b16 %v4049
    %v4306 = vunpack.c.l.b16 %v4050
    %v4307 = vunpack.c.l.b16 %v4051
    %v4308 = vunpack.c.l.b16 %v4052
    %v4309 = vunpack.c.l.b16 %v4053
    %v4310 = vunpack.c.l.b16 %v4054
    %v4311 = vunpack.c.l.b16 %v4055
    %v4312 = vunpack.c.l.b16 %v4056
    %v4313 = vunpack.c.l.b16 %v4057
    %v4314 = vunpack.c.l.b16 %v4058
    %v4315 = vunpack.c.l.b16 %v4059
    %v4316 = vunpack.c.l.b16 %v4060
    %v4317 = vunpack.c.l.b16 %v4061
    %v4318 = vunpack.c.l.b16 %v4062
    %v4319 = vunpack.c.l.b16 %v4063
    %v4320 = vunpack.c.l.b16 %v4064
    %v4321 = vunpack.c.l.b16 %v4065
    %v4322 = vunpack.c.l.b16 %v4066
    %v4323 = vunpack.c.l.b16 %v4067
    %v4324 = vunpack.c.l.b16 %v4068
    %v4325 = vunpack.c.l.b16 %v4069
    %v4326 = vunpack.c.l.b16 %v4070
    %v4327 = vunpack.c.l.b16 %v4071
    %v4328 = vunpack.c.l.b16 %v4072
    %v4329 = vunpack.c.l.b16 %v4073
    %v4330 = vunpack.c.l.b16 %v4074
    %v4331 = vunpack.c.l.b16 %v4075
    %v4332 = vunpack.c.l.b16 %v4076
    %v4333 = vunpack.c.l.b16 %v4077
    %v4334 = vunpack.c.l.b16 %v4078
    %v4335 = vunpack.c.l.b16 %v4079
    %v4336 = vunpack.c.l.b16 %v4080
    %v4337 = vunpack.c.l.b16 %v4081
    %v4338 = vunpack.c.l.b16 %v4082
    %v4339 = vunpack.c.l.b16 %v4083
    %v4340 = vunpack.c.l.b16 %v4084
    %v4341 = vunpack.c.l.b16 %v4085
    %v4342 = vunpack.c.l.b16 %v4086
    %v4343 = vunpack.c.l.b16 %v4087
    %v4344 = vunpack.c.l.b16 %v4088
    %v4345 = vunpack.c.l.b16 %v4089
    %v4346 = vunpack.c.l.b16 %v4090
    %v4347 = vunpack.c.l.b16 %v4091
    %v4348 = vunpack.c.l.b16 %v4092
    %v4349 = vunpack.c.l.b16 %v4093
    %v4350 = vunpack.c.l.b16 %v4094
    %v4351 = vunpack.c.l.b16 %v4095
    %v4352 = vunpack.c.l.b16 %v4096
    %v4353 = vunpack.c.l.b16 %v4097
    %v4354 = vunpack.c.l.b16 %v4098
    %v4355 = vunpack.c.l.b16 %v4099
    %v4356 = vunpack.c.l.b16 %v4100
    %v4357 = vunpack.c.l.b16 %v4101
    %v4358 = vunpack.c.l.b16 %v4102
    %v4359 = vunpack.c.l.b16 %v4103
    %v4360 = vunpack.c.l.b16 %v4104
    %v4361 = vunpack.c.l.b16 %v4105
    %v4362 = vunpack.c.l.b16 %v4106
    %v4363 = vunpack.c.l.b16 %v4107
    %v4364 = vunpack.c.l.b16 %v4108
    %v4365 = vunpack.c.l.b16 %v4109
    %v4366 = vunpack.c.l.b16 %v4110
    %v4367 = vunpack.c.l.b16 %v4111
    %v4368 = vunpack.c.l.b16 %v4112
    %v4369 = vunpack.c.l.b16 %v4113
    %v4370 = vunpack.c.l.b16 %v4114
    %v4371 = vunpack.c.l.b16 %v4115
    %v4372 = vpack.c.b16 %v4245, %v4244
    %v4373 = vpack.c.b16 %v4247, %v4246
    %v4374 = vpack.c.b16 %v4249, %v4248
    %v4375 = vpack.c.b16 %v4251, %v4250
    %v4376 = vpack.c.b16 %v4253, %v4252
    %v4377 = vpack.c.b16 %v4255, %v4254
    %v4378 = vpack.c.b16 %v4257, %v4256
    %v4379 = vpack.c.b16 %v4259, %v4258
    %v4380 = vpack.c.b16 %v4261, %v4260
    %v4381 = vpack.c.b16 %v4263, %v4262
    %v4382 = vpack.c.b16 %v4265, %v4264
    %v4383 = vpack.c.b16 %v4267, %v4266
    %v4384 = vpack.c.b16 %v4269, %v4268
    %v4385 = vpack.c.b16 %v4271, %v4270
    %v4386 = vpack.c.b16 %v4273, %v4272
    %v4387 = vpack.c.b16 %v4275, %v4274
    %v4388 = vpack.c.b16 %v4277, %v4276
    %v4389 = vpack.c.b16 %v4279, %v4278
    %v4390 = vpack.c.b16 %v4281, %v4280
    %v4391 = vpack.c.b16 %v4283, %v4282
    %v4392 = vpack.c.b16 %v4285, %v4284
    %v4393 = vpack.c.b16 %v4287, %v4286
    %v4394 = vpack.c.b16 %v4289, %v4288
    %v4395 = vpack.c.b16 %v4291, %v4290
    %v4396 = vpack.c.b16 %v4293, %v4292
    %v4397 = vpack.c.b16 %v4295, %v4294
    %v4398 = vpack.c.b16 %v4297, %v4296
    %v4399 = vpack.c.b16 %v4299, %v4298
    %v4400 = vpack.c.b16 %v4301, %v4300
    %v4401 = vpack.c.b16 %v4303, %v4302
    %v4402 = vpack.c.b16 %v4305, %v4304
    %v4403 = vpack.c.b16 %v4307, %v4306
    %v4404 = vpack.c.b16 %v4309, %v4308
    %v4405 = vpack.c.b16 %v4311, %v4310
    %v4406 = vpack.c.b16 %v4313, %v4312
    %v4407 = vpack.c.b16 %v4315, %v4314
    %v4408 = vpack.c.b16 %v4317, %v4316
    %v4409 = vpack.c.b16 %v4319, %v4318
    %v4410 = vpack.c.b16 %v4321, %v4320
    %v4411 = vpack.c.b16 %v4323, %v4322
    %v4412 = vpack.c.b16 %v4325, %v4324
    %v4413 = vpack.c.b16 %v4327, %v4326
    %v4414 = vpack.c.b16 %v4329, %v4328
    %v4415 = vpack.c.b16 %v4331, %v4330
    %v4416 = vpack.c.b16 %v4333, %v4332
    %v4417 = vpack.c.b16 %v4335, %v4334
    %v4418 = vpack.c.b16 %v4337, %v4336
    %v4419 = vpack.c.b16 %v4339, %v4338
    %v4420 = vpack.c.b16 %v4341, %v4340
    %v4421 = vpack.c.b16 %v4343, %v4342
    %v4422 = vpack.c.b16 %v4345, %v4344
    %v4423 = vpack.c.b16 %v4347, %v4346
    %v4424 = vpack.c.b16 %v4349, %v4348
    %v4425 = vpack.c.b16 %v4351, %v4350
    %v4426 = vpack.c.b16 %v4353, %v4352
    %v4427 = vpack.c.b16 %v4355, %v4354
    %v4428 = vpack.c.b16 %v4357, %v4356
    %v4429 = vpack.c.b16 %v4359, %v4358
    %v4430 = vpack.c.b16 %v4361, %v4360
    %v4431 = vpack.c.b16 %v4363, %v4362
    %v4432 = vpack.c.b16 %v4365, %v4364
    %v4433 = vpack.c.b16 %v4367, %v4366
    %v4434 = vpack.c.b16 %v4369, %v4368
    %v4435 = vpack.c.b16 %v4371, %v4370
    %4500 = vmatprep.subr.bf16.mxu0 0
    %4501 = vmatpush1.bf16.msra.mxu0 %v4379
    %4502 = vmatprep.subr.bf16.mxu0 0
    %4503 = vmatpush1.bf16.msra.mxu0 %v4378
    %4504 = vmatprep.subr.bf16.mxu0 0
    %4505 = vmatpush1.bf16.msra.mxu0 %v4377
    %4506 = vmatprep.subr.bf16.mxu0 0
    %4507 = vmatpush1.bf16.msra.mxu0 %v4376
    %4508 = vmatprep.subr.bf16.mxu0 0
    %4509 = vmatpush1.bf16.msra.mxu0 %v4375
    %4510 = vmatprep.subr.bf16.mxu0 0
    %4511 = vmatpush1.bf16.msra.mxu0 %v4374
    %4512 = vmatprep.subr.bf16.mxu0 0
    %4513 = vmatpush1.bf16.msra.mxu0 %v4373
    %4514 = vmatprep.subr.bf16.mxu0 0
    %4515 = vmatpush1.bf16.msra.mxu0 %v4372
    %4516 = vmatprep.subr.bf16.mxu0 0
    %4517 = vmatpush2.bf16.msra.mxu0 %v4387
    %4518 = vmatprep.subr.bf16.mxu0 0
    %4519 = vmatpush2.bf16.msra.mxu0 %v4386
    %4520 = vmatprep.subr.bf16.mxu0 0
    %4521 = vmatpush2.bf16.msra.mxu0 %v4385
    %4522 = vmatprep.subr.bf16.mxu0 0
    %4523 = vmatpush2.bf16.msra.mxu0 %v4384
    %4524 = vmatprep.subr.bf16.mxu0 0
    %4525 = vmatpush2.bf16.msra.mxu0 %v4383
    %4526 = vmatprep.subr.bf16.mxu0 0
    %4527 = vmatpush2.bf16.msra.mxu0 %v4382
    %4528 = vmatprep.subr.bf16.mxu0 0
    %4529 = vmatpush2.bf16.msra.mxu0 %v4381
    %4530 = vmatprep.subr.bf16.mxu0 0
    %4531 = vmatpush2.bf16.msra.mxu0 %v4380
    %4532 = vmatprep.mubr.bf16.mxu0 %v1882
    %4533 = vmatmul.mubr.bf16.gmra.mxu0 %v1879
    %v4534 = vpop.f32.mrf.mxu0
    %v4535 = vadd.f32 0.0, %v4534
    %v4536 = vpop.f32.mrf.mxu0
    %v4537 = vpop.f32.mrf.mxu0
    %v4538 = vadd.f32 0.0, %v4537
    %v4539 = vpop.f32.mrf.mxu0
    %4540 = vmatprep.mubr.bf16.mxu0 %v1906
    %4541 = vmatmul.mubr.bf16.gmra.mxu0 %v1903
    %v4542 = vpop.f32.mrf.mxu0
    %v4543 = vadd.f32 0.0, %v4542
    %v4544 = vpop.f32.mrf.mxu0
    %v4545 = vpop.f32.mrf.mxu0
    %v4546 = vadd.f32 0.0, %v4545
    %v4547 = vpop.f32.mrf.mxu0
    %4548 = vmatprep.mubr.bf16.mxu0 %v1930
    %4549 = vmatmul.mubr.bf16.gmra.mxu0 %v1927
    %v4550 = vpop.f32.mrf.mxu0
    %v4551 = vadd.f32 0.0, %v4550
    %v4552 = vpop.f32.mrf.mxu0
    %v4553 = vpop.f32.mrf.mxu0
    %v4554 = vadd.f32 0.0, %v4553
    %v4555 = vpop.f32.mrf.mxu0
    %4556 = vmatprep.mubr.bf16.mxu0 %v1954
    %4557 = vmatmul.mubr.bf16.gmra.mxu0 %v1951
    %v4558 = vpop.f32.mrf.mxu0
    %v4559 = vadd.f32 0.0, %v4558
    %v4560 = vpop.f32.mrf.mxu0
    %v4561 = vpop.f32.mrf.mxu0
    %v4562 = vadd.f32 0.0, %v4561
    %v4563 = vpop.f32.mrf.mxu0
    %4564 = vmatprep.mubr.bf16.mxu0 %v1978
    %4565 = vmatmul.mubr.bf16.gmra.mxu0 %v1975
    %v4566 = vpop.f32.mrf.mxu0
    %v4567 = vadd.f32 0.0, %v4566
    %v4568 = vpop.f32.mrf.mxu0
    %v4569 = vpop.f32.mrf.mxu0
    %v4570 = vadd.f32 0.0, %v4569
    %v4571 = vpop.f32.mrf.mxu0
    %4572 = vmatprep.mubr.bf16.mxu0 %v2002
    %4573 = vmatmul.mubr.bf16.gmra.mxu0 %v1999
    %v4574 = vpop.f32.mrf.mxu0
    %v4575 = vadd.f32 0.0, %v4574
    %v4576 = vpop.f32.mrf.mxu0
    %v4577 = vpop.f32.mrf.mxu0
    %v4578 = vadd.f32 0.0, %v4577
    %v4579 = vpop.f32.mrf.mxu0
    %4580 = vmatprep.mubr.bf16.mxu0 %v2026
    %4581 = vmatmul.mubr.bf16.gmra.mxu0 %v2023
    %v4582 = vpop.f32.mrf.mxu0
    %v4583 = vadd.f32 0.0, %v4582
    %v4584 = vpop.f32.mrf.mxu0
    %v4585 = vpop.f32.mrf.mxu0
    %v4586 = vadd.f32 0.0, %v4585
    %v4587 = vpop.f32.mrf.mxu0
    %4588 = vmatprep.mubr.bf16.mxu0 %v2050
    %4589 = vmatmul.mubr.bf16.gmra.mxu0 %v2047
    %v4590 = vpop.f32.mrf.mxu0
    %v4591 = vadd.f32 0.0, %v4590
    %v4592 = vpop.f32.mrf.mxu0
    %v4593 = vpop.f32.mrf.mxu0
    %v4594 = vadd.f32 0.0, %v4593
    %v4595 = vpop.f32.mrf.mxu0
    %4596 = vdwg.mxu0
    %4597 = vmatprep.subr.bf16.mxu0 0
    %4598 = vmatpush1.bf16.msra.mxu0 %v4395
    %4599 = vmatprep.subr.bf16.mxu0 0
    %4600 = vmatpush1.bf16.msra.mxu0 %v4394
    %4601 = vmatprep.subr.bf16.mxu0 0
    %4602 = vmatpush1.bf16.msra.mxu0 %v4393
    %4603 = vmatprep.subr.bf16.mxu0 0
    %4604 = vmatpush1.bf16.msra.mxu0 %v4392
    %4605 = vmatprep.subr.bf16.mxu0 0
    %4606 = vmatpush1.bf16.msra.mxu0 %v4391
    %4607 = vmatprep.subr.bf16.mxu0 0
    %4608 = vmatpush1.bf16.msra.mxu0 %v4390
    %4609 = vmatprep.subr.bf16.mxu0 0
    %4610 = vmatpush1.bf16.msra.mxu0 %v4389
    %4611 = vmatprep.subr.bf16.mxu0 0
    %4612 = vmatpush1.bf16.msra.mxu0 %v4388
    %4613 = vmatprep.subr.bf16.mxu0 0
    %4614 = vmatpush2.bf16.msra.mxu0 %v4403
    %4615 = vmatprep.subr.bf16.mxu0 0
    %4616 = vmatpush2.bf16.msra.mxu0 %v4402
    %4617 = vmatprep.subr.bf16.mxu0 0
    %4618 = vmatpush2.bf16.msra.mxu0 %v4401
    %4619 = vmatprep.subr.bf16.mxu0 0
    %4620 = vmatpush2.bf16.msra.mxu0 %v4400
    %4621 = vmatprep.subr.bf16.mxu0 0
    %4622 = vmatpush2.bf16.msra.mxu0 %v4399
    %4623 = vmatprep.subr.bf16.mxu0 0
    %4624 = vmatpush2.bf16.msra.mxu0 %v4398
    %4625 = vmatprep.subr.bf16.mxu0 0
    %4626 = vmatpush2.bf16.msra.mxu0 %v4397
    %4627 = vmatprep.subr.bf16.mxu0 0
    %4628 = vmatpush2.bf16.msra.mxu0 %v4396
    %4629 = vmatprep.mubr.bf16.mxu0 %v1888
    %4630 = vmatmul.mubr.bf16.gmra.mxu0 %v1885
    %v4631 = vpop.f32.mrf.mxu0
    %v4632 = vadd.f32 %v4535, %v4631
    %v4633 = vpop.f32.mrf.mxu0
    %v4634 = vpop.f32.mrf.mxu0
    %v4635 = vadd.f32 %v4538, %v4634
    %v4636 = vpop.f32.mrf.mxu0
    %4637 = vmatprep.mubr.bf16.mxu0 %v1912
    %4638 = vmatmul.mubr.bf16.gmra.mxu0 %v1909
    %v4639 = vpop.f32.mrf.mxu0
    %v4640 = vadd.f32 %v4543, %v4639
    %v4641 = vpop.f32.mrf.mxu0
    %v4642 = vpop.f32.mrf.mxu0
    %v4643 = vadd.f32 %v4546, %v4642
    %v4644 = vpop.f32.mrf.mxu0
    %4645 = vmatprep.mubr.bf16.mxu0 %v1936
    %4646 = vmatmul.mubr.bf16.gmra.mxu0 %v1933
    %v4647 = vpop.f32.mrf.mxu0
    %v4648 = vadd.f32 %v4551, %v4647
    %v4649 = vpop.f32.mrf.mxu0
    %v4650 = vpop.f32.mrf.mxu0
    %v4651 = vadd.f32 %v4554, %v4650
    %v4652 = vpop.f32.mrf.mxu0
    %4653 = vmatprep.mubr.bf16.mxu0 %v1960
    %4654 = vmatmul.mubr.bf16.gmra.mxu0 %v1957
    %v4655 = vpop.f32.mrf.mxu0
    %v4656 = vadd.f32 %v4559, %v4655
    %v4657 = vpop.f32.mrf.mxu0
    %v4658 = vpop.f32.mrf.mxu0
    %v4659 = vadd.f32 %v4562, %v4658
    %v4660 = vpop.f32.mrf.mxu0
    %4661 = vmatprep.mubr.bf16.mxu0 %v1984
    %4662 = vmatmul.mubr.bf16.gmra.mxu0 %v1981
    %v4663 = vpop.f32.mrf.mxu0
    %v4664 = vadd.f32 %v4567, %v4663
    %v4665 = vpop.f32.mrf.mxu0
    %v4666 = vpop.f32.mrf.mxu0
    %v4667 = vadd.f32 %v4570, %v4666
    %v4668 = vpop.f32.mrf.mxu0
    %4669 = vmatprep.mubr.bf16.mxu0 %v2008
    %4670 = vmatmul.mubr.bf16.gmra.mxu0 %v2005
    %v4671 = vpop.f32.mrf.mxu0
    %v4672 = vadd.f32 %v4575, %v4671
    %v4673 = vpop.f32.mrf.mxu0
    %v4674 = vpop.f32.mrf.mxu0
    %v4675 = vadd.f32 %v4578, %v4674
    %v4676 = vpop.f32.mrf.mxu0
    %4677 = vmatprep.mubr.bf16.mxu0 %v2032
    %4678 = vmatmul.mubr.bf16.gmra.mxu0 %v2029
    %v4679 = vpop.f32.mrf.mxu0
    %v4680 = vadd.f32 %v4583, %v4679
    %v4681 = vpop.f32.mrf.mxu0
    %v4682 = vpop.f32.mrf.mxu0
    %v4683 = vadd.f32 %v4586, %v4682
    %v4684 = vpop.f32.mrf.mxu0
    %4685 = vmatprep.mubr.bf16.mxu0 %v2056
    %4686 = vmatmul.mubr.bf16.gmra.mxu0 %v2053
    %v4687 = vpop.f32.mrf.mxu0
    %v4688 = vadd.f32 %v4591, %v4687
    %v4689 = vpop.f32.mrf.mxu0
    %v4690 = vpop.f32.mrf.mxu0
    %v4691 = vadd.f32 %v4594, %v4690
    %v4692 = vpop.f32.mrf.mxu0
    %4693 = vdwg.mxu0
    %4694 = vmatprep.subr.bf16.mxu0 0
    %4695 = vmatpush1.bf16.msra.mxu0 %v4411
    %4696 = vmatprep.subr.bf16.mxu0 0
    %4697 = vmatpush1.bf16.msra.mxu0 %v4410
    %4698 = vmatprep.subr.bf16.mxu0 0
    %4699 = vmatpush1.bf16.msra.mxu0 %v4409
    %4700 = vmatprep.subr.bf16.mxu0 0
    %4701 = vmatpush1.bf16.msra.mxu0 %v4408
    %4702 = vmatprep.subr.bf16.mxu0 0
    %4703 = vmatpush1.bf16.msra.mxu0 %v4407
    %4704 = vmatprep.subr.bf16.mxu0 0
    %4705 = vmatpush1.bf16.msra.mxu0 %v4406
    %4706 = vmatprep.subr.bf16.mxu0 0
    %4707 = vmatpush1.bf16.msra.mxu0 %v4405
    %4708 = vmatprep.subr.bf16.mxu0 0
    %4709 = vmatpush1.bf16.msra.mxu0 %v4404
    %4710 = vmatprep.subr.bf16.mxu0 0
    %4711 = vmatpush2.bf16.msra.mxu0 %v4419
    %4712 = vmatprep.subr.bf16.mxu0 0
    %4713 = vmatpush2.bf16.msra.mxu0 %v4418
    %4714 = vmatprep.subr.bf16.mxu0 0
    %4715 = vmatpush2.bf16.msra.mxu0 %v4417
    %4716 = vmatprep.subr.bf16.mxu0 0
    %4717 = vmatpush2.bf16.msra.mxu0 %v4416
    %4718 = vmatprep.subr.bf16.mxu0 0
    %4719 = vmatpush2.bf16.msra.mxu0 %v4415
    %4720 = vmatprep.subr.bf16.mxu0 0
    %4721 = vmatpush2.bf16.msra.mxu0 %v4414
    %4722 = vmatprep.subr.bf16.mxu0 0
    %4723 = vmatpush2.bf16.msra.mxu0 %v4413
    %4724 = vmatprep.subr.bf16.mxu0 0
    %4725 = vmatpush2.bf16.msra.mxu0 %v4412
    %4726 = vmatprep.mubr.bf16.mxu0 %v1894
    %4727 = vmatmul.mubr.bf16.gmra.mxu0 %v1891
    %v4728 = vpop.f32.mrf.mxu0
    %v4729 = vadd.f32 %v4632, %v4728
    %v4730 = vpop.f32.mrf.mxu0
    %v4731 = vpop.f32.mrf.mxu0
    %v4732 = vadd.f32 %v4635, %v4731
    %v4733 = vpop.f32.mrf.mxu0
    %4734 = vmatprep.mubr.bf16.mxu0 %v1918
    %4735 = vmatmul.mubr.bf16.gmra.mxu0 %v1915
    %v4736 = vpop.f32.mrf.mxu0
    %v4737 = vadd.f32 %v4640, %v4736
    %v4738 = vpop.f32.mrf.mxu0
    %v4739 = vpop.f32.mrf.mxu0
    %v4740 = vadd.f32 %v4643, %v4739
    %v4741 = vpop.f32.mrf.mxu0
    %4742 = vmatprep.mubr.bf16.mxu0 %v1942
    %4743 = vmatmul.mubr.bf16.gmra.mxu0 %v1939
    %v4744 = vpop.f32.mrf.mxu0
    %v4745 = vadd.f32 %v4648, %v4744
    %v4746 = vpop.f32.mrf.mxu0
    %v4747 = vpop.f32.mrf.mxu0
    %v4748 = vadd.f32 %v4651, %v4747
    %v4749 = vpop.f32.mrf.mxu0
    %4750 = vmatprep.mubr.bf16.mxu0 %v1966
    %4751 = vmatmul.mubr.bf16.gmra.mxu0 %v1963
    %v4752 = vpop.f32.mrf.mxu0
    %v4753 = vadd.f32 %v4656, %v4752
    %v4754 = vpop.f32.mrf.mxu0
    %v4755 = vpop.f32.mrf.mxu0
    %v4756 = vadd.f32 %v4659, %v4755
    %v4757 = vpop.f32.mrf.mxu0
    %4758 = vmatprep.mubr.bf16.mxu0 %v1990
    %4759 = vmatmul.mubr.bf16.gmra.mxu0 %v1987
    %v4760 = vpop.f32.mrf.mxu0
    %v4761 = vadd.f32 %v4664, %v4760
    %v4762 = vpop.f32.mrf.mxu0
    %v4763 = vpop.f32.mrf.mxu0
    %v4764 = vadd.f32 %v4667, %v4763
    %v4765 = vpop.f32.mrf.mxu0
    %4766 = vmatprep.mubr.bf16.mxu0 %v2014
    %4767 = vmatmul.mubr.bf16.gmra.mxu0 %v2011
    %v4768 = vpop.f32.mrf.mxu0
    %v4769 = vadd.f32 %v4672, %v4768
    %v4770 = vpop.f32.mrf.mxu0
    %v4771 = vpop.f32.mrf.mxu0
    %v4772 = vadd.f32 %v4675, %v4771
    %v4773 = vpop.f32.mrf.mxu0
    %4774 = vmatprep.mubr.bf16.mxu0 %v2038
    %4775 = vmatmul.mubr.bf16.gmra.mxu0 %v2035
    %v4776 = vpop.f32.mrf.mxu0
    %v4777 = vadd.f32 %v4680, %v4776
    %v4778 = vpop.f32.mrf.mxu0
    %v4779 = vpop.f32.mrf.mxu0
    %v4780 = vadd.f32 %v4683, %v4779
    %v4781 = vpop.f32.mrf.mxu0
    %4782 = vmatprep.mubr.bf16.mxu0 %v2062
    %4783 = vmatmul.mubr.bf16.gmra.mxu0 %v2059
    %v4784 = vpop.f32.mrf.mxu0
    %v4785 = vadd.f32 %v4688, %v4784
    %v4786 = vpop.f32.mrf.mxu0
    %v4787 = vpop.f32.mrf.mxu0
    %v4788 = vadd.f32 %v4691, %v4787
    %v4789 = vpop.f32.mrf.mxu0
    %4790 = vdwg.mxu0
    %4791 = vmatprep.subr.bf16.mxu0 0
    %4792 = vmatpush1.bf16.msra.mxu0 %v4427
    %4793 = vmatprep.subr.bf16.mxu0 0
    %4794 = vmatpush1.bf16.msra.mxu0 %v4426
    %4795 = vmatprep.subr.bf16.mxu0 0
    %4796 = vmatpush1.bf16.msra.mxu0 %v4425
    %4797 = vmatprep.subr.bf16.mxu0 0
    %4798 = vmatpush1.bf16.msra.mxu0 %v4424
    %4799 = vmatprep.subr.bf16.mxu0 0
    %4800 = vmatpush1.bf16.msra.mxu0 %v4423
    %4801 = vmatprep.subr.bf16.mxu0 0
    %4802 = vmatpush1.bf16.msra.mxu0 %v4422
    %4803 = vmatprep.subr.bf16.mxu0 0
    %4804 = vmatpush1.bf16.msra.mxu0 %v4421
    %4805 = vmatprep.subr.bf16.mxu0 0
    %4806 = vmatpush1.bf16.msra.mxu0 %v4420
    %4807 = vmatprep.subr.bf16.mxu0 0
    %4808 = vmatpush2.bf16.msra.mxu0 %v4435
    %4809 = vmatprep.subr.bf16.mxu0 0
    %4810 = vmatpush2.bf16.msra.mxu0 %v4434
    %4811 = vmatprep.subr.bf16.mxu0 0
    %4812 = vmatpush2.bf16.msra.mxu0 %v4433
    %4813 = vmatprep.subr.bf16.mxu0 0
    %4814 = vmatpush2.bf16.msra.mxu0 %v4432
    %4815 = vmatprep.subr.bf16.mxu0 0
    %4816 = vmatpush2.bf16.msra.mxu0 %v4431
    %4817 = vmatprep.subr.bf16.mxu0 0
    %4818 = vmatpush2.bf16.msra.mxu0 %v4430
    %4819 = vmatprep.subr.bf16.mxu0 0
    %4820 = vmatpush2.bf16.msra.mxu0 %v4429
    %4821 = vmatprep.subr.bf16.mxu0 0
    %4822 = vmatpush2.bf16.msra.mxu0 %v4428
    %4823 = vmatprep.mubr.bf16.mxu0 %v1900
    %4824 = vmatmul.mubr.bf16.gmra.mxu0 %v1897
    %v4825 = vpop.f32.mrf.mxu0
    %v4826 = vadd.f32 %v4729, %v4825
    %v4827 = vpop.f32.mrf.mxu0
    %v4828 = vpop.f32.mrf.mxu0
    %v4829 = vadd.f32 %v4732, %v4828
    %v4830 = vpop.f32.mrf.mxu0
    %4831 = vmatprep.mubr.bf16.mxu0 %v1924
    %4832 = vmatmul.mubr.bf16.gmra.mxu0 %v1921
    %v4833 = vpop.f32.mrf.mxu0
    %v4834 = vadd.f32 %v4737, %v4833
    %v4835 = vpop.f32.mrf.mxu0
    %v4836 = vpop.f32.mrf.mxu0
    %v4837 = vadd.f32 %v4740, %v4836
    %v4838 = vpop.f32.mrf.mxu0
    %4839 = vmatprep.mubr.bf16.mxu0 %v1948
    %4840 = vmatmul.mubr.bf16.gmra.mxu0 %v1945
    %v4841 = vpop.f32.mrf.mxu0
    %v4842 = vadd.f32 %v4745, %v4841
    %v4843 = vpop.f32.mrf.mxu0
    %v4844 = vpop.f32.mrf.mxu0
    %v4845 = vadd.f32 %v4748, %v4844
    %v4846 = vpop.f32.mrf.mxu0
    %4847 = vmatprep.mubr.bf16.mxu0 %v1972
    %4848 = vmatmul.mubr.bf16.gmra.mxu0 %v1969
    %v4849 = vpop.f32.mrf.mxu0
    %v4850 = vadd.f32 %v4753, %v4849
    %v4851 = vpop.f32.mrf.mxu0
    %v4852 = vpop.f32.mrf.mxu0
    %v4853 = vadd.f32 %v4756, %v4852
    %v4854 = vpop.f32.mrf.mxu0
    %4855 = vmatprep.mubr.bf16.mxu0 %v1996
    %4856 = vmatmul.mubr.bf16.gmra.mxu0 %v1993
    %v4857 = vpop.f32.mrf.mxu0
    %v4858 = vadd.f32 %v4761, %v4857
    %v4859 = vpop.f32.mrf.mxu0
    %v4860 = vpop.f32.mrf.mxu0
    %v4861 = vadd.f32 %v4764, %v4860
    %v4862 = vpop.f32.mrf.mxu0
    %4863 = vmatprep.mubr.bf16.mxu0 %v2020
    %4864 = vmatmul.mubr.bf16.gmra.mxu0 %v2017
    %v4865 = vpop.f32.mrf.mxu0
    %v4866 = vadd.f32 %v4769, %v4865
    %v4867 = vpop.f32.mrf.mxu0
    %v4868 = vpop.f32.mrf.mxu0
    %v4869 = vadd.f32 %v4772, %v4868
    %v4870 = vpop.f32.mrf.mxu0
    %4871 = vmatprep.mubr.bf16.mxu0 %v2044
    %4872 = vmatmul.mubr.bf16.gmra.mxu0 %v2041
    %v4873 = vpop.f32.mrf.mxu0
    %v4874 = vadd.f32 %v4777, %v4873
    %v4875 = vpop.f32.mrf.mxu0
    %v4876 = vpop.f32.mrf.mxu0
    %v4877 = vadd.f32 %v4780, %v4876
    %v4878 = vpop.f32.mrf.mxu0
    %4879 = vmatprep.mubr.bf16.mxu0 %v2068
    %4880 = vmatmul.mubr.bf16.gmra.mxu0 %v2065
    %v4881 = vpop.f32.mrf.mxu0
    %v4882 = vadd.f32 %v4785, %v4881
    %v4883 = vpop.f32.mrf.mxu0
    %v4884 = vpop.f32.mrf.mxu0
    %v4885 = vadd.f32 %v4788, %v4884
    %v4886 = vpop.f32.mrf.mxu0
    %4887 = vdwg.mxu0
    %v4888 = vmul.f32 %v4826, %v3101
    %v4889 = vmul.f32 %v4829, %v3106
    %v4890 = vmul.f32 %v4834, %v3111
    %v4891 = vmul.f32 %v4837, %v3116
    %v4892 = vmul.f32 %v4842, %v3121
    %v4893 = vmul.f32 %v4845, %v3126
    %v4894 = vmul.f32 %v4850, %v3131
    %v4895 = vmul.f32 %v4853, %v3136
    %v4896 = vmul.f32 %v4858, %v3141
    %v4897 = vmul.f32 %v4861, %v3146
    %v4898 = vmul.f32 %v4866, %v3151
    %v4899 = vmul.f32 %v4869, %v3156
    %v4900 = vmul.f32 %v4874, %v3161
    %v4901 = vmul.f32 %v4877, %v3166
    %v4902 = vmul.f32 %v4882, %v3171
    %v4903 = vmul.f32 %v4885, %v3176
    %v4904 = vld [vmem:[%s5] sm:$0x1]
    %v4906 = vlaneseq
    %v4907 = vshrl.u32 %v4906, 7
    %v4908 = vsub.s32 0, %v4907
    %v4909 = vrot.slane %v4904, %v4908
    %v4911 = vadd.f32 %v4888, %v4909
    %v4912 = vadd.f32 %v4889, %v4909
    %v4913 = vadd.f32 %v4890, %v4909
    %v4914 = vadd.f32 %v4891, %v4909
    %v4915 = vadd.f32 %v4892, %v4909
    %v4916 = vadd.f32 %v4893, %v4909
    %v4917 = vadd.f32 %v4894, %v4909
    %v4918 = vadd.f32 %v4895, %v4909
    %v4919 = vadd.f32 %v4896, %v4909
    %v4920 = vadd.f32 %v4897, %v4909
    %v4921 = vadd.f32 %v4898, %v4909
    %v4922 = vadd.f32 %v4899, %v4909
    %v4923 = vadd.f32 %v4900, %v4909
    %v4924 = vadd.f32 %v4901, %v4909
    %v4925 = vadd.f32 %v4902, %v4909
    %v4926 = vadd.f32 %v4903, %v4909
    %vm4927 = vcmp.gt.f32.partialorder %v4911, 0.0
    %vm4928 = vcmp.gt.f32.partialorder %v4912, 0.0
    %vm4929 = vcmp.gt.f32.partialorder %v4913, 0.0
    %vm4930 = vcmp.gt.f32.partialorder %v4914, 0.0
    %vm4931 = vcmp.gt.f32.partialorder %v4915, 0.0
    %vm4932 = vcmp.gt.f32.partialorder %v4916, 0.0
    %vm4933 = vcmp.gt.f32.partialorder %v4917, 0.0
    %vm4934 = vcmp.gt.f32.partialorder %v4918, 0.0
    %vm4935 = vcmp.gt.f32.partialorder %v4919, 0.0
    %vm4936 = vcmp.gt.f32.partialorder %v4920, 0.0
    %vm4937 = vcmp.gt.f32.partialorder %v4921, 0.0
    %vm4938 = vcmp.gt.f32.partialorder %v4922, 0.0
    %vm4939 = vcmp.gt.f32.partialorder %v4923, 0.0
    %vm4940 = vcmp.gt.f32.partialorder %v4924, 0.0
    %vm4941 = vcmp.gt.f32.partialorder %v4925, 0.0
    %vm4942 = vcmp.gt.f32.partialorder %v4926, 0.0
    %v4943 = vmin.f32 %v4911, 0.0
    %v4944 = vmin.f32 %v4912, 0.0
    %v4945 = vmin.f32 %v4913, 0.0
    %v4946 = vmin.f32 %v4914, 0.0
    %v4947 = vmin.f32 %v4915, 0.0
    %v4948 = vmin.f32 %v4916, 0.0
    %v4949 = vmin.f32 %v4917, 0.0
    %v4950 = vmin.f32 %v4918, 0.0
    %v4951 = vmin.f32 %v4919, 0.0
    %v4952 = vmin.f32 %v4920, 0.0
    %v4953 = vmin.f32 %v4921, 0.0
    %v4954 = vmin.f32 %v4922, 0.0
    %v4955 = vmin.f32 %v4923, 0.0
    %v4956 = vmin.f32 %v4924, 0.0
    %v4957 = vmin.f32 %v4925, 0.0
    %v4958 = vmin.f32 %v4926, 0.0
    %v4959 = vmul.f32 %v4943, 1.442695
    %v4960 = vpow.pop %v4959
    %v4961 = vmul.f32 %v4944, 1.442695
    %v4962 = vpow.pop %v4961
    %v4963 = vmul.f32 %v4945, 1.442695
    %v4964 = vpow.pop %v4963
    %v4965 = vmul.f32 %v4946, 1.442695
    %v4966 = vpow.pop %v4965
    %v4967 = vmul.f32 %v4947, 1.442695
    %v4968 = vpow.pop %v4967
    %v4969 = vmul.f32 %v4948, 1.442695
    %v4970 = vpow.pop %v4969
    %v4971 = vmul.f32 %v4949, 1.442695
    %v4972 = vpow.pop %v4971
    %v4973 = vmul.f32 %v4950, 1.442695
    %v4974 = vpow.pop %v4973
    %v4975 = vmul.f32 %v4951, 1.442695
    %v4976 = vpow.pop %v4975
    %v4977 = vmul.f32 %v4952, 1.442695
    %v4978 = vpow.pop %v4977
    %v4979 = vmul.f32 %v4953, 1.442695
    %v4980 = vpow.pop %v4979
    %v4981 = vmul.f32 %v4954, 1.442695
    %v4982 = vpow.pop %v4981
    %v4983 = vmul.f32 %v4955, 1.442695
    %v4984 = vpow.pop %v4983
    %v4985 = vmul.f32 %v4956, 1.442695
    %v4986 = vpow.pop %v4985
    %v4987 = vmul.f32 %v4957, 1.442695
    %v4988 = vpow.pop %v4987
    %v4989 = vmul.f32 %v4958, 1.442695
    %v4990 = vpow.pop %v4989
    %v4991 = vsub.f32 %v4960, 1.0
    %v4992 = vsub.f32 %v4962, 1.0
    %v4993 = vsub.f32 %v4964, 1.0
    %v4994 = vsub.f32 %v4966, 1.0
    %v4995 = vsub.f32 %v4968, 1.0
    %v4996 = vsub.f32 %v4970, 1.0
    %v4997 = vsub.f32 %v4972, 1.0
    %v4998 = vsub.f32 %v4974, 1.0
    %v4999 = vsub.f32 %v4976, 1.0
    %v5000 = vsub.f32 %v4978, 1.0
    %v5001 = vsub.f32 %v4980, 1.0
    %v5002 = vsub.f32 %v4982, 1.0
    %v5003 = vsub.f32 %v4984, 1.0
    %v5004 = vsub.f32 %v4986, 1.0
    %v5005 = vsub.f32 %v4988, 1.0
    %v5006 = vsub.f32 %v4990, 1.0
    %v5007 = vsel %vm4927, %v4911, %v4991
    %v5008 = vsel %vm4928, %v4912, %v4992
    %v5009 = vsel %vm4929, %v4913, %v4993
    %v5010 = vsel %vm4930, %v4914, %v4994
    %v5011 = vsel %vm4931, %v4915, %v4995
    %v5012 = vsel %vm4932, %v4916, %v4996
    %v5013 = vsel %vm4933, %v4917, %v4997
    %v5014 = vsel %vm4934, %v4918, %v4998
    %v5015 = vsel %vm4935, %v4919, %v4999
    %v5016 = vsel %vm4936, %v4920, %v5000
    %v5017 = vsel %vm4937, %v4921, %v5001
    %v5018 = vsel %vm4938, %v4922, %v5002
    %v5019 = vsel %vm4939, %v4923, %v5003
    %v5020 = vsel %vm4940, %v4924, %v5004
    %v5021 = vsel %vm4941, %v4925, %v5005
    %v5022 = vsel %vm4942, %v4926, %v5006
    %s5023 = smul.u32 4, 16
    %s5024 = smul.u32 %s5023, 1
    %s5025 = sshll.u32 %s5024, 4
    %5026 = dma.done [#allocation5], %s5025
    %v5027 = vpack.c.bf16 %v5008, %v5007
    %v5028 = vpack.c.bf16 %v5010, %v5009
    %v5029 = vpack.c.bf16 %v5012, %v5011
    %v5030 = vpack.c.bf16 %v5014, %v5013
    %v5031 = vpack.c.bf16 %v5016, %v5015
    %v5032 = vpack.c.bf16 %v5018, %v5017
    %v5033 = vpack.c.bf16 %v5020, %v5019
    %v5034 = vpack.c.bf16 %v5022, %v5021
    %v5035 = vld [vmem:[%s9] sm:$0xf]
    %v5036 = vld [vmem:[%s9 + $0x4] sm:$0xf]
    %v5037 = vld [vmem:[%s9 + $0x8] sm:$0xf]
    %v5038 = vld [vmem:[%s9 + $0xc] sm:$0xf]
    %v5039 = vld [vmem:[%s9 + $0x10] sm:$0xf]
    %v5040 = vld [vmem:[%s9 + $0x14] sm:$0xf]
    %v5041 = vld [vmem:[%s9 + $0x18] sm:$0xf]
    %v5042 = vld [vmem:[%s9 + $0x1c] sm:$0xf]
    %v5051 = vunpack.c.l.b16 %v5035
    %v5052 = vunpack.c.l.b16 %v5036
    %v5053 = vunpack.c.l.b16 %v5037
    %v5054 = vunpack.c.l.b16 %v5038
    %v5055 = vunpack.c.l.b16 %v5039
    %v5056 = vunpack.c.l.b16 %v5040
    %v5057 = vunpack.c.l.b16 %v5041
    %v5058 = vunpack.c.l.b16 %v5042
    %v5059 = vpack.c.b16 %v5052, %v5051
    %v5060 = vpack.c.b16 %v5054, %v5053
    %v5061 = vpack.c.b16 %v5056, %v5055
    %v5062 = vpack.c.b16 %v5058, %v5057
    %vm5067 = vcmask 523264
    %v5069 = vsel %vm5067, %v5027, 0
    %v5072 = vsel %vm5067, %v5028, 0
    %v5075 = vsel %vm5067, %v5029, 0
    %v5078 = vsel %vm5067, %v5030, 0
    %v5081 = vsel %vm5067, %v5031, 0
    %v5084 = vsel %vm5067, %v5032, 0
    %v5087 = vsel %vm5067, %v5033, 0
    %v5090 = vsel %vm5067, %v5034, 0
    %5092 = vmatprep.subr.bf16.mxu0 0
    %5093 = vmatpush1.bf16.msra.mxu0 0
    %5094 = vmatprep.subr.bf16.mxu0 0
    %5095 = vmatpush1.bf16.msra.mxu0 0
    %5096 = vmatprep.subr.bf16.mxu0 0
    %5097 = vmatpush1.bf16.msra.mxu0 0
    %5098 = vmatprep.subr.bf16.mxu0 0
    %5099 = vmatpush1.bf16.msra.mxu0 0
    %5100 = vmatprep.subr.bf16.mxu0 0
    %5101 = vmatpush1.bf16.msra.mxu0 %v5062
    %5102 = vmatprep.subr.bf16.mxu0 0
    %5103 = vmatpush1.bf16.msra.mxu0 %v5061
    %5104 = vmatprep.subr.bf16.mxu0 0
    %5105 = vmatpush1.bf16.msra.mxu0 %v5060
    %5106 = vmatprep.subr.bf16.mxu0 0
    %5107 = vmatpush1.bf16.msra.mxu0 %v5059
    %5108 = vmatprep.subr.bf16.mxu0 0
    %5109 = vmatpush2.bf16.msra.mxu0 0
    %5110 = vmatprep.subr.bf16.mxu0 0
    %5111 = vmatpush2.bf16.msra.mxu0 0
    %5112 = vmatprep.subr.bf16.mxu0 0
    %5113 = vmatpush2.bf16.msra.mxu0 0
    %5114 = vmatprep.subr.bf16.mxu0 0
    %5115 = vmatpush2.bf16.msra.mxu0 0
    %5116 = vmatprep.subr.bf16.mxu0 0
    %5117 = vmatpush2.bf16.msra.mxu0 0
    %5118 = vmatprep.subr.bf16.mxu0 0
    %5119 = vmatpush2.bf16.msra.mxu0 0
    %5120 = vmatprep.subr.bf16.mxu0 0
    %5121 = vmatpush2.bf16.msra.mxu0 0
    %5122 = vmatprep.subr.bf16.mxu0 0
    %5123 = vmatpush2.bf16.msra.mxu0 0
    %5124 = vmatprep.mubr.bf16.mxu0 0
    %5125 = vmatmul.mubr.bf16.gmra.mxu0 %v5069
    %v5126 = vpop.f32.mrf.mxu0
    %v5127 = vadd.f32 0.0, %v5126
    %v5128 = vpop.f32.mrf.mxu0
    %v5129 = vpop.f32.mrf.mxu0
    %v5130 = vadd.f32 0.0, %v5129
    %v5131 = vpop.f32.mrf.mxu0
    %5132 = vmatprep.mubr.bf16.mxu0 0
    %5133 = vmatmul.mubr.bf16.gmra.mxu0 %v5072
    %v5134 = vpop.f32.mrf.mxu0
    %v5135 = vadd.f32 0.0, %v5134
    %v5136 = vpop.f32.mrf.mxu0
    %v5137 = vpop.f32.mrf.mxu0
    %v5138 = vadd.f32 0.0, %v5137
    %v5139 = vpop.f32.mrf.mxu0
    %5140 = vmatprep.mubr.bf16.mxu0 0
    %5141 = vmatmul.mubr.bf16.gmra.mxu0 %v5075
    %v5142 = vpop.f32.mrf.mxu0
    %v5143 = vadd.f32 0.0, %v5142
    %v5144 = vpop.f32.mrf.mxu0
    %v5145 = vpop.f32.mrf.mxu0
    %v5146 = vadd.f32 0.0, %v5145
    %v5147 = vpop.f32.mrf.mxu0
    %5148 = vmatprep.mubr.bf16.mxu0 0
    %5149 = vmatmul.mubr.bf16.gmra.mxu0 %v5078
    %v5150 = vpop.f32.mrf.mxu0
    %v5151 = vadd.f32 0.0, %v5150
    %v5152 = vpop.f32.mrf.mxu0
    %v5153 = vpop.f32.mrf.mxu0
    %v5154 = vadd.f32 0.0, %v5153
    %v5155 = vpop.f32.mrf.mxu0
    %5156 = vmatprep.mubr.bf16.mxu0 0
    %5157 = vmatmul.mubr.bf16.gmra.mxu0 %v5081
    %v5158 = vpop.f32.mrf.mxu0
    %v5159 = vadd.f32 0.0, %v5158
    %v5160 = vpop.f32.mrf.mxu0
    %v5161 = vpop.f32.mrf.mxu0
    %v5162 = vadd.f32 0.0, %v5161
    %v5163 = vpop.f32.mrf.mxu0
    %5164 = vmatprep.mubr.bf16.mxu0 0
    %5165 = vmatmul.mubr.bf16.gmra.mxu0 %v5084
    %v5166 = vpop.f32.mrf.mxu0
    %v5167 = vadd.f32 0.0, %v5166
    %v5168 = vpop.f32.mrf.mxu0
    %v5169 = vpop.f32.mrf.mxu0
    %v5170 = vadd.f32 0.0, %v5169
    %v5171 = vpop.f32.mrf.mxu0
    %5172 = vmatprep.mubr.bf16.mxu0 0
    %5173 = vmatmul.mubr.bf16.gmra.mxu0 %v5087
    %v5174 = vpop.f32.mrf.mxu0
    %v5175 = vadd.f32 0.0, %v5174
    %v5176 = vpop.f32.mrf.mxu0
    %v5177 = vpop.f32.mrf.mxu0
    %v5178 = vadd.f32 0.0, %v5177
    %v5179 = vpop.f32.mrf.mxu0
    %5180 = vmatprep.mubr.bf16.mxu0 0
    %5181 = vmatmul.mubr.bf16.gmra.mxu0 %v5090
    %v5182 = vpop.f32.mrf.mxu0
    %v5183 = vadd.f32 0.0, %v5182
    %v5184 = vpop.f32.mrf.mxu0
    %v5185 = vpop.f32.mrf.mxu0
    %v5186 = vadd.f32 0.0, %v5185
    %v5187 = vpop.f32.mrf.mxu0
    %5188 = vdwg.mxu0
    %v5189 = vld [vmem:[%s10] sm:$0x1]
    %v5191 = vsel %vm5067, %v5189, 0
    %5193 = vmatprep.subr.bf16.mxu0 0
    %5194 = vmatpush1.bf16.xpose.msra.mxu0 %v5090
    %5195 = vmatprep.subr.bf16.mxu0 0
    %5196 = vmatpush1.bf16.xpose.msra.mxu0 %v5087
    %5197 = vmatprep.subr.bf16.mxu0 0
    %5198 = vmatpush1.bf16.xpose.msra.mxu0 %v5084
    %5199 = vmatprep.subr.bf16.mxu0 0
    %5200 = vmatpush1.bf16.xpose.msra.mxu0 %v5081
    %5201 = vmatprep.subr.bf16.mxu0 0
    %5202 = vmatpush1.bf16.xpose.msra.mxu0 %v5078
    %5203 = vmatprep.subr.bf16.mxu0 0
    %5204 = vmatpush1.bf16.xpose.msra.mxu0 %v5075
    %5205 = vmatprep.subr.bf16.mxu0 0
    %5206 = vmatpush1.bf16.xpose.msra.mxu0 %v5072
    %5207 = vmatprep.subr.bf16.mxu0 0
    %5208 = vmatpush1.bf16.xpose.msra.mxu0 %v5069
    %5209 = vmatprep.subr.bf16.mxu0 0
    %5210 = vmatpush2.bf16.xpose.msra.mxu0 0
    %5211 = vmatprep.subr.bf16.mxu0 0
    %5212 = vmatpush2.bf16.xpose.msra.mxu0 0
    %5213 = vmatprep.subr.bf16.mxu0 0
    %5214 = vmatpush2.bf16.xpose.msra.mxu0 0
    %5215 = vmatprep.subr.bf16.mxu0 0
    %5216 = vmatpush2.bf16.xpose.msra.mxu0 0
    %5217 = vmatprep.subr.bf16.mxu0 0
    %5218 = vmatpush2.bf16.xpose.msra.mxu0 0
    %5219 = vmatprep.subr.bf16.mxu0 0
    %5220 = vmatpush2.bf16.xpose.msra.mxu0 0
    %5221 = vmatprep.subr.bf16.mxu0 0
    %5222 = vmatpush2.bf16.xpose.msra.mxu0 0
    %5223 = vmatprep.subr.bf16.mxu0 0
    %5224 = vmatpush2.bf16.xpose.msra.mxu0 0
    %5225 = vmatprep.mubr.bf16.mxu0 0
    %5226 = vmatmul.mubr.bf16.gmra.mxu0 %v5191
    %v5227 = vpop.f32.mrf.mxu0
    %v5228 = vadd.f32 0.0, %v5227
    %v5229 = vpop.f32.mrf.mxu0
    %v5230 = vpop.f32.mrf.mxu0
    %v5231 = vpop.f32.mrf.mxu0
    %5232 = vdwg.mxu0
    %5234 = vset.pattern.permute.xlu0 16
    %5235 = vperm.xlu0 %5234, %v5127
    %v5236 = vpop.permute.xlu0 %5235
    %5239 = vset.pattern.permute.xlu0 16
    %5240 = vperm.xlu0 %5239, %v5130
    %v5241 = vpop.permute.xlu0 %5240
    %5244 = vset.pattern.permute.xlu0 16
    %5245 = vperm.xlu0 %5244, %v5135
    %v5246 = vpop.permute.xlu0 %5245
    %5249 = vset.pattern.permute.xlu0 16
    %5250 = vperm.xlu0 %5249, %v5138
    %v5251 = vpop.permute.xlu0 %5250
    %5254 = vset.pattern.permute.xlu0 16
    %5255 = vperm.xlu0 %5254, %v5143
    %v5256 = vpop.permute.xlu0 %5255
    %5259 = vset.pattern.permute.xlu0 16
    %5260 = vperm.xlu0 %5259, %v5146
    %v5261 = vpop.permute.xlu0 %5260
    %5264 = vset.pattern.permute.xlu0 16
    %5265 = vperm.xlu0 %5264, %v5151
    %v5266 = vpop.permute.xlu0 %5265
    %5269 = vset.pattern.permute.xlu0 16
    %5270 = vperm.xlu0 %5269, %v5154
    %v5271 = vpop.permute.xlu0 %5270
    %5274 = vset.pattern.permute.xlu0 16
    %5275 = vperm.xlu0 %5274, %v5159
    %v5276 = vpop.permute.xlu0 %5275
    %5279 = vset.pattern.permute.xlu0 16
    %5280 = vperm.xlu0 %5279, %v5162
    %v5281 = vpop.permute.xlu0 %5280
    %5284 = vset.pattern.permute.xlu0 16
    %5285 = vperm.xlu0 %5284, %v5167
    %v5286 = vpop.permute.xlu0 %5285
    %5289 = vset.pattern.permute.xlu0 16
    %5290 = vperm.xlu0 %5289, %v5170
    %v5291 = vpop.permute.xlu0 %5290
    %5294 = vset.pattern.permute.xlu0 16
    %5295 = vperm.xlu0 %5294, %v5175
    %v5296 = vpop.permute.xlu0 %5295
    %5299 = vset.pattern.permute.xlu0 16
    %5300 = vperm.xlu0 %5299, %v5178
    %v5301 = vpop.permute.xlu0 %5300
    %5304 = vset.pattern.permute.xlu0 16
    %5305 = vperm.xlu0 %5304, %v5183
    %v5306 = vpop.permute.xlu0 %5305
    %5309 = vset.pattern.permute.xlu0 16
    %5310 = vperm.xlu0 %5309, %v5186
    %v5311 = vpop.permute.xlu0 %5310
    %v5313 = vlaneseq
    %v5314 = vshrl.u32 %v5313, 7
    %v5315 = vsub.s32 0, %v5314
    %v5316 = vrot.slane %v5228, %v5315
    %v5317 = vadd.f32 %v5236, %v5316
    %v5318 = vadd.f32 %v5241, %v5316
    %v5319 = vadd.f32 %v5246, %v5316
    %v5320 = vadd.f32 %v5251, %v5316
    %v5321 = vadd.f32 %v5256, %v5316
    %v5322 = vadd.f32 %v5261, %v5316
    %v5323 = vadd.f32 %v5266, %v5316
    %v5324 = vadd.f32 %v5271, %v5316
    %v5325 = vadd.f32 %v5276, %v5316
    %v5326 = vadd.f32 %v5281, %v5316
    %v5327 = vadd.f32 %v5286, %v5316
    %v5328 = vadd.f32 %v5291, %v5316
    %v5329 = vadd.f32 %v5296, %v5316
    %v5330 = vadd.f32 %v5301, %v5316
    %v5331 = vadd.f32 %v5306, %v5316
    %v5332 = vadd.f32 %v5311, %v5316
    %v5333 = vld [vmem:[#allocation4] sm:$0xf]
    %v5334 = vld [vmem:[#allocation4 + $0x4] sm:$0xf]
    %v5335 = vld [vmem:[#allocation4 + $0x8] sm:$0xf]
    %v5336 = vld [vmem:[#allocation4 + $0xc] sm:$0xf]
    %v5337 = vld [vmem:[#allocation4 + $0x10] sm:$0xf]
    %v5338 = vld [vmem:[#allocation4 + $0x14] sm:$0xf]
    %v5339 = vld [vmem:[#allocation4 + $0x18] sm:$0xf]
    %v5340 = vld [vmem:[#allocation4 + $0x1c] sm:$0xf]
    %v5341 = vld [vmem:[#allocation4 + $0x20] sm:$0xf]
    %v5342 = vld [vmem:[#allocation4 + $0x24] sm:$0xf]
    %v5343 = vld [vmem:[#allocation4 + $0x28] sm:$0xf]
    %v5344 = vld [vmem:[#allocation4 + $0x2c] sm:$0xf]
    %v5345 = vld [vmem:[#allocation4 + $0x30] sm:$0xf]
    %v5346 = vld [vmem:[#allocation4 + $0x34] sm:$0xf]
    %v5347 = vld [vmem:[#allocation4 + $0x38] sm:$0xf]
    %v5348 = vld [vmem:[#allocation4 + $0x3c] sm:$0xf]
    %v5349 = vunpack.c.l.bf16 %v5333
    %v5350 = vunpack.c.l.bf16 %v5334
    %v5351 = vunpack.c.l.bf16 %v5335
    %v5352 = vunpack.c.l.bf16 %v5336
    %v5353 = vunpack.c.l.bf16 %v5337
    %v5354 = vunpack.c.l.bf16 %v5338
    %v5355 = vunpack.c.l.bf16 %v5339
    %v5356 = vunpack.c.l.bf16 %v5340
    %v5357 = vunpack.c.l.bf16 %v5341
    %v5358 = vunpack.c.l.bf16 %v5342
    %v5359 = vunpack.c.l.bf16 %v5343
    %v5360 = vunpack.c.l.bf16 %v5344
    %v5361 = vunpack.c.l.bf16 %v5345
    %v5362 = vunpack.c.l.bf16 %v5346
    %v5363 = vunpack.c.l.bf16 %v5347
    %v5364 = vunpack.c.l.bf16 %v5348
    %v5365 = vadd.f32 %v5317, %v5349
    %v5366 = vadd.f32 %v5318, %v5350
    %v5367 = vadd.f32 %v5319, %v5351
    %v5368 = vadd.f32 %v5320, %v5352
    %v5369 = vadd.f32 %v5321, %v5353
    %v5370 = vadd.f32 %v5322, %v5354
    %v5371 = vadd.f32 %v5323, %v5355
    %v5372 = vadd.f32 %v5324, %v5356
    %v5373 = vadd.f32 %v5325, %v5357
    %v5374 = vadd.f32 %v5326, %v5358
    %v5375 = vadd.f32 %v5327, %v5359
    %v5376 = vadd.f32 %v5328, %v5360
    %v5377 = vadd.f32 %v5329, %v5361
    %v5378 = vadd.f32 %v5330, %v5362
    %v5379 = vadd.f32 %v5331, %v5363
    %v5380 = vadd.f32 %v5332, %v5364
    %v5381 = vmul.f32 %v5365, 0.2
    %v5382 = vmul.f32 %v5366, 0.2
    %v5383 = vmul.f32 %v5367, 0.2
    %v5384 = vmul.f32 %v5368, 0.2
    %v5385 = vmul.f32 %v5369, 0.2
    %v5386 = vmul.f32 %v5370, 0.2
    %v5387 = vmul.f32 %v5371, 0.2
    %v5388 = vmul.f32 %v5372, 0.2
    %v5389 = vmul.f32 %v5373, 0.2
    %v5390 = vmul.f32 %v5374, 0.2
    %v5391 = vmul.f32 %v5375, 0.2
    %v5392 = vmul.f32 %v5376, 0.2
    %v5393 = vmul.f32 %v5377, 0.2
    %v5394 = vmul.f32 %v5378, 0.2
    %v5395 = vmul.f32 %v5379, 0.2
    %v5396 = vmul.f32 %v5380, 0.2
    %v5397 = vmax.f32 %v5365, %v5381
    %v5398 = vmax.f32 %v5366, %v5382
    %v5399 = vmax.f32 %v5367, %v5383
    %v5400 = vmax.f32 %v5368, %v5384
    %v5401 = vmax.f32 %v5369, %v5385
    %v5402 = vmax.f32 %v5370, %v5386
    %v5403 = vmax.f32 %v5371, %v5387
    %v5404 = vmax.f32 %v5372, %v5388
    %v5405 = vmax.f32 %v5373, %v5389
    %v5406 = vmax.f32 %v5374, %v5390
    %v5407 = vmax.f32 %v5375, %v5391
    %v5408 = vmax.f32 %v5376, %v5392
    %v5409 = vmax.f32 %v5377, %v5393
    %v5410 = vmax.f32 %v5378, %v5394
    %v5411 = vmax.f32 %v5379, %v5395
    %v5412 = vmax.f32 %v5380, %v5396
    %5413 = vmax.xlane.f32.xlu0 %v5397
    %v5414 = vpop.xlane.xlu0 %5413
    %5415 = vmax.xlane.f32.xlu0 %v5398
    %v5416 = vpop.xlane.xlu0 %5415
    %5417 = vmax.xlane.f32.xlu0 %v5399
    %v5418 = vpop.xlane.xlu0 %5417
    %5419 = vmax.xlane.f32.xlu0 %v5400
    %v5420 = vpop.xlane.xlu0 %5419
    %5421 = vmax.xlane.f32.xlu0 %v5401
    %v5422 = vpop.xlane.xlu0 %5421
    %5423 = vmax.xlane.f32.xlu0 %v5402
    %v5424 = vpop.xlane.xlu0 %5423
    %5425 = vmax.xlane.f32.xlu0 %v5403
    %v5426 = vpop.xlane.xlu0 %5425
    %5427 = vmax.xlane.f32.xlu0 %v5404
    %v5428 = vpop.xlane.xlu0 %5427
    %5429 = vmax.xlane.f32.xlu0 %v5405
    %v5430 = vpop.xlane.xlu0 %5429
    %5431 = vmax.xlane.f32.xlu0 %v5406
    %v5432 = vpop.xlane.xlu0 %5431
    %5433 = vmax.xlane.f32.xlu0 %v5407
    %v5434 = vpop.xlane.xlu0 %5433
    %5435 = vmax.xlane.f32.xlu0 %v5408
    %v5436 = vpop.xlane.xlu0 %5435
    %5437 = vmax.xlane.f32.xlu0 %v5409
    %v5438 = vpop.xlane.xlu0 %5437
    %5439 = vmax.xlane.f32.xlu0 %v5410
    %v5440 = vpop.xlane.xlu0 %5439
    %5441 = vmax.xlane.f32.xlu0 %v5411
    %v5442 = vpop.xlane.xlu0 %5441
    %5443 = vmax.xlane.f32.xlu0 %v5412
    %v5444 = vpop.xlane.xlu0 %5443
    %v5445 = vsub.f32 %v5397, %v5414
    %v5446 = vsub.f32 %v5398, %v5416
    %v5447 = vsub.f32 %v5399, %v5418
    %v5448 = vsub.f32 %v5400, %v5420
    %v5449 = vsub.f32 %v5401, %v5422
    %v5450 = vsub.f32 %v5402, %v5424
    %v5451 = vsub.f32 %v5403, %v5426
    %v5452 = vsub.f32 %v5404, %v5428
    %v5453 = vsub.f32 %v5405, %v5430
    %v5454 = vsub.f32 %v5406, %v5432
    %v5455 = vsub.f32 %v5407, %v5434
    %v5456 = vsub.f32 %v5408, %v5436
    %v5457 = vsub.f32 %v5409, %v5438
    %v5458 = vsub.f32 %v5410, %v5440
    %v5459 = vsub.f32 %v5411, %v5442
    %v5460 = vsub.f32 %v5412, %v5444
    %v5461 = vmul.f32 %v5445, 1.442695
    %v5462 = vpow.pop %v5461
    %v5463 = vmul.f32 %v5446, 1.442695
    %v5464 = vpow.pop %v5463
    %v5465 = vmul.f32 %v5447, 1.442695
    %v5466 = vpow.pop %v5465
    %v5467 = vmul.f32 %v5448, 1.442695
    %v5468 = vpow.pop %v5467
    %v5469 = vmul.f32 %v5449, 1.442695
    %v5470 = vpow.pop %v5469
    %v5471 = vmul.f32 %v5450, 1.442695
    %v5472 = vpow.pop %v5471
    %v5473 = vmul.f32 %v5451, 1.442695
    %v5474 = vpow.pop %v5473
    %v5475 = vmul.f32 %v5452, 1.442695
    %v5476 = vpow.pop %v5475
    %v5477 = vmul.f32 %v5453, 1.442695
    %v5478 = vpow.pop %v5477
    %v5479 = vmul.f32 %v5454, 1.442695
    %v5480 = vpow.pop %v5479
    %v5481 = vmul.f32 %v5455, 1.442695
    %v5482 = vpow.pop %v5481
    %v5483 = vmul.f32 %v5456, 1.442695
    %v5484 = vpow.pop %v5483
    %v5485 = vmul.f32 %v5457, 1.442695
    %v5486 = vpow.pop %v5485
    %v5487 = vmul.f32 %v5458, 1.442695
    %v5488 = vpow.pop %v5487
    %v5489 = vmul.f32 %v5459, 1.442695
    %v5490 = vpow.pop %v5489
    %v5491 = vmul.f32 %v5460, 1.442695
    %v5492 = vpow.pop %v5491
    %5493 = vadd.xlane.f32.xlu0 %v5462
    %v5494 = vpop.xlane.xlu0 %5493
    %5495 = vadd.xlane.f32.xlu0 %v5464
    %v5496 = vpop.xlane.xlu0 %5495
    %5497 = vadd.xlane.f32.xlu0 %v5466
    %v5498 = vpop.xlane.xlu0 %5497
    %5499 = vadd.xlane.f32.xlu0 %v5468
    %v5500 = vpop.xlane.xlu0 %5499
    %5501 = vadd.xlane.f32.xlu0 %v5470
    %v5502 = vpop.xlane.xlu0 %5501
    %5503 = vadd.xlane.f32.xlu0 %v5472
    %v5504 = vpop.xlane.xlu0 %5503
    %5505 = vadd.xlane.f32.xlu0 %v5474
    %v5506 = vpop.xlane.xlu0 %5505
    %5507 = vadd.xlane.f32.xlu0 %v5476
    %v5508 = vpop.xlane.xlu0 %5507
    %5509 = vadd.xlane.f32.xlu0 %v5478
    %v5510 = vpop.xlane.xlu0 %5509
    %5511 = vadd.xlane.f32.xlu0 %v5480
    %v5512 = vpop.xlane.xlu0 %5511
    %5513 = vadd.xlane.f32.xlu0 %v5482
    %v5514 = vpop.xlane.xlu0 %5513
    %5515 = vadd.xlane.f32.xlu0 %v5484
    %v5516 = vpop.xlane.xlu0 %5515
    %5517 = vadd.xlane.f32.xlu0 %v5486
    %v5518 = vpop.xlane.xlu0 %5517
    %5519 = vadd.xlane.f32.xlu0 %v5488
    %v5520 = vpop.xlane.xlu0 %5519
    %5521 = vadd.xlane.f32.xlu0 %v5490
    %v5522 = vpop.xlane.xlu0 %5521
    %5523 = vadd.xlane.f32.xlu0 %v5492
    %v5524 = vpop.xlane.xlu0 %5523
    %v5525 = vpack.c.bf16 %v5464, %v5462
    %v5526 = vpack.c.bf16 %v5468, %v5466
    %v5527 = vpack.c.bf16 %v5472, %v5470
    %v5528 = vpack.c.bf16 %v5476, %v5474
    %v5529 = vpack.c.bf16 %v5480, %v5478
    %v5530 = vpack.c.bf16 %v5484, %v5482
    %v5531 = vpack.c.bf16 %v5488, %v5486
    %v5532 = vpack.c.bf16 %v5492, %v5490
    %v5533 = vpack.c.bf16 %v5130, %v5127
    %v5534 = vpack.c.bf16 %v5138, %v5135
    %v5535 = vpack.c.bf16 %v5146, %v5143
    %v5536 = vpack.c.bf16 %v5154, %v5151
    %v5537 = vpack.c.bf16 %v5162, %v5159
    %v5538 = vpack.c.bf16 %v5170, %v5167
    %v5539 = vpack.c.bf16 %v5178, %v5175
    %v5540 = vpack.c.bf16 %v5186, %v5183
    %5541 = vmatprep.subr.bf16.mxu0 0
    %5542 = vmatpush1.bf16.msra.mxu0 %v5540
    %5543 = vmatprep.subr.bf16.mxu0 0
    %5544 = vmatpush1.bf16.msra.mxu0 %v5539
    %5545 = vmatprep.subr.bf16.mxu0 0
    %5546 = vmatpush1.bf16.msra.mxu0 %v5538
    %5547 = vmatprep.subr.bf16.mxu0 0
    %5548 = vmatpush1.bf16.msra.mxu0 %v5537
    %5549 = vmatprep.subr.bf16.mxu0 0
    %5550 = vmatpush1.bf16.msra.mxu0 %v5536
    %5551 = vmatprep.subr.bf16.mxu0 0
    %5552 = vmatpush1.bf16.msra.mxu0 %v5535
    %5553 = vmatprep.subr.bf16.mxu0 0
    %5554 = vmatpush1.bf16.msra.mxu0 %v5534
    %5555 = vmatprep.subr.bf16.mxu0 0
    %5556 = vmatpush1.bf16.msra.mxu0 %v5533
    %5557 = vmatprep.subr.bf16.mxu0 0
    %5558 = vmatpush2.bf16.msra.mxu0 0
    %5559 = vmatprep.subr.bf16.mxu0 0
    %5560 = vmatpush2.bf16.msra.mxu0 0
    %5561 = vmatprep.subr.bf16.mxu0 0
    %5562 = vmatpush2.bf16.msra.mxu0 0
    %5563 = vmatprep.subr.bf16.mxu0 0
    %5564 = vmatpush2.bf16.msra.mxu0 0
    %5565 = vmatprep.subr.bf16.mxu0 0
    %5566 = vmatpush2.bf16.msra.mxu0 0
    %5567 = vmatprep.subr.bf16.mxu0 0
    %5568 = vmatpush2.bf16.msra.mxu0 0
    %5569 = vmatprep.subr.bf16.mxu0 0
    %5570 = vmatpush2.bf16.msra.mxu0 0
    %5571 = vmatprep.subr.bf16.mxu0 0
    %5572 = vmatpush2.bf16.msra.mxu0 0
    %5573 = vmatprep.mubr.bf16.mxu0 0
    %5574 = vmatmul.mubr.bf16.gmra.mxu0 %v5525
    %v5575 = vpop.f32.mrf.mxu0
    %v5576 = vadd.f32 0.0, %v5575
    %v5577 = vpop.f32.mrf.mxu0
    %v5578 = vpop.f32.mrf.mxu0
    %v5579 = vadd.f32 0.0, %v5578
    %v5580 = vpop.f32.mrf.mxu0
    %5581 = vmatprep.mubr.bf16.mxu0 0
    %5582 = vmatmul.mubr.bf16.gmra.mxu0 %v5526
    %v5583 = vpop.f32.mrf.mxu0
    %v5584 = vadd.f32 0.0, %v5583
    %v5585 = vpop.f32.mrf.mxu0
    %v5586 = vpop.f32.mrf.mxu0
    %v5587 = vadd.f32 0.0, %v5586
    %v5588 = vpop.f32.mrf.mxu0
    %5589 = vmatprep.mubr.bf16.mxu0 0
    %5590 = vmatmul.mubr.bf16.gmra.mxu0 %v5527
    %v5591 = vpop.f32.mrf.mxu0
    %v5592 = vadd.f32 0.0, %v5591
    %v5593 = vpop.f32.mrf.mxu0
    %v5594 = vpop.f32.mrf.mxu0
    %v5595 = vadd.f32 0.0, %v5594
    %v5596 = vpop.f32.mrf.mxu0
    %5597 = vmatprep.mubr.bf16.mxu0 0
    %5598 = vmatmul.mubr.bf16.gmra.mxu0 %v5528
    %v5599 = vpop.f32.mrf.mxu0
    %v5600 = vadd.f32 0.0, %v5599
    %v5601 = vpop.f32.mrf.mxu0
    %v5602 = vpop.f32.mrf.mxu0
    %v5603 = vadd.f32 0.0, %v5602
    %v5604 = vpop.f32.mrf.mxu0
    %5605 = vmatprep.mubr.bf16.mxu0 0
    %5606 = vmatmul.mubr.bf16.gmra.mxu0 %v5529
    %v5607 = vpop.f32.mrf.mxu0
    %v5608 = vadd.f32 0.0, %v5607
    %v5609 = vpop.f32.mrf.mxu0
    %v5610 = vpop.f32.mrf.mxu0
    %v5611 = vadd.f32 0.0, %v5610
    %v5612 = vpop.f32.mrf.mxu0
    %5613 = vmatprep.mubr.bf16.mxu0 0
    %5614 = vmatmul.mubr.bf16.gmra.mxu0 %v5530
    %v5615 = vpop.f32.mrf.mxu0
    %v5616 = vadd.f32 0.0, %v5615
    %v5617 = vpop.f32.mrf.mxu0
    %v5618 = vpop.f32.mrf.mxu0
    %v5619 = vadd.f32 0.0, %v5618
    %v5620 = vpop.f32.mrf.mxu0
    %5621 = vmatprep.mubr.bf16.mxu0 0
    %5622 = vmatmul.mubr.bf16.gmra.mxu0 %v5531
    %v5623 = vpop.f32.mrf.mxu0
    %v5624 = vadd.f32 0.0, %v5623
    %v5625 = vpop.f32.mrf.mxu0
    %v5626 = vpop.f32.mrf.mxu0
    %v5627 = vadd.f32 0.0, %v5626
    %v5628 = vpop.f32.mrf.mxu0
    %5629 = vmatprep.mubr.bf16.mxu0 0
    %5630 = vmatmul.mubr.bf16.gmra.mxu0 %v5532
    %v5631 = vpop.f32.mrf.mxu0
    %v5632 = vadd.f32 0.0, %v5631
    %v5633 = vpop.f32.mrf.mxu0
    %v5634 = vpop.f32.mrf.mxu0
    %v5635 = vadd.f32 0.0, %v5634
    %v5636 = vpop.f32.mrf.mxu0
    %5637 = vdwg.mxu0
    %v5638 = vrcp.pop %v5494
    %v5639 = vrcp.pop %v5496
    %v5640 = vrcp.pop %v5498
    %v5641 = vrcp.pop %v5500
    %v5642 = vrcp.pop %v5502
    %v5643 = vrcp.pop %v5504
    %v5644 = vrcp.pop %v5506
    %v5645 = vrcp.pop %v5508
    %v5646 = vrcp.pop %v5510
    %v5647 = vrcp.pop %v5512
    %v5648 = vrcp.pop %v5514
    %v5649 = vrcp.pop %v5516
    %v5650 = vrcp.pop %v5518
    %v5651 = vrcp.pop %v5520
    %v5652 = vrcp.pop %v5522
    %v5653 = vrcp.pop %v5524
    %v5654 = vmul.f32 %v5576, %v5638
    %v5655 = vmul.f32 %v5579, %v5639
    %v5656 = vmul.f32 %v5584, %v5640
    %v5657 = vmul.f32 %v5587, %v5641
    %v5658 = vmul.f32 %v5592, %v5642
    %v5659 = vmul.f32 %v5595, %v5643
    %v5660 = vmul.f32 %v5600, %v5644
    %v5661 = vmul.f32 %v5603, %v5645
    %v5662 = vmul.f32 %v5608, %v5646
    %v5663 = vmul.f32 %v5611, %v5647
    %v5664 = vmul.f32 %v5616, %v5648
    %v5665 = vmul.f32 %v5619, %v5649
    %v5666 = vmul.f32 %v5624, %v5650
    %v5667 = vmul.f32 %v5627, %v5651
    %v5668 = vmul.f32 %v5632, %v5652
    %v5669 = vmul.f32 %v5635, %v5653
    %v5670 = vld [vmem:[%s11] sm:$0x1]
    %v5672 = vlaneseq
    %v5673 = vshrl.u32 %v5672, 7
    %v5674 = vsub.s32 0, %v5673
    %v5675 = vrot.slane %v5670, %v5674
    %v5677 = vadd.f32 %v5654, %v5675
    %v5678 = vadd.f32 %v5655, %v5675
    %v5679 = vadd.f32 %v5656, %v5675
    %v5680 = vadd.f32 %v5657, %v5675
    %v5681 = vadd.f32 %v5658, %v5675
    %v5682 = vadd.f32 %v5659, %v5675
    %v5683 = vadd.f32 %v5660, %v5675
    %v5684 = vadd.f32 %v5661, %v5675
    %v5685 = vadd.f32 %v5662, %v5675
    %v5686 = vadd.f32 %v5663, %v5675
    %v5687 = vadd.f32 %v5664, %v5675
    %v5688 = vadd.f32 %v5665, %v5675
    %v5689 = vadd.f32 %v5666, %v5675
    %v5690 = vadd.f32 %v5667, %v5675
    %v5691 = vadd.f32 %v5668, %v5675
    %v5692 = vadd.f32 %v5669, %v5675
    %v5693 = vld [vmem:[%s12] sm:$0x3]
    %5694 = vmatprep.subr.mxu0 0.0
    %5695 = vmatpush1.msra.mxu0 %v5692
    %5696 = vmatprep.subr.mxu0 0.0
    %5697 = vmatpush1.msra.mxu0 %v5691
    %5698 = vmatprep.subr.mxu0 0.0
    %5699 = vmatpush1.msra.mxu0 %v5690
    %5700 = vmatprep.subr.mxu0 0.0
    %5701 = vmatpush1.msra.mxu0 %v5689
    %5702 = vmatprep.subr.mxu0 0.0
    %5703 = vmatpush1.msra.mxu0 %v5688
    %5704 = vmatprep.subr.mxu0 0.0
    %5705 = vmatpush1.msra.mxu0 %v5687
    %5706 = vmatprep.subr.mxu0 0.0
    %5707 = vmatpush1.msra.mxu0 %v5686
    %5708 = vmatprep.subr.mxu0 0.0
    %5709 = vmatpush1.msra.mxu0 %v5685
    %5710 = vmatprep.subr.mxu0 0.0
    %5711 = vmatpush1.msra.mxu0 %v5684
    %5712 = vmatprep.subr.mxu0 0.0
    %5713 = vmatpush1.msra.mxu0 %v5683
    %5714 = vmatprep.subr.mxu0 0.0
    %5715 = vmatpush1.msra.mxu0 %v5682
    %5716 = vmatprep.subr.mxu0 0.0
    %5717 = vmatpush1.msra.mxu0 %v5681
    %5718 = vmatprep.subr.mxu0 0.0
    %5719 = vmatpush1.msra.mxu0 %v5680
    %5720 = vmatprep.subr.mxu0 0.0
    %5721 = vmatpush1.msra.mxu0 %v5679
    %5722 = vmatprep.subr.mxu0 0.0
    %5723 = vmatpush1.msra.mxu0 %v5678
    %5724 = vmatprep.subr.mxu0 0.0
    %5725 = vmatpush1.msra.mxu0 %v5677
    %5726 = vmatprep.subr.mxu0 0.0
    %5727 = vmatpush2.msra.mxu0 0.0
    %5728 = vmatprep.subr.mxu0 0.0
    %5729 = vmatpush2.msra.mxu0 0.0
    %5730 = vmatprep.subr.mxu0 0.0
    %5731 = vmatpush2.msra.mxu0 0.0
    %5732 = vmatprep.subr.mxu0 0.0
    %5733 = vmatpush2.msra.mxu0 0.0
    %5734 = vmatprep.subr.mxu0 0.0
    %5735 = vmatpush2.msra.mxu0 0.0
    %5736 = vmatprep.subr.mxu0 0.0
    %5737 = vmatpush2.msra.mxu0 0.0
    %5738 = vmatprep.subr.mxu0 0.0
    %5739 = vmatpush2.msra.mxu0 0.0
    %5740 = vmatprep.subr.mxu0 0.0
    %5741 = vmatpush2.msra.mxu0 0.0
    %5742 = vmatprep.subr.mxu0 0.0
    %5743 = vmatpush2.msra.mxu0 0.0
    %5744 = vmatprep.subr.mxu0 0.0
    %5745 = vmatpush2.msra.mxu0 0.0
    %5746 = vmatprep.subr.mxu0 0.0
    %5747 = vmatpush2.msra.mxu0 0.0
    %5748 = vmatprep.subr.mxu0 0.0
    %5749 = vmatpush2.msra.mxu0 0.0
    %5750 = vmatprep.subr.mxu0 0.0
    %5751 = vmatpush2.msra.mxu0 0.0
    %5752 = vmatprep.subr.mxu0 0.0
    %5753 = vmatpush2.msra.mxu0 0.0
    %5754 = vmatprep.subr.mxu0 0.0
    %5755 = vmatpush2.msra.mxu0 0.0
    %5756 = vmatprep.subr.mxu0 0.0
    %5757 = vmatpush2.msra.mxu0 0.0
    %5758 = vmatprep.mubr.f32.mxu0 0.0
    %5759 = vmatmul.mubr.f32.gmra.mxu0 %v5693
    %v5760 = vpop.f32.mrf.mxu0
    %v5761 = vadd.f32 0.0, %v5760
    %v5762 = vpop.f32.mrf.mxu0
    %5763 = vdwg.mxu0
    %vm5764 = vcmask 123904
    %5765 = vst.msk [vmem:[#allocation6] sm:$0x3] %vm5764, %v5761
    // Predicated region
    $region84: #{tpu_custom_call.1} parent=1 // pred_check
      _
    $region85: #{tpu_custom_call.1} parent=1 // pred_check_branch
      %5767 = sbr.rel (0) target = $region87
    $region86: #{tpu_custom_call.1} parent=1 // pred_region
      %s5769 = ssub.s32 32, 32
      %5770 = vsyncadd [#allocation7], %s5769
      %s5772 = sshll.u32 [#allocation6], 4
      %s5773 = int_to_ptr.vmem [resolvable:$true] %s5772
      %5775 = dma.vmem_to_hbm [thread:$0]  %s5773, 32, %s13, [#allocation7]
    $region87: #{tpu_custom_call.1} parent=1 // pred_fallthru
      _
    // Predicated region
    $region88: #{tpu_custom_call.1} parent=1 // pred_check
      _
    $region89: #{tpu_custom_call.1} parent=1 // pred_check_branch
      %5777 = sbr.rel (0) target = $region91
    $region90: #{tpu_custom_call.1} parent=1 // pred_region
      %5778 = dma.done [#allocation7], 32
    $region91: #{tpu_custom_call.1} parent=1 // pred_fallthru
      _
    %5779 = vsyncpa [#allocation7], 1
  %5780 = vsyncmov [#allocation5]
  %s5781 = vpop.sfrf %5780
  %p5782 = scmp.eq.s32.totalorder %s5781, 0
  %p5783 = pneg %p5782
  %5785 = shalt.err (%p5783)

</llo_original>
